<compile_context>
chip_gen: v7x
topology: tpu7x:2x2x1
jax: 0.10.0
libtpu: 0.0.40
codegen_flags: <defaults>
</compile_context>

<pallas_src>
import functools

import jax
import jax.numpy as jnp
from jax.experimental import pallas as pl
from jax.experimental.pallas import tpu as pltpu

H1 = 512   # fc1 / fc3 output width
ZD = 128   # bottleneck width
H3 = 512


def _round_up(x, m):
    return ((x + m - 1) // m) * m


def _vmem_capacity_bytes():
    try:
        return int(pltpu.get_tpu_info().vmem_capacity_bytes)
    except Exception:
        return 64 << 20   # conservative fallback (v7x per-TensorCore VMEM)


def _vmem_estimate(tm, d_pad):
    """Rough resident-VMEM estimate for one grid step."""
    bf16, f32 = 2, 4
    # Buffered(1): single copy of each weight; biases stay f32 (tiny).
    weights = (d_pad * H1 + H1 * ZD + ZD * H3 + H3 * d_pad) * bf16
    biases = (H1 + ZD + H3 + d_pad) * f32
    x_tiles = 2 * tm * d_pad * bf16                       # double-buffered input
    out_tiles = 2 * (tm * ZD + tm * d_pad) * f32          # double-buffered outputs
    interm = tm * (H1 + ZD + H3) * (f32 + bf16)           # f32 act + bf16 copy per dot
    return weights + biases + x_tiles + out_tiles + interm


def _pick_tm(m, d_pad, vmem_cap):
    """M-tile size: 256 fills the 256-row MXU (v6e/v7x) and amortizes per-step
    overhead; fall back to 128 when the batch is small or VMEM is tight."""
    if m < 128:
        return _round_up(max(m, 1), 8)
    if m >= 256 and _vmem_estimate(256, d_pad) <= int(0.70 * vmem_cap):
        return 256
    return 128


# ------------------------------------------------------------------
# Fused kernel: one M-tile of x -> (z, recon); all four layers stay on-chip.
# bf16 MXU matmuls with f32 accumulation; bias + ReLU in f32.
# ------------------------------------------------------------------
def _feature_ae_kernel(x_ref, w1_ref, b1_ref, w2_ref, b2_ref,
                       w3_ref, b3_ref, w4_ref, b4_ref,
                       z_ref, recon_ref):
    bf16 = jnp.bfloat16
    x = x_ref[...]                                           # bf16 tile
    h1 = jnp.maximum(
        jnp.dot(x, w1_ref[...], preferred_element_type=jnp.float32) + b1_ref[...],
        0.0)
    z = jnp.maximum(
        jnp.dot(h1.astype(bf16), w2_ref[...],
                preferred_element_type=jnp.float32) + b2_ref[...],
        0.0)
    h3 = jnp.maximum(
        jnp.dot(z.astype(bf16), w3_ref[...],
                preferred_element_type=jnp.float32) + b3_ref[...],
        0.0)
    recon = jnp.maximum(
        jnp.dot(h3.astype(bf16), w4_ref[...],
                preferred_element_type=jnp.float32) + b4_ref[...],
        0.0)
    z_ref[...] = z.astype(z_ref.dtype)
    recon_ref[...] = recon.astype(recon_ref.dtype)


# ------------------------------------------------------------------
# One-time parameter preparation (outside the per-forward jit):
# pad gene dim to a multiple of 128 and cast weights to bf16.
# ------------------------------------------------------------------
def prepare_feature_ae_params(params, dim):
    d_pad = _round_up(dim, 128)
    bf16 = jnp.bfloat16
    w1 = jnp.pad(params["w1"].astype(bf16), ((0, d_pad - dim), (0, 0)))
    w2 = params["w2"].astype(bf16)
    w3 = params["w3"].astype(bf16)
    w4 = jnp.pad(params["w4"].astype(bf16), ((0, 0), (0, d_pad - dim)))
    b1 = params["b1"].astype(jnp.float32).reshape(1, H1)
    b2 = params["b2"].astype(jnp.float32).reshape(1, ZD)
    b3 = params["b3"].astype(jnp.float32).reshape(1, H3)
    b4 = jnp.pad(params["b4"].astype(jnp.float32), (0, d_pad - dim)).reshape(1, d_pad)
    return dict(w1=w1, b1=b1, w2=w2, b2=b2, w3=w3, b3=b3, w4=w4, b4=b4)


@functools.partial(jax.jit, static_argnames=("dim",))
def feature_ae_pallas(prepped, x, *, dim):
    """Returns (z, recon) = Feature_AE(x); x is reshaped to [-1, dim]."""
    x2d = x.reshape(-1, dim)
    m = x2d.shape[0]
    d_pad = prepped["w1"].shape[0]

    cap = _vmem_capacity_bytes()
    tm = _pick_tm(m, d_pad, cap)
    m_pad = _round_up(m, tm)

    # Zero-pad x: padded K columns / M rows contribute nothing to the dots and
    # the junk (relu(bias)) rows are sliced off below.
    x_bf = x2d.astype(jnp.bfloat16)
    if m_pad != m or d_pad != dim:
        x_bf = jnp.pad(x_bf, ((0, m_pad - m), (0, d_pad - dim)))

    grid = (m_pad // tm,)

    # VMEM budget (generation-aware cap).
    est = _vmem_estimate(tm, d_pad)
    vmem_limit = max(32 << 20, int(est * 1.5) + (1 << 20))
    vmem_limit = min(vmem_limit, int(0.9 * cap))

    flops = 2 * m_pad * (d_pad * H1 + H1 * ZD + ZD * H3 + H3 * d_pad)
    bytes_accessed = (
        2 * m_pad * d_pad                                     # x (bf16)
        + 2 * (d_pad * H1 + H1 * ZD + ZD * H3 + H3 * d_pad)   # weights (bf16)
        + 4 * (H1 + ZD + H3 + d_pad)                          # biases (f32)
        + 4 * (m_pad * ZD + m_pad * d_pad))                   # z + recon (f32)

    resident = pl.Buffered(1)   # constant-index blocks: one VMEM copy, no re-DMA

    z_p, recon_p = pl.pallas_call(
        _feature_ae_kernel,
        out_shape=(
            jax.ShapeDtypeStruct((m_pad, ZD), jnp.float32),
            jax.ShapeDtypeStruct((m_pad, d_pad), jnp.float32),
        ),
        grid_spec=pltpu.PrefetchScalarGridSpec(
            num_scalar_prefetch=0,
            grid=grid,
            in_specs=[
                # x tile: default Buffered(2). TODO(synk): bump to pl.Buffered(3)
                # if xprof shows the x-tile DMA exposed after the bf16 switch.
                pl.BlockSpec((tm, d_pad), lambda i: (i, 0)),
                pl.BlockSpec((d_pad, H1), lambda i: (0, 0), pipeline_mode=resident),  # w1
                pl.BlockSpec((1, H1), lambda i: (0, 0), pipeline_mode=resident),      # b1
                pl.BlockSpec((H1, ZD), lambda i: (0, 0), pipeline_mode=resident),     # w2
                pl.BlockSpec((1, ZD), lambda i: (0, 0), pipeline_mode=resident),      # b2
                pl.BlockSpec((ZD, H3), lambda i: (0, 0), pipeline_mode=resident),     # w3
                pl.BlockSpec((1, H3), lambda i: (0, 0), pipeline_mode=resident),      # b3
                pl.BlockSpec((H3, d_pad), lambda i: (0, 0), pipeline_mode=resident),  # w4
                pl.BlockSpec((1, d_pad), lambda i: (0, 0), pipeline_mode=resident),   # b4
            ],
            out_specs=[
                pl.BlockSpec((tm, ZD), lambda i: (i, 0)),       # z
                pl.BlockSpec((tm, d_pad), lambda i: (i, 0)),    # recon
            ],
        ),
        compiler_params=pltpu.CompilerParams(
            dimension_semantics=("parallel",),   # M tiles -> megacore / v7x 2 TCs
            vmem_limit_bytes=vmem_limit,
        ),
        cost_estimate=pl.CostEstimate(
            flops=flops, transcendentals=0, bytes_accessed=bytes_accessed),
    )(x_bf, prepped["w1"], prepped["b1"], prepped["w2"], prepped["b2"],
      prepped["w3"], prepped["b3"], prepped["w4"], prepped["b4"])

    return z_p[:m], recon_p[:m, :dim]


# ------------------------------------------------------------------
# Parameters (PyTorch nn.Linear-style init, weights stored as [in, out])
# ------------------------------------------------------------------
def init_feature_ae_params(key, dim, dtype=jnp.float32):
    sizes = [(dim, H1), (H1, ZD), (ZD, H3), (H3, dim)]
    params = {}
    keys = jax.random.split(key, 2 * len(sizes))
    for li, (fan_in, fan_out) in enumerate(sizes):
        bound = 1.0 / (fan_in ** 0.5)
        params[f"w{li + 1}"] = jax.random.uniform(
            keys[2 * li], (fan_in, fan_out), dtype=dtype, minval=-bound, maxval=bound)
        params[f"b{li + 1}"] = jax.random.uniform(
            keys[2 * li + 1], (fan_out,), dtype=dtype, minval=-bound, maxval=bound)
    return params


# ------------------------------------------------------------------
# Pure-JAX references
# ------------------------------------------------------------------
def feature_ae_ref(params, x, dim):
    """Full-f32 reference (matches the PyTorch module numerics)."""
    x2d = x.reshape(-1, dim)
    h1 = jax.nn.relu(x2d @ params["w1"] + params["b1"])
    z = jax.nn.relu(h1 @ params["w2"] + params["b2"])
    h3 = jax.nn.relu(z @ params["w3"] + params["b3"])
    recon = jax.nn.relu(h3 @ params["w4"] + params["b4"])
    return z, recon


def feature_ae_ref_bf16(params, x, dim):
    """Reference that mirrors the kernel's bf16-matmul / f32-accumulate path."""
    bf16 = jnp.bfloat16

    def lin(a, w, b):
        y = jnp.dot(a.astype(bf16), w.astype(bf16),
                    preferred_element_type=jnp.float32) + b.astype(jnp.float32)
        return jax.nn.relu(y)

    x2d = x.reshape(-1, dim).astype(jnp.float32)
    h1 = lin(x2d, params["w1"], params["b1"])
    z = lin(h1, params["w2"], params["b2"])
    h3 = lin(z, params["w3"], params["b3"])
    recon = lin(h3, params["w4"], params["b4"])
    return z, recon


if __name__ == "__main__":
    key = jax.random.PRNGKey(0)
    k_params, k_x = jax.random.split(key)

    # Small but realistic-ish: neither batch nor gene dim is a multiple of the
    # tile sizes (exercises the padding path) and batch gives 2 parallel M tiles.
    batch, dim = 200, 300
    params = init_feature_ae_params(k_params, dim)
    prepped = prepare_feature_ae_params(params, dim)
    x = jax.random.normal(k_x, (batch, dim), dtype=jnp.float32)

    z, recon = feature_ae_pallas(prepped, x, dim=dim)
    jax.block_until_ready((z, recon))

    assert z.shape == (batch, ZD), z.shape
    assert recon.shape == (batch, dim), recon.shape

    # Tight check vs. a reference doing the same bf16 matmuls w/ f32 accumulation.
    z_b, recon_b = feature_ae_ref_bf16(params, x, dim)
    assert jnp.allclose(z, z_b, atol=1e-2, rtol=1e-2), float(
        jnp.max(jnp.abs(z - z_b)))
    assert jnp.allclose(recon, recon_b, atol=1e-2, rtol=1e-2), float(
        jnp.max(jnp.abs(recon - recon_b)))

    # Loose check vs. the full-f32 reference (bf16 quantization error budget).
    z_f, recon_f = feature_ae_ref(params, x, dim)
    assert jnp.allclose(z, z_f, atol=6e-2, rtol=6e-2), float(
        jnp.max(jnp.abs(z - z_f)))
    assert jnp.allclose(recon, recon_f, atol=6e-2, rtol=6e-2), float(
        jnp.max(jnp.abs(recon - recon_f)))

    print("KERNEL_OK")
</pallas_src>

<mosaic_0001>
module attributes {stable_mosaic.version = 11 : i64} {
  func.func @_feature_ae_kernel(%arg0: i32, %arg1: memref<128x384xbf16, #tpu.memory_space<vmem>>, %arg2: memref<384x512xbf16, #tpu.memory_space<vmem>>, %arg3: memref<1x512xf32, #tpu.memory_space<vmem>>, %arg4: memref<512x128xbf16, #tpu.memory_space<vmem>>, %arg5: memref<1x128xf32, #tpu.memory_space<vmem>>, %arg6: memref<128x512xbf16, #tpu.memory_space<vmem>>, %arg7: memref<1x512xf32, #tpu.memory_space<vmem>>, %arg8: memref<512x384xbf16, #tpu.memory_space<vmem>>, %arg9: memref<1x384xf32, #tpu.memory_space<vmem>>, %arg10: memref<128x128xf32, #tpu.memory_space<vmem>>, %arg11: memref<128x384xf32, #tpu.memory_space<vmem>>) attributes {dimension_semantics = [#tpu.dimension_semantics<parallel>], iteration_bounds = array<i64: 2>, scalar_prefetch = 0 : i64, scratch_operands = 0 : i64, tpu.core_type = #tpu.core_type<tc>, window_params = [{transform_indices = @transform_0, window_bounds = array<i64: 128, 384>}, {pipeline_mode = #tpu.pipeline_mode<synchronous>, transform_indices = @transform_1, window_bounds = array<i64: 384, 512>}, {pipeline_mode = #tpu.pipeline_mode<synchronous>, transform_indices = @transform_2, window_bounds = array<i64: 1, 512>}, {pipeline_mode = #tpu.pipeline_mode<synchronous>, transform_indices = @transform_3, window_bounds = array<i64: 512, 128>}, {pipeline_mode = #tpu.pipeline_mode<synchronous>, transform_indices = @transform_4, window_bounds = array<i64: 1, 128>}, {pipeline_mode = #tpu.pipeline_mode<synchronous>, transform_indices = @transform_5, window_bounds = array<i64: 128, 512>}, {pipeline_mode = #tpu.pipeline_mode<synchronous>, transform_indices = @transform_6, window_bounds = array<i64: 1, 512>}, {pipeline_mode = #tpu.pipeline_mode<synchronous>, transform_indices = @transform_7, window_bounds = array<i64: 512, 384>}, {pipeline_mode = #tpu.pipeline_mode<synchronous>, transform_indices = @transform_8, window_bounds = array<i64: 1, 384>}, {transform_indices = @transform_9, window_bounds = array<i64: 128, 128>}, {transform_indices = @transform_10, window_bounds = array<i64: 128, 384>}]} {
    %c0 = arith.constant 0 : index
    %c0_0 = arith.constant 0 : index
    %0 = vector.load %arg1[%c0, %c0_0] : memref<128x384xbf16, #tpu.memory_space<vmem>>, vector<128x384xbf16>
    %c0_1 = arith.constant 0 : index
    %c0_2 = arith.constant 0 : index
    %1 = vector.load %arg2[%c0_1, %c0_2] : memref<384x512xbf16, #tpu.memory_space<vmem>>, vector<384x512xbf16>
    %cst = arith.constant dense<0.000000e+00> : vector<128x512xf32>
    %2 = tpu.matmul %0, %1, %cst {dimension_numbers = #tpu.dot_dimension_numbers<[1], [0], [0], [1], [0, 0, 1, 1], [], []>} : vector<128x384xbf16>, vector<384x512xbf16>, vector<128x512xf32> -> vector<128x512xf32>
    %c0_3 = arith.constant 0 : index
    %c0_4 = arith.constant 0 : index
    %3 = vector.load %arg3[%c0_3, %c0_4] : memref<1x512xf32, #tpu.memory_space<vmem>>, vector<1x512xf32>
    %4 = vector.broadcast %3 : vector<1x512xf32> to vector<128x512xf32>
    %5 = arith.addf %2, %4 : vector<128x512xf32>
    %cst_5 = arith.constant 0.000000e+00 : f32
    %6 = vector.broadcast %cst_5 : f32 to vector<128x512xf32>
    %7 = arith.maximumf %5, %6 : vector<128x512xf32>
    %8 = arith.truncf %7 : vector<128x512xf32> to vector<128x512xbf16>
    %c0_6 = arith.constant 0 : index
    %c0_7 = arith.constant 0 : index
    %9 = vector.load %arg4[%c0_6, %c0_7] : memref<512x128xbf16, #tpu.memory_space<vmem>>, vector<512x128xbf16>
    %cst_8 = arith.constant dense<0.000000e+00> : vector<128x128xf32>
    %10 = tpu.matmul %8, %9, %cst_8 {dimension_numbers = #tpu.dot_dimension_numbers<[1], [0], [0], [1], [0, 0, 1, 1], [], []>} : vector<128x512xbf16>, vector<512x128xbf16>, vector<128x128xf32> -> vector<128x128xf32>
    %c0_9 = arith.constant 0 : index
    %c0_10 = arith.constant 0 : index
    %11 = vector.load %arg5[%c0_9, %c0_10] : memref<1x128xf32, #tpu.memory_space<vmem>>, vector<1x128xf32>
    %12 = vector.broadcast %11 : vector<1x128xf32> to vector<128x128xf32>
    %13 = arith.addf %10, %12 : vector<128x128xf32>
    %cst_11 = arith.constant 0.000000e+00 : f32
    %14 = vector.broadcast %cst_11 : f32 to vector<128x128xf32>
    %15 = arith.maximumf %13, %14 : vector<128x128xf32>
    %16 = arith.truncf %15 : vector<128x128xf32> to vector<128x128xbf16>
    %c0_12 = arith.constant 0 : index
    %c0_13 = arith.constant 0 : index
    %17 = vector.load %arg6[%c0_12, %c0_13] : memref<128x512xbf16, #tpu.memory_space<vmem>>, vector<128x512xbf16>
    %cst_14 = arith.constant dense<0.000000e+00> : vector<128x512xf32>
    %18 = tpu.matmul %16, %17, %cst_14 {dimension_numbers = #tpu.dot_dimension_numbers<[1], [0], [0], [1], [0, 0, 1, 1], [], []>} : vector<128x128xbf16>, vector<128x512xbf16>, vector<128x512xf32> -> vector<128x512xf32>
    %c0_15 = arith.constant 0 : index
    %c0_16 = arith.constant 0 : index
    %19 = vector.load %arg7[%c0_15, %c0_16] : memref<1x512xf32, #tpu.memory_space<vmem>>, vector<1x512xf32>
    %20 = vector.broadcast %19 : vector<1x512xf32> to vector<128x512xf32>
    %21 = arith.addf %18, %20 : vector<128x512xf32>
    %cst_17 = arith.constant 0.000000e+00 : f32
    %22 = vector.broadcast %cst_17 : f32 to vector<128x512xf32>
    %23 = arith.maximumf %21, %22 : vector<128x512xf32>
    %24 = arith.truncf %23 : vector<128x512xf32> to vector<128x512xbf16>
    %c0_18 = arith.constant 0 : index
    %c0_19 = arith.constant 0 : index
    %25 = vector.load %arg8[%c0_18, %c0_19] : memref<512x384xbf16, #tpu.memory_space<vmem>>, vector<512x384xbf16>
    %cst_20 = arith.constant dense<0.000000e+00> : vector<128x384xf32>
    %26 = tpu.matmul %24, %25, %cst_20 {dimension_numbers = #tpu.dot_dimension_numbers<[1], [0], [0], [1], [0, 0, 1, 1], [], []>} : vector<128x512xbf16>, vector<512x384xbf16>, vector<128x384xf32> -> vector<128x384xf32>
    %c0_21 = arith.constant 0 : index
    %c0_22 = arith.constant 0 : index
    %27 = vector.load %arg9[%c0_21, %c0_22] : memref<1x384xf32, #tpu.memory_space<vmem>>, vector<1x384xf32>
    %28 = vector.broadcast %27 : vector<1x384xf32> to vector<128x384xf32>
    %29 = arith.addf %26, %28 : vector<128x384xf32>
    %cst_23 = arith.constant 0.000000e+00 : f32
    %30 = vector.broadcast %cst_23 : f32 to vector<128x384xf32>
    %31 = arith.maximumf %29, %30 : vector<128x384xf32>
    %c0_24 = arith.constant 0 : index
    %c0_25 = arith.constant 0 : index
    %32 = vector.load %arg10[%c0_24, %c0_25] : memref<128x128xf32, #tpu.memory_space<vmem>>, vector<128x128xf32>
    tpu.vector_store %arg10[%c0_24, %c0_25], %15 {strides = array<i32>} : memref<128x128xf32, #tpu.memory_space<vmem>>, vector<128x128xf32>,
    %c0_26 = arith.constant 0 : index
    %c0_27 = arith.constant 0 : index
    %33 = vector.load %arg11[%c0_26, %c0_27] : memref<128x384xf32, #tpu.memory_space<vmem>>, vector<128x384xf32>
    tpu.vector_store %arg11[%c0_26, %c0_27], %31 {strides = array<i32>} : memref<128x384xf32, #tpu.memory_space<vmem>>, vector<128x384xf32>,
    return
  }
  func.func @transform_0(%arg0: i32) -> (i32, i32) {
    %c0_i32 = arith.constant 0 : i32
    %c0_i32_0 = arith.constant 0 : i32
    return %arg0, %c0_i32 : i32, i32
  }
  func.func @transform_1(%arg0: i32) -> (i32, i32) {
    %c0_i32 = arith.constant 0 : i32
    %c0_i32_0 = arith.constant 0 : i32
    %c0_i32_1 = arith.constant 0 : i32
    return %c0_i32, %c0_i32_0 : i32, i32
  }
  func.func @transform_2(%arg0: i32) -> (i32, i32) {
    %c0_i32 = arith.constant 0 : i32
    %c0_i32_0 = arith.constant 0 : i32
    %c0_i32_1 = arith.constant 0 : i32
    return %c0_i32, %c0_i32_0 : i32, i32
  }
  func.func @transform_3(%arg0: i32) -> (i32, i32) {
    %c0_i32 = arith.constant 0 : i32
    %c0_i32_0 = arith.constant 0 : i32
    %c0_i32_1 = arith.constant 0 : i32
    return %c0_i32, %c0_i32_0 : i32, i32
  }
  func.func @transform_4(%arg0: i32) -> (i32, i32) {
    %c0_i32 = arith.constant 0 : i32
    %c0_i32_0 = arith.constant 0 : i32
    %c0_i32_1 = arith.constant 0 : i32
    return %c0_i32, %c0_i32_0 : i32, i32
  }
  func.func @transform_5(%arg0: i32) -> (i32, i32) {
    %c0_i32 = arith.constant 0 : i32
    %c0_i32_0 = arith.constant 0 : i32
    %c0_i32_1 = arith.constant 0 : i32
    return %c0_i32, %c0_i32_0 : i32, i32
  }
  func.func @transform_6(%arg0: i32) -> (i32, i32) {
    %c0_i32 = arith.constant 0 : i32
    %c0_i32_0 = arith.constant 0 : i32
    %c0_i32_1 = arith.constant 0 : i32
    return %c0_i32, %c0_i32_0 : i32, i32
  }
  func.func @transform_7(%arg0: i32) -> (i32, i32) {
    %c0_i32 = arith.constant 0 : i32
    %c0_i32_0 = arith.constant 0 : i32
    %c0_i32_1 = arith.constant 0 : i32
    return %c0_i32, %c0_i32_0 : i32, i32
  }
  func.func @transform_8(%arg0: i32) -> (i32, i32) {
    %c0_i32 = arith.constant 0 : i32
    %c0_i32_0 = arith.constant 0 : i32
    %c0_i32_1 = arith.constant 0 : i32
    return %c0_i32, %c0_i32_0 : i32, i32
  }
  func.func @transform_9(%arg0: i32) -> (i32, i32) {
    %c0_i32 = arith.constant 0 : i32
    %c0_i32_0 = arith.constant 0 : i32
    return %arg0, %c0_i32 : i32, i32
  }
  func.func @transform_10(%arg0: i32) -> (i32, i32) {
    %c0_i32 = arith.constant 0 : i32
    %c0_i32_0 = arith.constant 0 : i32
    return %arg0, %c0_i32 : i32, i32
  }
}

</mosaic_0001>

<llo_original>
// kernel: feature_ae_pallas.1
$region0: #{feature_ae_pallas.1}
  #allocation0 [shape = 'u32[]', space=smem, size = 0x4, offset = 0x4, fixed_abs, tag = 'smem constant byte address 0x4 - core index']
  #allocation1 [shape = 'u32[144,128]{1,0:T(1,128)}', space=vmem, size = 0x12000, scoped, tag = 'internal scratch']
  %s0 = inlined_call_operand.vmem [shape: bf16[256,384], index: 0, kind: input, shape index: {}]
  %s1 = inlined_call_operand.vmem [shape: bf16[384,512], index: 1, kind: input, shape index: {}]
  %s2 = inlined_call_operand.vmem [shape: f32[1,512], index: 2, kind: input, shape index: {}]
  %s3 = inlined_call_operand.hbm [shape: bf16[512,128], index: 3, kind: input, shape index: {}]
  %s4 = inlined_call_operand.vmem [shape: f32[1,128], index: 4, kind: input, shape index: {}]
  %s5 = inlined_call_operand.hbm [shape: bf16[128,512], index: 5, kind: input, shape index: {}]
  %s6 = inlined_call_operand.vmem [shape: f32[1,512], index: 6, kind: input, shape index: {}]
  %s7 = inlined_call_operand.vmem [shape: bf16[512,384], index: 7, kind: input, shape index: {}]
  %s8 = inlined_call_operand.vmem [shape: f32[1,384], index: 8, kind: input, shape index: {}]
  %s9 = inlined_call_operand.vmem [shape: f32[256,128], index: 9, kind: output, shape index: {0}]
  %s10 = inlined_call_operand.vmem [shape: f32[256,384], index: 10, kind: output, shape index: {1}]
  %11 = xla_tuple %s9, %s10
  %s12 = sld [smem:[#allocation0]]
  $region85: #{feature_ae_pallas.1} parent=0
    _
  %s14 = ssub.s32 1, %s12
  %s15 = scalar_select 0, %s14, %s12
  $region1: #{feature_ae_pallas.1} parent=0
    #allocation2 [shape = 'u8[131072]{0}', space=vmem, size = 0x20000, scoped, tag = 'input window, operand 3, single buffered']
    #allocation3 [shape = 's32[2]{0}', space=sflag, size = 0x8, scoped, tag = 'scoped memory for feature_ae_pallas.1']
    #allocation4 [shape = 'u8[131072]{0}', space=vmem, size = 0x20000, scoped, tag = 'input window, operand 5, single buffered']
    #allocation5 [shape = 's32[1]{0}', space=sflag, size = 0x4, scoped, tag = 'scoped memory for feature_ae_pallas.1']
    %16 = vsyncpa [#allocation3], 0
    %17 = vsyncpa [#allocation5], 0
    loop: start=0, step=1, limit=4
    $region2: #{feature_ae_pallas.1} parent=1 // loop_pre_header
      _
    $region3: #{feature_ae_pallas.1} parent=1 // loop_header
      %s19 = sphi 0, %s23
      %p20 = scmp.ge.s32.totalorder %s19, 4
      %s29 = sphi 0, %s31
      %s32 = sphi 0, %s29
      %s33 = sphi 0, %s32
      %s49 = sphi 0, %s33
      %s53 = sphi 0, %s53
      %s55 = sphi 0, %s53
      %s56 = sphi 0, %s55
      %s70 = sphi 0, %s56
      %s74 = sphi 0, %s74
      %s76 = sphi 0, %s74
      %s77 = sphi 0, %s76
      %s91 = sphi 0, %s77
      %s95 = sphi 0, %s95
      %s97 = sphi 0, %s95
      %s98 = sphi 0, %s97
      %s112 = sphi 0, %s98
      %s116 = sphi 0, %s116
      %s118 = sphi 0, %s116
      %s119 = sphi 0, %s118
      %s133 = sphi 0, %s119
      %s137 = sphi 0, %s137
      %s139 = sphi 0, %s137
      %s140 = sphi 0, %s139
      %s154 = sphi 0, %s140
      %s158 = sphi 0, %s158
      %s160 = sphi 0, %s158
      %s161 = sphi 0, %s160
      %s175 = sphi 0, %s161
      %s179 = sphi 0, %s179
      %s181 = sphi 0, %s179
      %s182 = sphi 0, %s181
      %s196 = sphi 0, %s182
      %s200 = sphi 0, %s200
      %s202 = sphi 0, %s200
      %s203 = sphi 0, %s202
      %s217 = sphi 0, %s203
      %s223 = sphi 0, %s225
      %s226 = sphi 0, %s223
      %s227 = sphi 0, %s226
      %s243 = sphi 0, %s227
      %s249 = sphi 0, %s251
      %s252 = sphi 0, %s249
      %s253 = sphi 0, %s252
      %s269 = sphi 0, %s253
    $region4: #{feature_ae_pallas.1} parent=1 // loop_header_branch
      %22 = sbr.rel (%p20) target = $region8
    $region5: #{feature_ae_pallas.1} parent=1 // loop_body
      %s24 = ssub.s32 %s19, 1
      %s25 = ssub.s32 %s19, 2
      %s26 = sadd.s32 %s19, 1
      %s27 = ssub.s32 %s19, %s26
      %p28 = scmp.eq.s32.totalorder %s27, 0
      %s30 = sadd.s32 %s29, 1
      %s31 = scalar_select %p28, %s29, %s30
      %p34 = pneg %p28
      %p35 = scmp.eq.s32.totalorder %s19, 1
      %p36 = por %p34, %p35
      %p37 = scmp.ne.s32.totalorder %s29, %s32
      %p38 = scmp.eq.s32.totalorder %s19, 0
      %p39 = por %p37, %p38
      %p40 = scmp.ne.s32.totalorder %s29, %s32
      %p41 = scmp.eq.s32.totalorder %s24, 1
      %p42 = por %p40, %p41
      %p43 = scmp.ne.s32.totalorder %s32, %s33
      %p44 = scmp.eq.s32.totalorder %s24, 0
      %p45 = por %p43, %p44
      %p46 = scmp.ne.s32.totalorder %s32, %s33
      %p47 = scmp.eq.s32.totalorder %s25, 1
      %p48 = por %p46, %p47
      %p50 = scmp.ne.s32.totalorder %s33, %s49
      %p51 = scmp.eq.s32.totalorder %s25, 0
      %p52 = por %p50, %p51
      %s54 = sadd.s32 %s53, 1
      %p57 = scmp.eq.s32.totalorder %s19, 1
      %p58 = scmp.ne.s32.totalorder %s53, %s55
      %p59 = scmp.eq.s32.totalorder %s19, 0
      %p60 = por %p58, %p59
      %p61 = scmp.ne.s32.totalorder %s53, %s55
      %p62 = scmp.eq.s32.totalorder %s24, 1
      %p63 = por %p61, %p62
      %p64 = scmp.ne.s32.totalorder %s55, %s56
      %p65 = scmp.eq.s32.totalorder %s24, 0
      %p66 = por %p64, %p65
      %p67 = scmp.ne.s32.totalorder %s55, %s56
      %p68 = scmp.eq.s32.totalorder %s25, 1
      %p69 = por %p67, %p68
      %p71 = scmp.ne.s32.totalorder %s56, %s70
      %p72 = scmp.eq.s32.totalorder %s25, 0
      %p73 = por %p71, %p72
      %s75 = sadd.s32 %s74, 1
      %p78 = scmp.eq.s32.totalorder %s19, 1
      %p79 = scmp.ne.s32.totalorder %s74, %s76
      %p80 = scmp.eq.s32.totalorder %s19, 0
      %p81 = por %p79, %p80
      %p82 = scmp.ne.s32.totalorder %s74, %s76
      %p83 = scmp.eq.s32.totalorder %s24, 1
      %p84 = por %p82, %p83
      %p85 = scmp.ne.s32.totalorder %s76, %s77
      %p86 = scmp.eq.s32.totalorder %s24, 0
      %p87 = por %p85, %p86
      %p88 = scmp.ne.s32.totalorder %s76, %s77
      %p89 = scmp.eq.s32.totalorder %s25, 1
      %p90 = por %p88, %p89
      %p92 = scmp.ne.s32.totalorder %s77, %s91
      %p93 = scmp.eq.s32.totalorder %s25, 0
      %p94 = por %p92, %p93
      %s96 = sadd.s32 %s95, 1
      %p99 = scmp.eq.s32.totalorder %s19, 1
      %p100 = scmp.ne.s32.totalorder %s95, %s97
      %p101 = scmp.eq.s32.totalorder %s19, 0
      %p102 = por %p100, %p101
      %p103 = scmp.ne.s32.totalorder %s95, %s97
      %p104 = scmp.eq.s32.totalorder %s24, 1
      %p105 = por %p103, %p104
      %p106 = scmp.ne.s32.totalorder %s97, %s98
      %p107 = scmp.eq.s32.totalorder %s24, 0
      %p108 = por %p106, %p107
      %p109 = scmp.ne.s32.totalorder %s97, %s98
      %p110 = scmp.eq.s32.totalorder %s25, 1
      %p111 = por %p109, %p110
      %p113 = scmp.ne.s32.totalorder %s98, %s112
      %p114 = scmp.eq.s32.totalorder %s25, 0
      %p115 = por %p113, %p114
      %s117 = sadd.s32 %s116, 1
      %p120 = scmp.eq.s32.totalorder %s19, 1
      %p121 = scmp.ne.s32.totalorder %s116, %s118
      %p122 = scmp.eq.s32.totalorder %s19, 0
      %p123 = por %p121, %p122
      %p124 = scmp.ne.s32.totalorder %s116, %s118
      %p125 = scmp.eq.s32.totalorder %s24, 1
      %p126 = por %p124, %p125
      %p127 = scmp.ne.s32.totalorder %s118, %s119
      %p128 = scmp.eq.s32.totalorder %s24, 0
      %p129 = por %p127, %p128
      %p130 = scmp.ne.s32.totalorder %s118, %s119
      %p131 = scmp.eq.s32.totalorder %s25, 1
      %p132 = por %p130, %p131
      %p134 = scmp.ne.s32.totalorder %s119, %s133
      %p135 = scmp.eq.s32.totalorder %s25, 0
      %p136 = por %p134, %p135
      %s138 = sadd.s32 %s137, 1
      %p141 = scmp.eq.s32.totalorder %s19, 1
      %p142 = scmp.ne.s32.totalorder %s137, %s139
      %p143 = scmp.eq.s32.totalorder %s19, 0
      %p144 = por %p142, %p143
      %p145 = scmp.ne.s32.totalorder %s137, %s139
      %p146 = scmp.eq.s32.totalorder %s24, 1
      %p147 = por %p145, %p146
      %p148 = scmp.ne.s32.totalorder %s139, %s140
      %p149 = scmp.eq.s32.totalorder %s24, 0
      %p150 = por %p148, %p149
      %p151 = scmp.ne.s32.totalorder %s139, %s140
      %p152 = scmp.eq.s32.totalorder %s25, 1
      %p153 = por %p151, %p152
      %p155 = scmp.ne.s32.totalorder %s140, %s154
      %p156 = scmp.eq.s32.totalorder %s25, 0
      %p157 = por %p155, %p156
      %s159 = sadd.s32 %s158, 1
      %p162 = scmp.eq.s32.totalorder %s19, 1
      %p163 = scmp.ne.s32.totalorder %s158, %s160
      %p164 = scmp.eq.s32.totalorder %s19, 0
      %p165 = por %p163, %p164
      %p166 = scmp.ne.s32.totalorder %s158, %s160
      %p167 = scmp.eq.s32.totalorder %s24, 1
      %p168 = por %p166, %p167
      %p169 = scmp.ne.s32.totalorder %s160, %s161
      %p170 = scmp.eq.s32.totalorder %s24, 0
      %p171 = por %p169, %p170
      %p172 = scmp.ne.s32.totalorder %s160, %s161
      %p173 = scmp.eq.s32.totalorder %s25, 1
      %p174 = por %p172, %p173
      %p176 = scmp.ne.s32.totalorder %s161, %s175
      %p177 = scmp.eq.s32.totalorder %s25, 0
      %p178 = por %p176, %p177
      %s180 = sadd.s32 %s179, 1
      %p183 = scmp.eq.s32.totalorder %s19, 1
      %p184 = scmp.ne.s32.totalorder %s179, %s181
      %p185 = scmp.eq.s32.totalorder %s19, 0
      %p186 = por %p184, %p185
      %p187 = scmp.ne.s32.totalorder %s179, %s181
      %p188 = scmp.eq.s32.totalorder %s24, 1
      %p189 = por %p187, %p188
      %p190 = scmp.ne.s32.totalorder %s181, %s182
      %p191 = scmp.eq.s32.totalorder %s24, 0
      %p192 = por %p190, %p191
      %p193 = scmp.ne.s32.totalorder %s181, %s182
      %p194 = scmp.eq.s32.totalorder %s25, 1
      %p195 = por %p193, %p194
      %p197 = scmp.ne.s32.totalorder %s182, %s196
      %p198 = scmp.eq.s32.totalorder %s25, 0
      %p199 = por %p197, %p198
      %s201 = sadd.s32 %s200, 1
      %p204 = scmp.eq.s32.totalorder %s19, 1
      %p205 = scmp.ne.s32.totalorder %s200, %s202
      %p206 = scmp.eq.s32.totalorder %s19, 0
      %p207 = por %p205, %p206
      %p208 = scmp.ne.s32.totalorder %s200, %s202
      %p209 = scmp.eq.s32.totalorder %s24, 1
      %p210 = por %p208, %p209
      %p211 = scmp.ne.s32.totalorder %s202, %s203
      %p212 = scmp.eq.s32.totalorder %s24, 0
      %p213 = por %p211, %p212
      %p214 = scmp.ne.s32.totalorder %s202, %s203
      %p215 = scmp.eq.s32.totalorder %s25, 1
      %p216 = por %p214, %p215
      %p218 = scmp.ne.s32.totalorder %s203, %s217
      %p219 = scmp.eq.s32.totalorder %s25, 0
      %p220 = por %p218, %p219
      %s221 = ssub.s32 %s19, %s26
      %p222 = scmp.eq.s32.totalorder %s221, 0
      %s224 = sadd.s32 %s223, 1
      %s225 = scalar_select %p222, %s223, %s224
      %p228 = pneg %p222
      %p229 = scmp.eq.s32.totalorder %s19, 1
      %p230 = por %p228, %p229
      %p231 = scmp.ne.s32.totalorder %s223, %s226
      %p232 = scmp.eq.s32.totalorder %s19, 0
      %p233 = por %p231, %p232
      %p234 = scmp.ne.s32.totalorder %s223, %s226
      %p235 = scmp.eq.s32.totalorder %s24, 1
      %p236 = por %p234, %p235
      %p237 = scmp.ne.s32.totalorder %s226, %s227
      %p238 = scmp.eq.s32.totalorder %s24, 0
      %p239 = por %p237, %p238
      %p240 = scmp.ne.s32.totalorder %s226, %s227
      %p241 = scmp.eq.s32.totalorder %s25, 1
      %p242 = por %p240, %p241
      %p244 = scmp.ne.s32.totalorder %s227, %s243
      %p245 = scmp.eq.s32.totalorder %s25, 0
      %p246 = por %p244, %p245
      %s247 = ssub.s32 %s19, %s26
      %p248 = scmp.eq.s32.totalorder %s247, 0
      %s250 = sadd.s32 %s249, 1
      %s251 = scalar_select %p248, %s249, %s250
      %p254 = pneg %p248
      %p255 = scmp.eq.s32.totalorder %s19, 1
      %p256 = por %p254, %p255
      %p257 = scmp.ne.s32.totalorder %s249, %s252
      %p258 = scmp.eq.s32.totalorder %s19, 0
      %p259 = por %p257, %p258
      %p260 = scmp.ne.s32.totalorder %s249, %s252
      %p261 = scmp.eq.s32.totalorder %s24, 1
      %p262 = por %p260, %p261
      %p263 = scmp.ne.s32.totalorder %s252, %s253
      %p264 = scmp.eq.s32.totalorder %s24, 0
      %p265 = por %p263, %p264
      %p266 = scmp.ne.s32.totalorder %s252, %s253
      %p267 = scmp.eq.s32.totalorder %s25, 1
      %p268 = por %p266, %p267
      %p270 = scmp.ne.s32.totalorder %s253, %s269
      %p271 = scmp.eq.s32.totalorder %s25, 0
      %p272 = por %p270, %p271
      %p273 = scmp.le.s32.totalorder 1, %s19
      %p274 = scmp.lt.s32.totalorder %s19, 3
      %p275 = pnand %p273, %p274
      %p276 = pneg %p275
      // Predicated region
      $region9: #{feature_ae_pallas.1} parent=5 // pred_check
        _
      $region10: #{feature_ae_pallas.1} parent=5 // pred_check_branch
        %278 = sbr.rel (%p275) target = $region12
      $region11: #{feature_ae_pallas.1} parent=5 // pred_region
        %s279 = ssub.s32 %s19, 1
        // Predicated region
        $region13: #{feature_ae_pallas.1} parent=11 // pred_check
          %p280 = pneg %p66
        $region14: #{feature_ae_pallas.1} parent=11 // pred_check_branch
          %282 = sbr.rel (%p280) target = $region16
        $region15: #{feature_ae_pallas.1} parent=11 // pred_region
          _
        $region16: #{feature_ae_pallas.1} parent=11 // pred_fallthru
          _
        // Predicated region
        $region17: #{feature_ae_pallas.1} parent=11 // pred_check
          %p283 = pneg %p87
        $region18: #{feature_ae_pallas.1} parent=11 // pred_check_branch
          %285 = sbr.rel (%p283) target = $region20
        $region19: #{feature_ae_pallas.1} parent=11 // pred_region
          _
        $region20: #{feature_ae_pallas.1} parent=11 // pred_fallthru
          _
        // Predicated region
        $region21: #{feature_ae_pallas.1} parent=11 // pred_check
          %p286 = pneg %p108
        $region22: #{feature_ae_pallas.1} parent=11 // pred_check_branch
          %288 = sbr.rel (%p286) target = $region24
        $region23: #{feature_ae_pallas.1} parent=11 // pred_region
          %s290 = ssub.s32 4096, 4096
          %291 = vsyncadd [#allocation3], %s290
          %s292 = sshll.u32 [#allocation2], 4
          %s293 = int_to_ptr.vmem [resolvable:$true] %s292
          %298 = dma.hbm_to_vmem [thread:$0]  %s3, 4096, %s293, [#allocation3], 64, 64, 4
        $region24: #{feature_ae_pallas.1} parent=11 // pred_fallthru
          _
        // Predicated region
        $region25: #{feature_ae_pallas.1} parent=11 // pred_check
          %p299 = pneg %p129
        $region26: #{feature_ae_pallas.1} parent=11 // pred_check_branch
          %301 = sbr.rel (%p299) target = $region28
        $region27: #{feature_ae_pallas.1} parent=11 // pred_region
          _
        $region28: #{feature_ae_pallas.1} parent=11 // pred_fallthru
          _
        // Predicated region
        $region29: #{feature_ae_pallas.1} parent=11 // pred_check
          %p302 = pneg %p150
        $region30: #{feature_ae_pallas.1} parent=11 // pred_check_branch
          %304 = sbr.rel (%p302) target = $region32
        $region31: #{feature_ae_pallas.1} parent=11 // pred_region
          %s306 = ssub.s32 4096, 4096
          %307 = vsyncadd [#allocation5], %s306
          %s308 = sshll.u32 [#allocation4], 4
          %s309 = int_to_ptr.vmem [resolvable:$true] %s308
          %314 = dma.hbm_to_vmem [thread:$0]  %s5, 4096, %s309, [#allocation5], 256, 256, 16
        $region32: #{feature_ae_pallas.1} parent=11 // pred_fallthru
          _
        // Predicated region
        $region33: #{feature_ae_pallas.1} parent=11 // pred_check
          %p315 = pneg %p171
        $region34: #{feature_ae_pallas.1} parent=11 // pred_check_branch
          %317 = sbr.rel (%p315) target = $region36
        $region35: #{feature_ae_pallas.1} parent=11 // pred_region
          _
        $region36: #{feature_ae_pallas.1} parent=11 // pred_fallthru
          _
        // Predicated region
        $region37: #{feature_ae_pallas.1} parent=11 // pred_check
          %p318 = pneg %p192
        $region38: #{feature_ae_pallas.1} parent=11 // pred_check_branch
          %320 = sbr.rel (%p318) target = $region40
        $region39: #{feature_ae_pallas.1} parent=11 // pred_region
          _
        $region40: #{feature_ae_pallas.1} parent=11 // pred_fallthru
          _
        // Predicated region
        $region41: #{feature_ae_pallas.1} parent=11 // pred_check
          %p321 = pneg %p213
        $region42: #{feature_ae_pallas.1} parent=11 // pred_check_branch
          %323 = sbr.rel (%p321) target = $region44
        $region43: #{feature_ae_pallas.1} parent=11 // pred_region
          _
        $region44: #{feature_ae_pallas.1} parent=11 // pred_fallthru
          _
      $region12: #{feature_ae_pallas.1} parent=5 // pred_fallthru
        _
      %p324 = scmp.lt.s32.totalorder %s19, 2
      // Predicated region
      $region45: #{feature_ae_pallas.1} parent=5 // pred_check
        %p325 = pneg %p324
      $region46: #{feature_ae_pallas.1} parent=5 // pred_check_branch
        %327 = sbr.rel (%p325) target = $region48
      $region47: #{feature_ae_pallas.1} parent=5 // pred_region
        // Predicated region
        $region49: #{feature_ae_pallas.1} parent=47 // pred_check
          %p328 = pneg %p39
        $region50: #{feature_ae_pallas.1} parent=47 // pred_check_branch
          %330 = sbr.rel (%p328) target = $region52
        $region51: #{feature_ae_pallas.1} parent=47 // pred_region
          %s331 = smul.u32 16, %s19
          %p332 = scmp.lt.s32.totalorder %s331, 31
          %s333 = scalar_select %p332, %s331, 31
          %s334 = smul.addr %s333, 3
          %s335 = smul.addr %s334, 4
          %s336 = scalar_lea.vmem %s0, %s335
          %s337 = smul.u32 16, %s19
        $region52: #{feature_ae_pallas.1} parent=47 // pred_fallthru
          _
      $region48: #{feature_ae_pallas.1} parent=5 // pred_fallthru
        _
      %p338 = scmp.le.s32.totalorder 1, %s19
      %p339 = scmp.lt.s32.totalorder %s19, 3
      %p340 = pnand %p338, %p339
      %p341 = pneg %p340
      // Predicated region
      $region53: #{feature_ae_pallas.1} parent=5 // pred_check
        _
      $region54: #{feature_ae_pallas.1} parent=5 // pred_check_branch
        %343 = sbr.rel (%p340) target = $region56
      $region55: #{feature_ae_pallas.1} parent=5 // pred_region
        %s344 = ssub.s32 %s19, 1
        // Predicated region
        $region57: #{feature_ae_pallas.1} parent=55 // pred_check
          %p345 = pneg %p108
        $region58: #{feature_ae_pallas.1} parent=55 // pred_check_branch
          %347 = sbr.rel (%p345) target = $region60
        $region59: #{feature_ae_pallas.1} parent=55 // pred_region
          %348 = dma.done [#allocation3], 4096
        $region60: #{feature_ae_pallas.1} parent=55 // pred_fallthru
          _
        // Predicated region
        $region61: #{feature_ae_pallas.1} parent=55 // pred_check
          %p349 = pneg %p150
        $region62: #{feature_ae_pallas.1} parent=55 // pred_check_branch
          %351 = sbr.rel (%p349) target = $region64
        $region63: #{feature_ae_pallas.1} parent=55 // pred_region
          %352 = dma.done [#allocation5], 4096
        $region64: #{feature_ae_pallas.1} parent=55 // pred_fallthru
          _
        %s353 = smul.u32 16, %s24
        %p354 = scmp.lt.s32.totalorder %s353, 31
        %s355 = scalar_select %p354, %s353, 31
        %s356 = smul.addr %s355, 3
        %s357 = smul.addr %s356, 4
        %s358 = scalar_lea.vmem %s0, %s357
        %p359 = pneg %p45
        %p360 = pneg %p42
        %p361 = pneg %p66
        %p362 = pneg %p63
        %p363 = pneg %p87
        %p364 = pneg %p84
        %p365 = pneg %p108
        %p366 = pneg %p105
        %p367 = pneg %p129
        %p368 = pneg %p126
        %p369 = pneg %p150
        %p370 = pneg %p147
        %p371 = pneg %p171
        %p372 = pneg %p168
        %p373 = pneg %p192
        %p374 = pneg %p189
        %p375 = pneg %p213
        %p376 = pneg %p210
        %p377 = pneg %p239
        %p378 = pneg %p236
        %s379 = smul.u32 16, %s24
        %p380 = scmp.lt.s32.totalorder %s379, 31
        %s381 = scalar_select %p380, %s379, 31
        %s382 = smul.addr %s381, 8
        %s383 = scalar_lea.vmem %s9, %s382
        %p384 = pneg %p265
        %p385 = pneg %p262
        %s386 = smul.u32 16, %s24
        %p387 = scmp.lt.s32.totalorder %s386, 31
        %s388 = scalar_select %p387, %s386, 31
        %s389 = smul.addr %s388, 3
        %s390 = smul.addr %s389, 8
        %s391 = scalar_lea.vmem %s10, %s390
        %s392 = smul.u32 16, %s24
        %p393 = scmp.lt.s32.totalorder %s392, 31
        %s394 = scalar_select %p393, %s392, 31
        %s395 = smul.addr %s394, 3
        %s396 = smul.addr %s395, 4
        %s397 = scalar_lea.vmem %s0, %s396
        %s398 = smul.u32 16, %s24
        %s399 = smul.u32 16, %s24
        %p400 = scmp.lt.s32.totalorder %s399, 31
        %s401 = scalar_select %p400, %s399, 31
        %s402 = smul.addr %s401, 8
        %s403 = scalar_lea.vmem %s9, %s402
        %s404 = smul.u32 16, %s24
        %s405 = smul.u32 16, %s24
        %p406 = scmp.lt.s32.totalorder %s405, 31
        %s407 = scalar_select %p406, %s405, 31
        %s408 = smul.addr %s407, 3
        %s409 = smul.addr %s408, 8
        %s410 = scalar_lea.vmem %s10, %s409
        %s411 = smul.u32 16, %s24
        %v413 = vld [vmem:[%s397] sm:$0xff]
        %v414 = vld [vmem:[%s397 + $0x8] sm:$0xf]
        %v415 = vld [vmem:[%s397 + $0xc] sm:$0xff]
        %v416 = vld [vmem:[%s397 + $0x14] sm:$0xf]
        %v417 = vld [vmem:[%s397 + $0x18] sm:$0xff]
        %v418 = vld [vmem:[%s397 + $0x20] sm:$0xf]
        %v419 = vld [vmem:[%s397 + $0x24] sm:$0xff]
        %v420 = vld [vmem:[%s397 + $0x2c] sm:$0xf]
        %v421 = vld [vmem:[%s397 + $0x30] sm:$0xff]
        %v422 = vld [vmem:[%s397 + $0x38] sm:$0xf]
        %v423 = vld [vmem:[%s397 + $0x3c] sm:$0xff]
        %v424 = vld [vmem:[%s397 + $0x44] sm:$0xf]
        %v425 = vld [vmem:[%s397 + $0x48] sm:$0xff]
        %v426 = vld [vmem:[%s397 + $0x50] sm:$0xf]
        %v427 = vld [vmem:[%s397 + $0x54] sm:$0xff]
        %v428 = vld [vmem:[%s397 + $0x5c] sm:$0xf]
        %v429 = vld [vmem:[%s397 + $0x60] sm:$0xff]
        %v430 = vld [vmem:[%s397 + $0x68] sm:$0xf]
        %v431 = vld [vmem:[%s397 + $0x6c] sm:$0xff]
        %v432 = vld [vmem:[%s397 + $0x74] sm:$0xf]
        %v433 = vld [vmem:[%s397 + $0x78] sm:$0xff]
        %v434 = vld [vmem:[%s397 + $0x80] sm:$0xf]
        %v435 = vld [vmem:[%s397 + $0x84] sm:$0xff]
        %v436 = vld [vmem:[%s397 + $0x8c] sm:$0xf]
        %v437 = vld [vmem:[%s397 + $0x90] sm:$0xff]
        %v438 = vld [vmem:[%s397 + $0x98] sm:$0xf]
        %v439 = vld [vmem:[%s397 + $0x9c] sm:$0xff]
        %v440 = vld [vmem:[%s397 + $0xa4] sm:$0xf]
        %v441 = vld [vmem:[%s397 + $0xa8] sm:$0xff]
        %v442 = vld [vmem:[%s397 + $0xb0] sm:$0xf]
        %v443 = vld [vmem:[%s397 + $0xb4] sm:$0xff]
        %v444 = vld [vmem:[%s397 + $0xbc] sm:$0xf]
        %v445 = vld [vmem:[%s1] sm:$0xff]
        %v446 = vld [vmem:[%s1 + $0x8] sm:$0xff]
        %v447 = vld [vmem:[%s1 + $0x10] sm:$0xff]
        %v448 = vld [vmem:[%s1 + $0x18] sm:$0xff]
        %v449 = vld [vmem:[%s1 + $0x20] sm:$0xff]
        %v450 = vld [vmem:[%s1 + $0x28] sm:$0xff]
        %v451 = vld [vmem:[%s1 + $0x30] sm:$0xff]
        %v452 = vld [vmem:[%s1 + $0x38] sm:$0xff]
        %v453 = vld [vmem:[%s1 + $0x40] sm:$0xff]
        %v454 = vld [vmem:[%s1 + $0x48] sm:$0xff]
        %v455 = vld [vmem:[%s1 + $0x50] sm:$0xff]
        %v456 = vld [vmem:[%s1 + $0x58] sm:$0xff]
        %v457 = vld [vmem:[%s1 + $0x60] sm:$0xff]
        %v458 = vld [vmem:[%s1 + $0x68] sm:$0xff]
        %v459 = vld [vmem:[%s1 + $0x70] sm:$0xff]
        %v460 = vld [vmem:[%s1 + $0x78] sm:$0xff]
        %v461 = vld [vmem:[%s1 + $0x80] sm:$0xff]
        %v462 = vld [vmem:[%s1 + $0x88] sm:$0xff]
        %v463 = vld [vmem:[%s1 + $0x90] sm:$0xff]
        %v464 = vld [vmem:[%s1 + $0x98] sm:$0xff]
        %v465 = vld [vmem:[%s1 + $0xa0] sm:$0xff]
        %v466 = vld [vmem:[%s1 + $0xa8] sm:$0xff]
        %v467 = vld [vmem:[%s1 + $0xb0] sm:$0xff]
        %v468 = vld [vmem:[%s1 + $0xb8] sm:$0xff]
        %v469 = vld [vmem:[%s1 + $0xc0] sm:$0xff]
        %v470 = vld [vmem:[%s1 + $0xc8] sm:$0xff]
        %v471 = vld [vmem:[%s1 + $0xd0] sm:$0xff]
        %v472 = vld [vmem:[%s1 + $0xd8] sm:$0xff]
        %v473 = vld [vmem:[%s1 + $0xe0] sm:$0xff]
        %v474 = vld [vmem:[%s1 + $0xe8] sm:$0xff]
        %v475 = vld [vmem:[%s1 + $0xf0] sm:$0xff]
        %v476 = vld [vmem:[%s1 + $0xf8] sm:$0xff]
        %v477 = vld [vmem:[%s1 + $0x100] sm:$0xff]
        %v478 = vld [vmem:[%s1 + $0x108] sm:$0xff]
        %v479 = vld [vmem:[%s1 + $0x110] sm:$0xff]
        %v480 = vld [vmem:[%s1 + $0x118] sm:$0xff]
        %v481 = vld [vmem:[%s1 + $0x120] sm:$0xff]
        %v482 = vld [vmem:[%s1 + $0x128] sm:$0xff]
        %v483 = vld [vmem:[%s1 + $0x130] sm:$0xff]
        %v484 = vld [vmem:[%s1 + $0x138] sm:$0xff]
        %v485 = vld [vmem:[%s1 + $0x140] sm:$0xff]
        %v486 = vld [vmem:[%s1 + $0x148] sm:$0xff]
        %v487 = vld [vmem:[%s1 + $0x150] sm:$0xff]
        %v488 = vld [vmem:[%s1 + $0x158] sm:$0xff]
        %v489 = vld [vmem:[%s1 + $0x160] sm:$0xff]
        %v490 = vld [vmem:[%s1 + $0x168] sm:$0xff]
        %v491 = vld [vmem:[%s1 + $0x170] sm:$0xff]
        %v492 = vld [vmem:[%s1 + $0x178] sm:$0xff]
        %v493 = vld [vmem:[%s1 + $0x180] sm:$0xff]
        %v494 = vld [vmem:[%s1 + $0x188] sm:$0xff]
        %v495 = vld [vmem:[%s1 + $0x190] sm:$0xff]
        %v496 = vld [vmem:[%s1 + $0x198] sm:$0xff]
        %v497 = vld [vmem:[%s1 + $0x1a0] sm:$0xff]
        %v498 = vld [vmem:[%s1 + $0x1a8] sm:$0xff]
        %v499 = vld [vmem:[%s1 + $0x1b0] sm:$0xff]
        %v500 = vld [vmem:[%s1 + $0x1b8] sm:$0xff]
        %v501 = vld [vmem:[%s1 + $0x1c0] sm:$0xff]
        %v502 = vld [vmem:[%s1 + $0x1c8] sm:$0xff]
        %v503 = vld [vmem:[%s1 + $0x1d0] sm:$0xff]
        %v504 = vld [vmem:[%s1 + $0x1d8] sm:$0xff]
        %v505 = vld [vmem:[%s1 + $0x1e0] sm:$0xff]
        %v506 = vld [vmem:[%s1 + $0x1e8] sm:$0xff]
        %v507 = vld [vmem:[%s1 + $0x1f0] sm:$0xff]
        %v508 = vld [vmem:[%s1 + $0x1f8] sm:$0xff]
        %v509 = vld [vmem:[%s1 + $0x200] sm:$0xff]
        %v510 = vld [vmem:[%s1 + $0x208] sm:$0xff]
        %v511 = vld [vmem:[%s1 + $0x210] sm:$0xff]
        %v512 = vld [vmem:[%s1 + $0x218] sm:$0xff]
        %v513 = vld [vmem:[%s1 + $0x220] sm:$0xff]
        %v514 = vld [vmem:[%s1 + $0x228] sm:$0xff]
        %v515 = vld [vmem:[%s1 + $0x230] sm:$0xff]
        %v516 = vld [vmem:[%s1 + $0x238] sm:$0xff]
        %v517 = vld [vmem:[%s1 + $0x240] sm:$0xff]
        %v518 = vld [vmem:[%s1 + $0x248] sm:$0xff]
        %v519 = vld [vmem:[%s1 + $0x250] sm:$0xff]
        %v520 = vld [vmem:[%s1 + $0x258] sm:$0xff]
        %v521 = vld [vmem:[%s1 + $0x260] sm:$0xff]
        %v522 = vld [vmem:[%s1 + $0x268] sm:$0xff]
        %v523 = vld [vmem:[%s1 + $0x270] sm:$0xff]
        %v524 = vld [vmem:[%s1 + $0x278] sm:$0xff]
        %v525 = vld [vmem:[%s1 + $0x280] sm:$0xff]
        %v526 = vld [vmem:[%s1 + $0x288] sm:$0xff]
        %v527 = vld [vmem:[%s1 + $0x290] sm:$0xff]
        %v528 = vld [vmem:[%s1 + $0x298] sm:$0xff]
        %v529 = vld [vmem:[%s1 + $0x2a0] sm:$0xff]
        %v530 = vld [vmem:[%s1 + $0x2a8] sm:$0xff]
        %v531 = vld [vmem:[%s1 + $0x2b0] sm:$0xff]
        %v532 = vld [vmem:[%s1 + $0x2b8] sm:$0xff]
        %v533 = vld [vmem:[%s1 + $0x2c0] sm:$0xff]
        %v534 = vld [vmem:[%s1 + $0x2c8] sm:$0xff]
        %v535 = vld [vmem:[%s1 + $0x2d0] sm:$0xff]
        %v536 = vld [vmem:[%s1 + $0x2d8] sm:$0xff]
        %v537 = vld [vmem:[%s1 + $0x2e0] sm:$0xff]
        %v538 = vld [vmem:[%s1 + $0x2e8] sm:$0xff]
        %v539 = vld [vmem:[%s1 + $0x2f0] sm:$0xff]
        %v540 = vld [vmem:[%s1 + $0x2f8] sm:$0xff]
        %v541 = vld [vmem:[%s2] sm:$0xf]
        %v543 = vlaneseq
        %v544 = vshrl.u32 %v543, 7
        %v545 = vsub.s32 0, %v544
        %v546 = vrot.slane %v541, %v545
        %v547 = vlaneseq
        %v548 = vshrl.u32 %v547, 7
        %v549 = vsub.s32 1, %v548
        %v550 = vrot.slane %v541, %v549
        %v551 = vlaneseq
        %v552 = vshrl.u32 %v551, 7
        %v553 = vsub.s32 2, %v552
        %v554 = vrot.slane %v541, %v553
        %v555 = vlaneseq
        %v556 = vshrl.u32 %v555, 7
        %v557 = vsub.s32 3, %v556
        %v558 = vrot.slane %v541, %v557
        %v595 = vunpack.c.l.b16 %v413
        %v596 = vunpack.c.h.b16 %v413
        %v597 = vunpack.c.l.b16 %v414
        %v598 = vunpack.c.l.b16 %v415
        %v599 = vunpack.c.h.b16 %v415
        %v600 = vunpack.c.l.b16 %v416
        %v601 = vunpack.c.l.b16 %v417
        %v602 = vunpack.c.h.b16 %v417
        %v603 = vunpack.c.l.b16 %v418
        %v604 = vunpack.c.l.b16 %v419
        %v605 = vunpack.c.h.b16 %v419
        %v606 = vunpack.c.l.b16 %v420
        %v607 = vunpack.c.l.b16 %v421
        %v608 = vunpack.c.h.b16 %v421
        %v609 = vunpack.c.l.b16 %v422
        %v610 = vunpack.c.l.b16 %v423
        %v611 = vunpack.c.h.b16 %v423
        %v612 = vunpack.c.l.b16 %v424
        %v613 = vunpack.c.l.b16 %v425
        %v614 = vunpack.c.h.b16 %v425
        %v615 = vunpack.c.l.b16 %v426
        %v616 = vunpack.c.l.b16 %v427
        %v617 = vunpack.c.h.b16 %v427
        %v618 = vunpack.c.l.b16 %v428
        %v619 = vunpack.c.l.b16 %v429
        %v620 = vunpack.c.h.b16 %v429
        %v621 = vunpack.c.l.b16 %v430
        %v622 = vunpack.c.l.b16 %v431
        %v623 = vunpack.c.h.b16 %v431
        %v624 = vunpack.c.l.b16 %v432
        %v625 = vunpack.c.l.b16 %v433
        %v626 = vunpack.c.h.b16 %v433
        %v627 = vunpack.c.l.b16 %v434
        %v628 = vunpack.c.l.b16 %v435
        %v629 = vunpack.c.h.b16 %v435
        %v630 = vunpack.c.l.b16 %v436
        %v631 = vunpack.c.l.b16 %v437
        %v632 = vunpack.c.h.b16 %v437
        %v633 = vunpack.c.l.b16 %v438
        %v634 = vunpack.c.l.b16 %v439
        %v635 = vunpack.c.h.b16 %v439
        %v636 = vunpack.c.l.b16 %v440
        %v637 = vunpack.c.l.b16 %v441
        %v638 = vunpack.c.h.b16 %v441
        %v639 = vunpack.c.l.b16 %v442
        %v640 = vunpack.c.l.b16 %v443
        %v641 = vunpack.c.h.b16 %v443
        %v642 = vunpack.c.l.b16 %v444
        %v643 = vpack.c.b16 %v598, %v595
        %v644 = vpack.c.b16 %v599, %v596
        %v645 = vpack.c.b16 %v600, %v597
        %v646 = vpack.c.b16 %v604, %v601
        %v647 = vpack.c.b16 %v605, %v602
        %v648 = vpack.c.b16 %v606, %v603
        %v649 = vpack.c.b16 %v610, %v607
        %v650 = vpack.c.b16 %v611, %v608
        %v651 = vpack.c.b16 %v612, %v609
        %v652 = vpack.c.b16 %v616, %v613
        %v653 = vpack.c.b16 %v617, %v614
        %v654 = vpack.c.b16 %v618, %v615
        %v655 = vpack.c.b16 %v622, %v619
        %v656 = vpack.c.b16 %v623, %v620
        %v657 = vpack.c.b16 %v624, %v621
        %v658 = vpack.c.b16 %v628, %v625
        %v659 = vpack.c.b16 %v629, %v626
        %v660 = vpack.c.b16 %v630, %v627
        %v661 = vpack.c.b16 %v634, %v631
        %v662 = vpack.c.b16 %v635, %v632
        %v663 = vpack.c.b16 %v636, %v633
        %v664 = vpack.c.b16 %v640, %v637
        %v665 = vpack.c.b16 %v641, %v638
        %v666 = vpack.c.b16 %v642, %v639
        %v787 = vunpack.c.l.b16 %v445
        %v788 = vunpack.c.h.b16 %v445
        %v789 = vunpack.c.l.b16 %v446
        %v790 = vunpack.c.h.b16 %v446
        %v791 = vunpack.c.l.b16 %v447
        %v792 = vunpack.c.h.b16 %v447
        %v793 = vunpack.c.l.b16 %v448
        %v794 = vunpack.c.h.b16 %v448
        %v795 = vunpack.c.l.b16 %v449
        %v796 = vunpack.c.h.b16 %v449
        %v797 = vunpack.c.l.b16 %v450
        %v798 = vunpack.c.h.b16 %v450
        %v799 = vunpack.c.l.b16 %v451
        %v800 = vunpack.c.h.b16 %v451
        %v801 = vunpack.c.l.b16 %v452
        %v802 = vunpack.c.h.b16 %v452
        %v803 = vunpack.c.l.b16 %v453
        %v804 = vunpack.c.h.b16 %v453
        %v805 = vunpack.c.l.b16 %v454
        %v806 = vunpack.c.h.b16 %v454
        %v807 = vunpack.c.l.b16 %v455
        %v808 = vunpack.c.h.b16 %v455
        %v809 = vunpack.c.l.b16 %v456
        %v810 = vunpack.c.h.b16 %v456
        %v811 = vunpack.c.l.b16 %v457
        %v812 = vunpack.c.h.b16 %v457
        %v813 = vunpack.c.l.b16 %v458
        %v814 = vunpack.c.h.b16 %v458
        %v815 = vunpack.c.l.b16 %v459
        %v816 = vunpack.c.h.b16 %v459
        %v817 = vunpack.c.l.b16 %v460
        %v818 = vunpack.c.h.b16 %v460
        %v819 = vunpack.c.l.b16 %v461
        %v820 = vunpack.c.h.b16 %v461
        %v821 = vunpack.c.l.b16 %v462
        %v822 = vunpack.c.h.b16 %v462
        %v823 = vunpack.c.l.b16 %v463
        %v824 = vunpack.c.h.b16 %v463
        %v825 = vunpack.c.l.b16 %v464
        %v826 = vunpack.c.h.b16 %v464
        %v827 = vunpack.c.l.b16 %v465
        %v828 = vunpack.c.h.b16 %v465
        %v829 = vunpack.c.l.b16 %v466
        %v830 = vunpack.c.h.b16 %v466
        %v831 = vunpack.c.l.b16 %v467
        %v832 = vunpack.c.h.b16 %v467
        %v833 = vunpack.c.l.b16 %v468
        %v834 = vunpack.c.h.b16 %v468
        %v835 = vunpack.c.l.b16 %v469
        %v836 = vunpack.c.h.b16 %v469
        %v837 = vunpack.c.l.b16 %v470
        %v838 = vunpack.c.h.b16 %v470
        %v839 = vunpack.c.l.b16 %v471
        %v840 = vunpack.c.h.b16 %v471
        %v841 = vunpack.c.l.b16 %v472
        %v842 = vunpack.c.h.b16 %v472
        %v843 = vunpack.c.l.b16 %v473
        %v844 = vunpack.c.h.b16 %v473
        %v845 = vunpack.c.l.b16 %v474
        %v846 = vunpack.c.h.b16 %v474
        %v847 = vunpack.c.l.b16 %v475
        %v848 = vunpack.c.h.b16 %v475
        %v849 = vunpack.c.l.b16 %v476
        %v850 = vunpack.c.h.b16 %v476
        %v851 = vunpack.c.l.b16 %v477
        %v852 = vunpack.c.h.b16 %v477
        %v853 = vunpack.c.l.b16 %v478
        %v854 = vunpack.c.h.b16 %v478
        %v855 = vunpack.c.l.b16 %v479
        %v856 = vunpack.c.h.b16 %v479
        %v857 = vunpack.c.l.b16 %v480
        %v858 = vunpack.c.h.b16 %v480
        %v859 = vunpack.c.l.b16 %v481
        %v860 = vunpack.c.h.b16 %v481
        %v861 = vunpack.c.l.b16 %v482
        %v862 = vunpack.c.h.b16 %v482
        %v863 = vunpack.c.l.b16 %v483
        %v864 = vunpack.c.h.b16 %v483
        %v865 = vunpack.c.l.b16 %v484
        %v866 = vunpack.c.h.b16 %v484
        %v867 = vunpack.c.l.b16 %v485
        %v868 = vunpack.c.h.b16 %v485
        %v869 = vunpack.c.l.b16 %v486
        %v870 = vunpack.c.h.b16 %v486
        %v871 = vunpack.c.l.b16 %v487
        %v872 = vunpack.c.h.b16 %v487
        %v873 = vunpack.c.l.b16 %v488
        %v874 = vunpack.c.h.b16 %v488
        %v875 = vunpack.c.l.b16 %v489
        %v876 = vunpack.c.h.b16 %v489
        %v877 = vunpack.c.l.b16 %v490
        %v878 = vunpack.c.h.b16 %v490
        %v879 = vunpack.c.l.b16 %v491
        %v880 = vunpack.c.h.b16 %v491
        %v881 = vunpack.c.l.b16 %v492
        %v882 = vunpack.c.h.b16 %v492
        %v883 = vunpack.c.l.b16 %v493
        %v884 = vunpack.c.h.b16 %v493
        %v885 = vunpack.c.l.b16 %v494
        %v886 = vunpack.c.h.b16 %v494
        %v887 = vunpack.c.l.b16 %v495
        %v888 = vunpack.c.h.b16 %v495
        %v889 = vunpack.c.l.b16 %v496
        %v890 = vunpack.c.h.b16 %v496
        %v891 = vunpack.c.l.b16 %v497
        %v892 = vunpack.c.h.b16 %v497
        %v893 = vunpack.c.l.b16 %v498
        %v894 = vunpack.c.h.b16 %v498
        %v895 = vunpack.c.l.b16 %v499
        %v896 = vunpack.c.h.b16 %v499
        %v897 = vunpack.c.l.b16 %v500
        %v898 = vunpack.c.h.b16 %v500
        %v899 = vunpack.c.l.b16 %v501
        %v900 = vunpack.c.h.b16 %v501
        %v901 = vunpack.c.l.b16 %v502
        %v902 = vunpack.c.h.b16 %v502
        %v903 = vunpack.c.l.b16 %v503
        %v904 = vunpack.c.h.b16 %v503
        %v905 = vunpack.c.l.b16 %v504
        %v906 = vunpack.c.h.b16 %v504
        %v907 = vunpack.c.l.b16 %v505
        %v908 = vunpack.c.h.b16 %v505
        %v909 = vunpack.c.l.b16 %v506
        %v910 = vunpack.c.h.b16 %v506
        %v911 = vunpack.c.l.b16 %v507
        %v912 = vunpack.c.h.b16 %v507
        %v913 = vunpack.c.l.b16 %v508
        %v914 = vunpack.c.h.b16 %v508
        %v915 = vunpack.c.l.b16 %v509
        %v916 = vunpack.c.h.b16 %v509
        %v917 = vunpack.c.l.b16 %v510
        %v918 = vunpack.c.h.b16 %v510
        %v919 = vunpack.c.l.b16 %v511
        %v920 = vunpack.c.h.b16 %v511
        %v921 = vunpack.c.l.b16 %v512
        %v922 = vunpack.c.h.b16 %v512
        %v923 = vunpack.c.l.b16 %v513
        %v924 = vunpack.c.h.b16 %v513
        %v925 = vunpack.c.l.b16 %v514
        %v926 = vunpack.c.h.b16 %v514
        %v927 = vunpack.c.l.b16 %v515
        %v928 = vunpack.c.h.b16 %v515
        %v929 = vunpack.c.l.b16 %v516
        %v930 = vunpack.c.h.b16 %v516
        %v931 = vunpack.c.l.b16 %v517
        %v932 = vunpack.c.h.b16 %v517
        %v933 = vunpack.c.l.b16 %v518
        %v934 = vunpack.c.h.b16 %v518
        %v935 = vunpack.c.l.b16 %v519
        %v936 = vunpack.c.h.b16 %v519
        %v937 = vunpack.c.l.b16 %v520
        %v938 = vunpack.c.h.b16 %v520
        %v939 = vunpack.c.l.b16 %v521
        %v940 = vunpack.c.h.b16 %v521
        %v941 = vunpack.c.l.b16 %v522
        %v942 = vunpack.c.h.b16 %v522
        %v943 = vunpack.c.l.b16 %v523
        %v944 = vunpack.c.h.b16 %v523
        %v945 = vunpack.c.l.b16 %v524
        %v946 = vunpack.c.h.b16 %v524
        %v947 = vunpack.c.l.b16 %v525
        %v948 = vunpack.c.h.b16 %v525
        %v949 = vunpack.c.l.b16 %v526
        %v950 = vunpack.c.h.b16 %v526
        %v951 = vunpack.c.l.b16 %v527
        %v952 = vunpack.c.h.b16 %v527
        %v953 = vunpack.c.l.b16 %v528
        %v954 = vunpack.c.h.b16 %v528
        %v955 = vunpack.c.l.b16 %v529
        %v956 = vunpack.c.h.b16 %v529
        %v957 = vunpack.c.l.b16 %v530
        %v958 = vunpack.c.h.b16 %v530
        %v959 = vunpack.c.l.b16 %v531
        %v960 = vunpack.c.h.b16 %v531
        %v961 = vunpack.c.l.b16 %v532
        %v962 = vunpack.c.h.b16 %v532
        %v963 = vunpack.c.l.b16 %v533
        %v964 = vunpack.c.h.b16 %v533
        %v965 = vunpack.c.l.b16 %v534
        %v966 = vunpack.c.h.b16 %v534
        %v967 = vunpack.c.l.b16 %v535
        %v968 = vunpack.c.h.b16 %v535
        %v969 = vunpack.c.l.b16 %v536
        %v970 = vunpack.c.h.b16 %v536
        %v971 = vunpack.c.l.b16 %v537
        %v972 = vunpack.c.h.b16 %v537
        %v973 = vunpack.c.l.b16 %v538
        %v974 = vunpack.c.h.b16 %v538
        %v975 = vunpack.c.l.b16 %v539
        %v976 = vunpack.c.h.b16 %v539
        %v977 = vunpack.c.l.b16 %v540
        %v978 = vunpack.c.h.b16 %v540
        %v979 = vpack.c.b16 %v791, %v787
        %v980 = vpack.c.b16 %v792, %v788
        %v981 = vpack.c.b16 %v793, %v789
        %v982 = vpack.c.b16 %v794, %v790
        %v983 = vpack.c.b16 %v799, %v795
        %v984 = vpack.c.b16 %v800, %v796
        %v985 = vpack.c.b16 %v801, %v797
        %v986 = vpack.c.b16 %v802, %v798
        %v987 = vpack.c.b16 %v807, %v803
        %v988 = vpack.c.b16 %v808, %v804
        %v989 = vpack.c.b16 %v809, %v805
        %v990 = vpack.c.b16 %v810, %v806
        %v991 = vpack.c.b16 %v815, %v811
        %v992 = vpack.c.b16 %v816, %v812
        %v993 = vpack.c.b16 %v817, %v813
        %v994 = vpack.c.b16 %v818, %v814
        %v995 = vpack.c.b16 %v823, %v819
        %v996 = vpack.c.b16 %v824, %v820
        %v997 = vpack.c.b16 %v825, %v821
        %v998 = vpack.c.b16 %v826, %v822
        %v999 = vpack.c.b16 %v831, %v827
        %v1000 = vpack.c.b16 %v832, %v828
        %v1001 = vpack.c.b16 %v833, %v829
        %v1002 = vpack.c.b16 %v834, %v830
        %v1003 = vpack.c.b16 %v839, %v835
        %v1004 = vpack.c.b16 %v840, %v836
        %v1005 = vpack.c.b16 %v841, %v837
        %v1006 = vpack.c.b16 %v842, %v838
        %v1007 = vpack.c.b16 %v847, %v843
        %v1008 = vpack.c.b16 %v848, %v844
        %v1009 = vpack.c.b16 %v849, %v845
        %v1010 = vpack.c.b16 %v850, %v846
        %v1011 = vpack.c.b16 %v855, %v851
        %v1012 = vpack.c.b16 %v856, %v852
        %v1013 = vpack.c.b16 %v857, %v853
        %v1014 = vpack.c.b16 %v858, %v854
        %v1015 = vpack.c.b16 %v863, %v859
        %v1016 = vpack.c.b16 %v864, %v860
        %v1017 = vpack.c.b16 %v865, %v861
        %v1018 = vpack.c.b16 %v866, %v862
        %v1019 = vpack.c.b16 %v871, %v867
        %v1020 = vpack.c.b16 %v872, %v868
        %v1021 = vpack.c.b16 %v873, %v869
        %v1022 = vpack.c.b16 %v874, %v870
        %v1023 = vpack.c.b16 %v879, %v875
        %v1024 = vpack.c.b16 %v880, %v876
        %v1025 = vpack.c.b16 %v881, %v877
        %v1026 = vpack.c.b16 %v882, %v878
        %v1027 = vpack.c.b16 %v887, %v883
        %v1028 = vpack.c.b16 %v888, %v884
        %v1029 = vpack.c.b16 %v889, %v885
        %v1030 = vpack.c.b16 %v890, %v886
        %v1031 = vpack.c.b16 %v895, %v891
        %v1032 = vpack.c.b16 %v896, %v892
        %v1033 = vpack.c.b16 %v897, %v893
        %v1034 = vpack.c.b16 %v898, %v894
        %v1035 = vpack.c.b16 %v903, %v899
        %v1036 = vpack.c.b16 %v904, %v900
        %v1037 = vpack.c.b16 %v905, %v901
        %v1038 = vpack.c.b16 %v906, %v902
        %v1039 = vpack.c.b16 %v911, %v907
        %v1040 = vpack.c.b16 %v912, %v908
        %v1041 = vpack.c.b16 %v913, %v909
        %v1042 = vpack.c.b16 %v914, %v910
        %v1043 = vpack.c.b16 %v919, %v915
        %v1044 = vpack.c.b16 %v920, %v916
        %v1045 = vpack.c.b16 %v921, %v917
        %v1046 = vpack.c.b16 %v922, %v918
        %v1047 = vpack.c.b16 %v927, %v923
        %v1048 = vpack.c.b16 %v928, %v924
        %v1049 = vpack.c.b16 %v929, %v925
        %v1050 = vpack.c.b16 %v930, %v926
        %v1051 = vpack.c.b16 %v935, %v931
        %v1052 = vpack.c.b16 %v936, %v932
        %v1053 = vpack.c.b16 %v937, %v933
        %v1054 = vpack.c.b16 %v938, %v934
        %v1055 = vpack.c.b16 %v943, %v939
        %v1056 = vpack.c.b16 %v944, %v940
        %v1057 = vpack.c.b16 %v945, %v941
        %v1058 = vpack.c.b16 %v946, %v942
        %v1059 = vpack.c.b16 %v951, %v947
        %v1060 = vpack.c.b16 %v952, %v948
        %v1061 = vpack.c.b16 %v953, %v949
        %v1062 = vpack.c.b16 %v954, %v950
        %v1063 = vpack.c.b16 %v959, %v955
        %v1064 = vpack.c.b16 %v960, %v956
        %v1065 = vpack.c.b16 %v961, %v957
        %v1066 = vpack.c.b16 %v962, %v958
        %v1067 = vpack.c.b16 %v967, %v963
        %v1068 = vpack.c.b16 %v968, %v964
        %v1069 = vpack.c.b16 %v969, %v965
        %v1070 = vpack.c.b16 %v970, %v966
        %v1071 = vpack.c.b16 %v975, %v971
        %v1072 = vpack.c.b16 %v976, %v972
        %v1073 = vpack.c.b16 %v977, %v973
        %v1074 = vpack.c.b16 %v978, %v974
        %1171 = vmatprep.subr.bf16.mxu0 %v980
        %1172 = vmatpush1.bf16.msra.mxu0 %v979
        %1173 = vmatprep.subr.bf16.mxu0 %v984
        %1174 = vmatpush1.bf16.msra.mxu0 %v983
        %1175 = vmatprep.subr.bf16.mxu0 %v988
        %1176 = vmatpush1.bf16.msra.mxu0 %v987
        %1177 = vmatprep.subr.bf16.mxu0 %v992
        %1178 = vmatpush1.bf16.msra.mxu0 %v991
        %1179 = vmatprep.subr.bf16.mxu0 %v996
        %1180 = vmatpush1.bf16.msra.mxu0 %v995
        %1181 = vmatprep.subr.bf16.mxu0 %v1000
        %1182 = vmatpush1.bf16.msra.mxu0 %v999
        %1183 = vmatprep.subr.bf16.mxu0 %v1004
        %1184 = vmatpush1.bf16.msra.mxu0 %v1003
        %1185 = vmatprep.subr.bf16.mxu0 %v1008
        %1186 = vmatpush1.bf16.msra.mxu0 %v1007
        %1187 = vmatprep.subr.bf16.mxu0 %v1012
        %1188 = vmatpush1.bf16.msra.mxu0 %v1011
        %1189 = vmatprep.subr.bf16.mxu0 %v1016
        %1190 = vmatpush1.bf16.msra.mxu0 %v1015
        %1191 = vmatprep.subr.bf16.mxu0 %v1020
        %1192 = vmatpush1.bf16.msra.mxu0 %v1019
        %1193 = vmatprep.subr.bf16.mxu0 %v1024
        %1194 = vmatpush1.bf16.msra.mxu0 %v1023
        %1195 = vmatprep.subr.bf16.mxu0 %v1028
        %1196 = vmatpush1.bf16.msra.mxu0 %v1027
        %1197 = vmatprep.subr.bf16.mxu0 %v1032
        %1198 = vmatpush1.bf16.msra.mxu0 %v1031
        %1199 = vmatprep.subr.bf16.mxu0 %v1036
        %1200 = vmatpush1.bf16.msra.mxu0 %v1035
        %1201 = vmatprep.subr.bf16.mxu0 %v1040
        %1202 = vmatpush1.bf16.msra.mxu0 %v1039
        %1203 = vmatprep.mubr.bf16.mxu0 %v644
        %1204 = vmatmul.mubr.bf16.gmra.mrb[0].mxu0 %v643
        %v1205 = vpop.f32.mrb[0].mxu0
        %v1206 = vadd.f32 %v546, %v1205
        %v1207 = vpop.f32.mrb[0].mxu0
        %v1208 = vadd.f32 %v550, %v1207
        %v1209 = vpop.f32.mrb[0].mxu0
        %v1210 = vadd.f32 %v546, %v1209
        %v1211 = vpop.f32.mrb[0].mxu0
        %v1212 = vadd.f32 %v550, %v1211
        %1213 = vmatprep.mubr.bf16.mxu0 %v647
        %1214 = vmatmul.mubr.bf16.gmra.mrb[0].mxu0 %v646
        %v1215 = vpop.f32.mrb[0].mxu0
        %v1216 = vadd.f32 %v546, %v1215
        %v1217 = vpop.f32.mrb[0].mxu0
        %v1218 = vadd.f32 %v550, %v1217
        %v1219 = vpop.f32.mrb[0].mxu0
        %v1220 = vadd.f32 %v546, %v1219
        %v1221 = vpop.f32.mrb[0].mxu0
        %v1222 = vadd.f32 %v550, %v1221
        %1223 = vmatprep.mubr.bf16.mxu0 %v650
        %1224 = vmatmul.mubr.bf16.gmra.mrb[0].mxu0 %v649
        %v1225 = vpop.f32.mrb[0].mxu0
        %v1226 = vadd.f32 %v546, %v1225
        %v1227 = vpop.f32.mrb[0].mxu0
        %v1228 = vadd.f32 %v550, %v1227
        %v1229 = vpop.f32.mrb[0].mxu0
        %v1230 = vadd.f32 %v546, %v1229
        %v1231 = vpop.f32.mrb[0].mxu0
        %v1232 = vadd.f32 %v550, %v1231
        %1233 = vmatprep.mubr.bf16.mxu0 %v653
        %1234 = vmatmul.mubr.bf16.gmra.mrb[0].mxu0 %v652
        %v1235 = vpop.f32.mrb[0].mxu0
        %v1236 = vadd.f32 %v546, %v1235
        %v1237 = vpop.f32.mrb[0].mxu0
        %v1238 = vadd.f32 %v550, %v1237
        %v1239 = vpop.f32.mrb[0].mxu0
        %v1240 = vadd.f32 %v546, %v1239
        %v1241 = vpop.f32.mrb[0].mxu0
        %v1242 = vadd.f32 %v550, %v1241
        %1243 = vmatprep.mubr.bf16.mxu0 %v656
        %1244 = vmatmul.mubr.bf16.gmra.mrb[0].mxu0 %v655
        %v1245 = vpop.f32.mrb[0].mxu0
        %v1246 = vadd.f32 %v546, %v1245
        %v1247 = vpop.f32.mrb[0].mxu0
        %v1248 = vadd.f32 %v550, %v1247
        %v1249 = vpop.f32.mrb[0].mxu0
        %v1250 = vadd.f32 %v546, %v1249
        %v1251 = vpop.f32.mrb[0].mxu0
        %v1252 = vadd.f32 %v550, %v1251
        %1253 = vmatprep.mubr.bf16.mxu0 %v659
        %1254 = vmatmul.mubr.bf16.gmra.mrb[0].mxu0 %v658
        %v1255 = vpop.f32.mrb[0].mxu0
        %v1256 = vadd.f32 %v546, %v1255
        %v1257 = vpop.f32.mrb[0].mxu0
        %v1258 = vadd.f32 %v550, %v1257
        %v1259 = vpop.f32.mrb[0].mxu0
        %v1260 = vadd.f32 %v546, %v1259
        %v1261 = vpop.f32.mrb[0].mxu0
        %v1262 = vadd.f32 %v550, %v1261
        %1263 = vmatprep.mubr.bf16.mxu0 %v662
        %1264 = vmatmul.mubr.bf16.gmra.mrb[0].mxu0 %v661
        %v1265 = vpop.f32.mrb[0].mxu0
        %v1266 = vadd.f32 %v546, %v1265
        %v1267 = vpop.f32.mrb[0].mxu0
        %v1268 = vadd.f32 %v550, %v1267
        %v1269 = vpop.f32.mrb[0].mxu0
        %v1270 = vadd.f32 %v546, %v1269
        %v1271 = vpop.f32.mrb[0].mxu0
        %v1272 = vadd.f32 %v550, %v1271
        %1273 = vmatprep.mubr.bf16.mxu0 %v665
        %1274 = vmatmul.mubr.bf16.gmra.mrb[0].mxu0 %v664
        %v1275 = vpop.f32.mrb[0].mxu0
        %v1276 = vadd.f32 %v546, %v1275
        %v1277 = vpop.f32.mrb[0].mxu0
        %v1278 = vadd.f32 %v550, %v1277
        %v1279 = vpop.f32.mrb[0].mxu0
        %v1280 = vadd.f32 %v546, %v1279
        %v1281 = vpop.f32.mrb[0].mxu0
        %v1282 = vadd.f32 %v550, %v1281
        %1283 = vdwg.mxu0
        %1284 = vmatprep.subr.bf16.mxu0 %v1044
        %1285 = vmatpush1.bf16.msra.mxu0 %v1043
        %1286 = vmatprep.subr.bf16.mxu0 %v1048
        %1287 = vmatpush1.bf16.msra.mxu0 %v1047
        %1288 = vmatprep.subr.bf16.mxu0 %v1052
        %1289 = vmatpush1.bf16.msra.mxu0 %v1051
        %1290 = vmatprep.subr.bf16.mxu0 %v1056
        %1291 = vmatpush1.bf16.msra.mxu0 %v1055
        %1292 = vmatprep.subr.bf16.mxu0 %v1060
        %1293 = vmatpush1.bf16.msra.mxu0 %v1059
        %1294 = vmatprep.subr.bf16.mxu0 %v1064
        %1295 = vmatpush1.bf16.msra.mxu0 %v1063
        %1296 = vmatprep.subr.bf16.mxu0 %v1068
        %1297 = vmatpush1.bf16.msra.mxu0 %v1067
        %1298 = vmatprep.subr.bf16.mxu0 %v1072
        %1299 = vmatpush1.bf16.msra.mxu0 %v1071
        %1300 = vmatprep.subr.bf16.mxu0 0
        %1301 = vmatpush1.bf16.msra.mxu0 0
        %1302 = vmatprep.subr.bf16.mxu0 0
        %1303 = vmatpush1.bf16.msra.mxu0 0
        %1304 = vmatprep.subr.bf16.mxu0 0
        %1305 = vmatpush1.bf16.msra.mxu0 0
        %1306 = vmatprep.subr.bf16.mxu0 0
        %1307 = vmatpush1.bf16.msra.mxu0 0
        %1308 = vmatprep.subr.bf16.mxu0 0
        %1309 = vmatpush1.bf16.msra.mxu0 0
        %1310 = vmatprep.subr.bf16.mxu0 0
        %1311 = vmatpush1.bf16.msra.mxu0 0
        %1312 = vmatprep.subr.bf16.mxu0 0
        %1313 = vmatpush1.bf16.msra.mxu0 0
        %1314 = vmatprep.subr.bf16.mxu0 0
        %1315 = vmatpush1.bf16.msra.mxu0 0
        %1316 = vmatprep.mubr.bf16.mxu0 0
        %1317 = vmatmul.mubr.bf16.gmra.mrb[0].mxu0 %v645
        %v1318 = vpop.f32.mrb[0].mxu0
        %v1319 = vadd.f32 %v1206, %v1318
        %v1320 = vpop.f32.mrb[0].mxu0
        %v1321 = vadd.f32 %v1208, %v1320
        %v1322 = vpop.f32.mrb[0].mxu0
        %v1323 = vadd.f32 %v1210, %v1322
        %v1324 = vpop.f32.mrb[0].mxu0
        %v1325 = vadd.f32 %v1212, %v1324
        %1326 = vmatprep.mubr.bf16.mxu0 0
        %1327 = vmatmul.mubr.bf16.gmra.mrb[0].mxu0 %v648
        %v1328 = vpop.f32.mrb[0].mxu0
        %v1329 = vadd.f32 %v1216, %v1328
        %v1330 = vpop.f32.mrb[0].mxu0
        %v1331 = vadd.f32 %v1218, %v1330
        %v1332 = vpop.f32.mrb[0].mxu0
        %v1333 = vadd.f32 %v1220, %v1332
        %v1334 = vpop.f32.mrb[0].mxu0
        %v1335 = vadd.f32 %v1222, %v1334
        %1336 = vmatprep.mubr.bf16.mxu0 0
        %1337 = vmatmul.mubr.bf16.gmra.mrb[0].mxu0 %v651
        %v1338 = vpop.f32.mrb[0].mxu0
        %v1339 = vadd.f32 %v1226, %v1338
        %v1340 = vpop.f32.mrb[0].mxu0
        %v1341 = vadd.f32 %v1228, %v1340
        %v1342 = vpop.f32.mrb[0].mxu0
        %v1343 = vadd.f32 %v1230, %v1342
        %v1344 = vpop.f32.mrb[0].mxu0
        %v1345 = vadd.f32 %v1232, %v1344
        %1346 = vmatprep.mubr.bf16.mxu0 0
        %1347 = vmatmul.mubr.bf16.gmra.mrb[0].mxu0 %v654
        %v1348 = vpop.f32.mrb[0].mxu0
        %v1349 = vadd.f32 %v1236, %v1348
        %v1350 = vpop.f32.mrb[0].mxu0
        %v1351 = vadd.f32 %v1238, %v1350
        %v1352 = vpop.f32.mrb[0].mxu0
        %v1353 = vadd.f32 %v1240, %v1352
        %v1354 = vpop.f32.mrb[0].mxu0
        %v1355 = vadd.f32 %v1242, %v1354
        %1356 = vmatprep.mubr.bf16.mxu0 0
        %1357 = vmatmul.mubr.bf16.gmra.mrb[0].mxu0 %v657
        %v1358 = vpop.f32.mrb[0].mxu0
        %v1359 = vadd.f32 %v1246, %v1358
        %v1360 = vpop.f32.mrb[0].mxu0
        %v1361 = vadd.f32 %v1248, %v1360
        %v1362 = vpop.f32.mrb[0].mxu0
        %v1363 = vadd.f32 %v1250, %v1362
        %v1364 = vpop.f32.mrb[0].mxu0
        %v1365 = vadd.f32 %v1252, %v1364
        %1366 = vmatprep.mubr.bf16.mxu0 0
        %1367 = vmatmul.mubr.bf16.gmra.mrb[0].mxu0 %v660
        %v1368 = vpop.f32.mrb[0].mxu0
        %v1369 = vadd.f32 %v1256, %v1368
        %v1370 = vpop.f32.mrb[0].mxu0
        %v1371 = vadd.f32 %v1258, %v1370
        %v1372 = vpop.f32.mrb[0].mxu0
        %v1373 = vadd.f32 %v1260, %v1372
        %v1374 = vpop.f32.mrb[0].mxu0
        %v1375 = vadd.f32 %v1262, %v1374
        %1376 = vmatprep.mubr.bf16.mxu0 0
        %1377 = vmatmul.mubr.bf16.gmra.mrb[0].mxu0 %v663
        %v1378 = vpop.f32.mrb[0].mxu0
        %v1379 = vadd.f32 %v1266, %v1378
        %v1380 = vpop.f32.mrb[0].mxu0
        %v1381 = vadd.f32 %v1268, %v1380
        %v1382 = vpop.f32.mrb[0].mxu0
        %v1383 = vadd.f32 %v1270, %v1382
        %v1384 = vpop.f32.mrb[0].mxu0
        %v1385 = vadd.f32 %v1272, %v1384
        %1386 = vmatprep.mubr.bf16.mxu0 0
        %1387 = vmatmul.mubr.bf16.gmra.mrb[0].mxu0 %v666
        %v1388 = vpop.f32.mrb[0].mxu0
        %v1389 = vadd.f32 %v1276, %v1388
        %v1390 = vpop.f32.mrb[0].mxu0
        %v1391 = vadd.f32 %v1278, %v1390
        %v1392 = vpop.f32.mrb[0].mxu0
        %v1393 = vadd.f32 %v1280, %v1392
        %v1394 = vpop.f32.mrb[0].mxu0
        %v1395 = vadd.f32 %v1282, %v1394
        %1396 = vdwg.mxu0
        %1397 = vmatprep.subr.bf16.mxu0 %v982
        %1398 = vmatpush1.bf16.msra.mxu0 %v981
        %1399 = vmatprep.subr.bf16.mxu0 %v986
        %1400 = vmatpush1.bf16.msra.mxu0 %v985
        %1401 = vmatprep.subr.bf16.mxu0 %v990
        %1402 = vmatpush1.bf16.msra.mxu0 %v989
        %1403 = vmatprep.subr.bf16.mxu0 %v994
        %1404 = vmatpush1.bf16.msra.mxu0 %v993
        %1405 = vmatprep.subr.bf16.mxu0 %v998
        %1406 = vmatpush1.bf16.msra.mxu0 %v997
        %1407 = vmatprep.subr.bf16.mxu0 %v1002
        %1408 = vmatpush1.bf16.msra.mxu0 %v1001
        %1409 = vmatprep.subr.bf16.mxu0 %v1006
        %1410 = vmatpush1.bf16.msra.mxu0 %v1005
        %1411 = vmatprep.subr.bf16.mxu0 %v1010
        %1412 = vmatpush1.bf16.msra.mxu0 %v1009
        %1413 = vmatprep.subr.bf16.mxu0 %v1014
        %1414 = vmatpush1.bf16.msra.mxu0 %v1013
        %1415 = vmatprep.subr.bf16.mxu0 %v1018
        %1416 = vmatpush1.bf16.msra.mxu0 %v1017
        %1417 = vmatprep.subr.bf16.mxu0 %v1022
        %1418 = vmatpush1.bf16.msra.mxu0 %v1021
        %1419 = vmatprep.subr.bf16.mxu0 %v1026
        %1420 = vmatpush1.bf16.msra.mxu0 %v1025
        %1421 = vmatprep.subr.bf16.mxu0 %v1030
        %1422 = vmatpush1.bf16.msra.mxu0 %v1029
        %1423 = vmatprep.subr.bf16.mxu0 %v1034
        %1424 = vmatpush1.bf16.msra.mxu0 %v1033
        %1425 = vmatprep.subr.bf16.mxu0 %v1038
        %1426 = vmatpush1.bf16.msra.mxu0 %v1037
        %1427 = vmatprep.subr.bf16.mxu0 %v1042
        %1428 = vmatpush1.bf16.msra.mxu0 %v1041
        %1429 = vmatprep.mubr.bf16.mxu0 %v644
        %1430 = vmatmul.mubr.bf16.gmra.mrb[0].mxu0 %v643
        %v1431 = vpop.f32.mrb[0].mxu0
        %v1432 = vadd.f32 %v554, %v1431
        %v1433 = vpop.f32.mrb[0].mxu0
        %v1434 = vadd.f32 %v558, %v1433
        %v1435 = vpop.f32.mrb[0].mxu0
        %v1436 = vadd.f32 %v554, %v1435
        %v1437 = vpop.f32.mrb[0].mxu0
        %v1438 = vadd.f32 %v558, %v1437
        %1439 = vmatprep.mubr.bf16.mxu0 %v647
        %1440 = vmatmul.mubr.bf16.gmra.mrb[0].mxu0 %v646
        %v1441 = vpop.f32.mrb[0].mxu0
        %v1442 = vadd.f32 %v554, %v1441
        %v1443 = vpop.f32.mrb[0].mxu0
        %v1444 = vadd.f32 %v558, %v1443
        %v1445 = vpop.f32.mrb[0].mxu0
        %v1446 = vadd.f32 %v554, %v1445
        %v1447 = vpop.f32.mrb[0].mxu0
        %v1448 = vadd.f32 %v558, %v1447
        %1449 = vmatprep.mubr.bf16.mxu0 %v650
        %1450 = vmatmul.mubr.bf16.gmra.mrb[0].mxu0 %v649
        %v1451 = vpop.f32.mrb[0].mxu0
        %v1452 = vadd.f32 %v554, %v1451
        %v1453 = vpop.f32.mrb[0].mxu0
        %v1454 = vadd.f32 %v558, %v1453
        %v1455 = vpop.f32.mrb[0].mxu0
        %v1456 = vadd.f32 %v554, %v1455
        %v1457 = vpop.f32.mrb[0].mxu0
        %v1458 = vadd.f32 %v558, %v1457
        %1459 = vmatprep.mubr.bf16.mxu0 %v653
        %1460 = vmatmul.mubr.bf16.gmra.mrb[0].mxu0 %v652
        %v1461 = vpop.f32.mrb[0].mxu0
        %v1462 = vadd.f32 %v554, %v1461
        %v1463 = vpop.f32.mrb[0].mxu0
        %v1464 = vadd.f32 %v558, %v1463
        %v1465 = vpop.f32.mrb[0].mxu0
        %v1466 = vadd.f32 %v554, %v1465
        %v1467 = vpop.f32.mrb[0].mxu0
        %v1468 = vadd.f32 %v558, %v1467
        %1469 = vmatprep.mubr.bf16.mxu0 %v656
        %1470 = vmatmul.mubr.bf16.gmra.mrb[0].mxu0 %v655
        %v1471 = vpop.f32.mrb[0].mxu0
        %v1472 = vadd.f32 %v554, %v1471
        %v1473 = vpop.f32.mrb[0].mxu0
        %v1474 = vadd.f32 %v558, %v1473
        %v1475 = vpop.f32.mrb[0].mxu0
        %v1476 = vadd.f32 %v554, %v1475
        %v1477 = vpop.f32.mrb[0].mxu0
        %v1478 = vadd.f32 %v558, %v1477
        %1479 = vmatprep.mubr.bf16.mxu0 %v659
        %1480 = vmatmul.mubr.bf16.gmra.mrb[0].mxu0 %v658
        %v1481 = vpop.f32.mrb[0].mxu0
        %v1482 = vadd.f32 %v554, %v1481
        %v1483 = vpop.f32.mrb[0].mxu0
        %v1484 = vadd.f32 %v558, %v1483
        %v1485 = vpop.f32.mrb[0].mxu0
        %v1486 = vadd.f32 %v554, %v1485
        %v1487 = vpop.f32.mrb[0].mxu0
        %v1488 = vadd.f32 %v558, %v1487
        %1489 = vmatprep.mubr.bf16.mxu0 %v662
        %1490 = vmatmul.mubr.bf16.gmra.mrb[0].mxu0 %v661
        %v1491 = vpop.f32.mrb[0].mxu0
        %v1492 = vadd.f32 %v554, %v1491
        %v1493 = vpop.f32.mrb[0].mxu0
        %v1494 = vadd.f32 %v558, %v1493
        %v1495 = vpop.f32.mrb[0].mxu0
        %v1496 = vadd.f32 %v554, %v1495
        %v1497 = vpop.f32.mrb[0].mxu0
        %v1498 = vadd.f32 %v558, %v1497
        %1499 = vmatprep.mubr.bf16.mxu0 %v665
        %1500 = vmatmul.mubr.bf16.gmra.mrb[0].mxu0 %v664
        %v1501 = vpop.f32.mrb[0].mxu0
        %v1502 = vadd.f32 %v554, %v1501
        %v1503 = vpop.f32.mrb[0].mxu0
        %v1504 = vadd.f32 %v558, %v1503
        %v1505 = vpop.f32.mrb[0].mxu0
        %v1506 = vadd.f32 %v554, %v1505
        %v1507 = vpop.f32.mrb[0].mxu0
        %v1508 = vadd.f32 %v558, %v1507
        %1509 = vdwg.mxu0
        %1510 = vmatprep.subr.bf16.mxu0 %v1046
        %1511 = vmatpush1.bf16.msra.mxu0 %v1045
        %1512 = vmatprep.subr.bf16.mxu0 %v1050
        %1513 = vmatpush1.bf16.msra.mxu0 %v1049
        %1514 = vmatprep.subr.bf16.mxu0 %v1054
        %1515 = vmatpush1.bf16.msra.mxu0 %v1053
        %1516 = vmatprep.subr.bf16.mxu0 %v1058
        %1517 = vmatpush1.bf16.msra.mxu0 %v1057
        %1518 = vmatprep.subr.bf16.mxu0 %v1062
        %1519 = vmatpush1.bf16.msra.mxu0 %v1061
        %1520 = vmatprep.subr.bf16.mxu0 %v1066
        %1521 = vmatpush1.bf16.msra.mxu0 %v1065
        %1522 = vmatprep.subr.bf16.mxu0 %v1070
        %1523 = vmatpush1.bf16.msra.mxu0 %v1069
        %1524 = vmatprep.subr.bf16.mxu0 %v1074
        %1525 = vmatpush1.bf16.msra.mxu0 %v1073
        %1526 = vmatprep.subr.bf16.mxu0 0
        %1527 = vmatpush1.bf16.msra.mxu0 0
        %1528 = vmatprep.subr.bf16.mxu0 0
        %1529 = vmatpush1.bf16.msra.mxu0 0
        %1530 = vmatprep.subr.bf16.mxu0 0
        %1531 = vmatpush1.bf16.msra.mxu0 0
        %1532 = vmatprep.subr.bf16.mxu0 0
        %1533 = vmatpush1.bf16.msra.mxu0 0
        %1534 = vmatprep.subr.bf16.mxu0 0
        %1535 = vmatpush1.bf16.msra.mxu0 0
        %1536 = vmatprep.subr.bf16.mxu0 0
        %1537 = vmatpush1.bf16.msra.mxu0 0
        %1538 = vmatprep.subr.bf16.mxu0 0
        %1539 = vmatpush1.bf16.msra.mxu0 0
        %1540 = vmatprep.subr.bf16.mxu0 0
        %1541 = vmatpush1.bf16.msra.mxu0 0
        %1542 = vmatprep.mubr.bf16.mxu0 0
        %1543 = vmatmul.mubr.bf16.gmra.mrb[0].mxu0 %v645
        %v1544 = vpop.f32.mrb[0].mxu0
        %v1545 = vadd.f32 %v1432, %v1544
        %v1546 = vpop.f32.mrb[0].mxu0
        %v1547 = vadd.f32 %v1434, %v1546
        %v1548 = vpop.f32.mrb[0].mxu0
        %v1549 = vadd.f32 %v1436, %v1548
        %v1550 = vpop.f32.mrb[0].mxu0
        %v1551 = vadd.f32 %v1438, %v1550
        %1552 = vmatprep.mubr.bf16.mxu0 0
        %1553 = vmatmul.mubr.bf16.gmra.mrb[0].mxu0 %v648
        %v1554 = vpop.f32.mrb[0].mxu0
        %v1555 = vadd.f32 %v1442, %v1554
        %v1556 = vpop.f32.mrb[0].mxu0
        %v1557 = vadd.f32 %v1444, %v1556
        %v1558 = vpop.f32.mrb[0].mxu0
        %v1559 = vadd.f32 %v1446, %v1558
        %v1560 = vpop.f32.mrb[0].mxu0
        %v1561 = vadd.f32 %v1448, %v1560
        %1562 = vmatprep.mubr.bf16.mxu0 0
        %1563 = vmatmul.mubr.bf16.gmra.mrb[0].mxu0 %v651
        %v1564 = vpop.f32.mrb[0].mxu0
        %v1565 = vadd.f32 %v1452, %v1564
        %v1566 = vpop.f32.mrb[0].mxu0
        %v1567 = vadd.f32 %v1454, %v1566
        %v1568 = vpop.f32.mrb[0].mxu0
        %v1569 = vadd.f32 %v1456, %v1568
        %v1570 = vpop.f32.mrb[0].mxu0
        %v1571 = vadd.f32 %v1458, %v1570
        %1572 = vmatprep.mubr.bf16.mxu0 0
        %1573 = vmatmul.mubr.bf16.gmra.mrb[0].mxu0 %v654
        %v1574 = vpop.f32.mrb[0].mxu0
        %v1575 = vadd.f32 %v1462, %v1574
        %v1576 = vpop.f32.mrb[0].mxu0
        %v1577 = vadd.f32 %v1464, %v1576
        %v1578 = vpop.f32.mrb[0].mxu0
        %v1579 = vadd.f32 %v1466, %v1578
        %v1580 = vpop.f32.mrb[0].mxu0
        %v1581 = vadd.f32 %v1468, %v1580
        %1582 = vmatprep.mubr.bf16.mxu0 0
        %1583 = vmatmul.mubr.bf16.gmra.mrb[0].mxu0 %v657
        %v1584 = vpop.f32.mrb[0].mxu0
        %v1585 = vadd.f32 %v1472, %v1584
        %v1586 = vpop.f32.mrb[0].mxu0
        %v1587 = vadd.f32 %v1474, %v1586
        %v1588 = vpop.f32.mrb[0].mxu0
        %v1589 = vadd.f32 %v1476, %v1588
        %v1590 = vpop.f32.mrb[0].mxu0
        %v1591 = vadd.f32 %v1478, %v1590
        %1592 = vmatprep.mubr.bf16.mxu0 0
        %1593 = vmatmul.mubr.bf16.gmra.mrb[0].mxu0 %v660
        %v1594 = vpop.f32.mrb[0].mxu0
        %v1595 = vadd.f32 %v1482, %v1594
        %v1596 = vpop.f32.mrb[0].mxu0
        %v1597 = vadd.f32 %v1484, %v1596
        %v1598 = vpop.f32.mrb[0].mxu0
        %v1599 = vadd.f32 %v1486, %v1598
        %v1600 = vpop.f32.mrb[0].mxu0
        %v1601 = vadd.f32 %v1488, %v1600
        %1602 = vmatprep.mubr.bf16.mxu0 0
        %1603 = vmatmul.mubr.bf16.gmra.mrb[0].mxu0 %v663
        %v1604 = vpop.f32.mrb[0].mxu0
        %v1605 = vadd.f32 %v1492, %v1604
        %v1606 = vpop.f32.mrb[0].mxu0
        %v1607 = vadd.f32 %v1494, %v1606
        %v1608 = vpop.f32.mrb[0].mxu0
        %v1609 = vadd.f32 %v1496, %v1608
        %v1610 = vpop.f32.mrb[0].mxu0
        %v1611 = vadd.f32 %v1498, %v1610
        %1612 = vmatprep.mubr.bf16.mxu0 0
        %1613 = vmatmul.mubr.bf16.gmra.mrb[0].mxu0 %v666
        %v1614 = vpop.f32.mrb[0].mxu0
        %v1615 = vadd.f32 %v1502, %v1614
        %v1616 = vpop.f32.mrb[0].mxu0
        %v1617 = vadd.f32 %v1504, %v1616
        %v1618 = vpop.f32.mrb[0].mxu0
        %v1619 = vadd.f32 %v1506, %v1618
        %v1620 = vpop.f32.mrb[0].mxu0
        %v1621 = vadd.f32 %v1508, %v1620
        %1622 = vdwg.mxu0
        %v1623 = vmax.f32 %v1319, 0.0
        %v1624 = vmax.f32 %v1321, 0.0
        %v1625 = vmax.f32 %v1545, 0.0
        %v1626 = vmax.f32 %v1547, 0.0
        %v1627 = vmax.f32 %v1323, 0.0
        %v1628 = vmax.f32 %v1325, 0.0
        %v1629 = vmax.f32 %v1549, 0.0
        %v1630 = vmax.f32 %v1551, 0.0
        %v1631 = vmax.f32 %v1329, 0.0
        %v1632 = vmax.f32 %v1331, 0.0
        %v1633 = vmax.f32 %v1555, 0.0
        %v1634 = vmax.f32 %v1557, 0.0
        %v1635 = vmax.f32 %v1333, 0.0
        %v1636 = vmax.f32 %v1335, 0.0
        %v1637 = vmax.f32 %v1559, 0.0
        %v1638 = vmax.f32 %v1561, 0.0
        %v1639 = vmax.f32 %v1339, 0.0
        %v1640 = vmax.f32 %v1341, 0.0
        %v1641 = vmax.f32 %v1565, 0.0
        %v1642 = vmax.f32 %v1567, 0.0
        %v1643 = vmax.f32 %v1343, 0.0
        %v1644 = vmax.f32 %v1345, 0.0
        %v1645 = vmax.f32 %v1569, 0.0
        %v1646 = vmax.f32 %v1571, 0.0
        %v1647 = vmax.f32 %v1349, 0.0
        %v1648 = vmax.f32 %v1351, 0.0
        %v1649 = vmax.f32 %v1575, 0.0
        %v1650 = vmax.f32 %v1577, 0.0
        %v1651 = vmax.f32 %v1353, 0.0
        %v1652 = vmax.f32 %v1355, 0.0
        %v1653 = vmax.f32 %v1579, 0.0
        %v1654 = vmax.f32 %v1581, 0.0
        %v1655 = vmax.f32 %v1359, 0.0
        %v1656 = vmax.f32 %v1361, 0.0
        %v1657 = vmax.f32 %v1585, 0.0
        %v1658 = vmax.f32 %v1587, 0.0
        %v1659 = vmax.f32 %v1363, 0.0
        %v1660 = vmax.f32 %v1365, 0.0
        %v1661 = vmax.f32 %v1589, 0.0
        %v1662 = vmax.f32 %v1591, 0.0
        %v1663 = vmax.f32 %v1369, 0.0
        %v1664 = vmax.f32 %v1371, 0.0
        %v1665 = vmax.f32 %v1595, 0.0
        %v1666 = vmax.f32 %v1597, 0.0
        %v1667 = vmax.f32 %v1373, 0.0
        %v1668 = vmax.f32 %v1375, 0.0
        %v1669 = vmax.f32 %v1599, 0.0
        %v1670 = vmax.f32 %v1601, 0.0
        %v1671 = vmax.f32 %v1379, 0.0
        %v1672 = vmax.f32 %v1381, 0.0
        %v1673 = vmax.f32 %v1605, 0.0
        %v1674 = vmax.f32 %v1607, 0.0
        %v1675 = vmax.f32 %v1383, 0.0
        %v1676 = vmax.f32 %v1385, 0.0
        %v1677 = vmax.f32 %v1609, 0.0
        %v1678 = vmax.f32 %v1611, 0.0
        %v1679 = vmax.f32 %v1389, 0.0
        %v1680 = vmax.f32 %v1391, 0.0
        %v1681 = vmax.f32 %v1615, 0.0
        %v1682 = vmax.f32 %v1617, 0.0
        %v1683 = vmax.f32 %v1393, 0.0
        %v1684 = vmax.f32 %v1395, 0.0
        %v1685 = vmax.f32 %v1619, 0.0
        %v1686 = vmax.f32 %v1621, 0.0
        %v1687 = vpack.c.bf16 %v1627, %v1623
        %v1688 = vpack.c.bf16 %v1628, %v1624
        %v1689 = vpack.c.bf16 %v1629, %v1625
        %v1690 = vpack.c.bf16 %v1630, %v1626
        %v1691 = vpack.c.bf16 %v1635, %v1631
        %v1692 = vpack.c.bf16 %v1636, %v1632
        %v1693 = vpack.c.bf16 %v1637, %v1633
        %v1694 = vpack.c.bf16 %v1638, %v1634
        %v1695 = vpack.c.bf16 %v1643, %v1639
        %v1696 = vpack.c.bf16 %v1644, %v1640
        %v1697 = vpack.c.bf16 %v1645, %v1641
        %v1698 = vpack.c.bf16 %v1646, %v1642
        %v1699 = vpack.c.bf16 %v1651, %v1647
        %v1700 = vpack.c.bf16 %v1652, %v1648
        %v1701 = vpack.c.bf16 %v1653, %v1649
        %v1702 = vpack.c.bf16 %v1654, %v1650
        %v1703 = vpack.c.bf16 %v1659, %v1655
        %v1704 = vpack.c.bf16 %v1660, %v1656
        %v1705 = vpack.c.bf16 %v1661, %v1657
        %v1706 = vpack.c.bf16 %v1662, %v1658
        %v1707 = vpack.c.bf16 %v1667, %v1663
        %v1708 = vpack.c.bf16 %v1668, %v1664
        %v1709 = vpack.c.bf16 %v1669, %v1665
        %v1710 = vpack.c.bf16 %v1670, %v1666
        %v1711 = vpack.c.bf16 %v1675, %v1671
        %v1712 = vpack.c.bf16 %v1676, %v1672
        %v1713 = vpack.c.bf16 %v1677, %v1673
        %v1714 = vpack.c.bf16 %v1678, %v1674
        %v1715 = vpack.c.bf16 %v1683, %v1679
        %v1716 = vpack.c.bf16 %v1684, %v1680
        %v1717 = vpack.c.bf16 %v1685, %v1681
        %v1718 = vpack.c.bf16 %v1686, %v1682
        %v1719 = vld [vmem:[#allocation2] sm:$0xf]
        %v1720 = vld [vmem:[#allocation2 + $0x4] sm:$0xf]
        %v1721 = vld [vmem:[#allocation2 + $0x8] sm:$0xf]
        %v1722 = vld [vmem:[#allocation2 + $0xc] sm:$0xf]
        %v1723 = vld [vmem:[#allocation2 + $0x10] sm:$0xf]
        %v1724 = vld [vmem:[#allocation2 + $0x14] sm:$0xf]
        %v1725 = vld [vmem:[#allocation2 + $0x18] sm:$0xf]
        %v1726 = vld [vmem:[#allocation2 + $0x1c] sm:$0xf]
        %v1727 = vld [vmem:[#allocation2 + $0x20] sm:$0xf]
        %v1728 = vld [vmem:[#allocation2 + $0x24] sm:$0xf]
        %v1729 = vld [vmem:[#allocation2 + $0x28] sm:$0xf]
        %v1730 = vld [vmem:[#allocation2 + $0x2c] sm:$0xf]
        %v1731 = vld [vmem:[#allocation2 + $0x30] sm:$0xf]
        %v1732 = vld [vmem:[#allocation2 + $0x34] sm:$0xf]
        %v1733 = vld [vmem:[#allocation2 + $0x38] sm:$0xf]
        %v1734 = vld [vmem:[#allocation2 + $0x3c] sm:$0xf]
        %v1735 = vld [vmem:[#allocation2 + $0x40] sm:$0xf]
        %v1736 = vld [vmem:[#allocation2 + $0x44] sm:$0xf]
        %v1737 = vld [vmem:[#allocation2 + $0x48] sm:$0xf]
        %v1738 = vld [vmem:[#allocation2 + $0x4c] sm:$0xf]
        %v1739 = vld [vmem:[#allocation2 + $0x50] sm:$0xf]
        %v1740 = vld [vmem:[#allocation2 + $0x54] sm:$0xf]
        %v1741 = vld [vmem:[#allocation2 + $0x58] sm:$0xf]
        %v1742 = vld [vmem:[#allocation2 + $0x5c] sm:$0xf]
        %v1743 = vld [vmem:[#allocation2 + $0x60] sm:$0xf]
        %v1744 = vld [vmem:[#allocation2 + $0x64] sm:$0xf]
        %v1745 = vld [vmem:[#allocation2 + $0x68] sm:$0xf]
        %v1746 = vld [vmem:[#allocation2 + $0x6c] sm:$0xf]
        %v1747 = vld [vmem:[#allocation2 + $0x70] sm:$0xf]
        %v1748 = vld [vmem:[#allocation2 + $0x74] sm:$0xf]
        %v1749 = vld [vmem:[#allocation2 + $0x78] sm:$0xf]
        %v1750 = vld [vmem:[#allocation2 + $0x7c] sm:$0xf]
        %v1751 = vld [vmem:[#allocation2 + $0x80] sm:$0xf]
        %v1752 = vld [vmem:[#allocation2 + $0x84] sm:$0xf]
        %v1753 = vld [vmem:[#allocation2 + $0x88] sm:$0xf]
        %v1754 = vld [vmem:[#allocation2 + $0x8c] sm:$0xf]
        %v1755 = vld [vmem:[#allocation2 + $0x90] sm:$0xf]
        %v1756 = vld [vmem:[#allocation2 + $0x94] sm:$0xf]
        %v1757 = vld [vmem:[#allocation2 + $0x98] sm:$0xf]
        %v1758 = vld [vmem:[#allocation2 + $0x9c] sm:$0xf]
        %v1759 = vld [vmem:[#allocation2 + $0xa0] sm:$0xf]
        %v1760 = vld [vmem:[#allocation2 + $0xa4] sm:$0xf]
        %v1761 = vld [vmem:[#allocation2 + $0xa8] sm:$0xf]
        %v1762 = vld [vmem:[#allocation2 + $0xac] sm:$0xf]
        %v1763 = vld [vmem:[#allocation2 + $0xb0] sm:$0xf]
        %v1764 = vld [vmem:[#allocation2 + $0xb4] sm:$0xf]
        %v1765 = vld [vmem:[#allocation2 + $0xb8] sm:$0xf]
        %v1766 = vld [vmem:[#allocation2 + $0xbc] sm:$0xf]
        %v1767 = vld [vmem:[#allocation2 + $0xc0] sm:$0xf]
        %v1768 = vld [vmem:[#allocation2 + $0xc4] sm:$0xf]
        %v1769 = vld [vmem:[#allocation2 + $0xc8] sm:$0xf]
        %v1770 = vld [vmem:[#allocation2 + $0xcc] sm:$0xf]
        %v1771 = vld [vmem:[#allocation2 + $0xd0] sm:$0xf]
        %v1772 = vld [vmem:[#allocation2 + $0xd4] sm:$0xf]
        %v1773 = vld [vmem:[#allocation2 + $0xd8] sm:$0xf]
        %v1774 = vld [vmem:[#allocation2 + $0xdc] sm:$0xf]
        %v1775 = vld [vmem:[#allocation2 + $0xe0] sm:$0xf]
        %v1776 = vld [vmem:[#allocation2 + $0xe4] sm:$0xf]
        %v1777 = vld [vmem:[#allocation2 + $0xe8] sm:$0xf]
        %v1778 = vld [vmem:[#allocation2 + $0xec] sm:$0xf]
        %v1779 = vld [vmem:[#allocation2 + $0xf0] sm:$0xf]
        %v1780 = vld [vmem:[#allocation2 + $0xf4] sm:$0xf]
        %v1781 = vld [vmem:[#allocation2 + $0xf8] sm:$0xf]
        %v1782 = vld [vmem:[#allocation2 + $0xfc] sm:$0xf]
        %v1783 = vld [vmem:[%s4] sm:$0x1]
        %v1785 = vlaneseq
        %v1786 = vshrl.u32 %v1785, 7
        %v1787 = vsub.s32 0, %v1786
        %v1788 = vrot.slane %v1783, %v1787
        %v1854 = vunpack.c.l.b16 %v1719
        %v1855 = vunpack.c.l.b16 %v1720
        %v1856 = vunpack.c.l.b16 %v1721
        %v1857 = vunpack.c.l.b16 %v1722
        %v1858 = vunpack.c.l.b16 %v1723
        %v1859 = vunpack.c.l.b16 %v1724
        %v1860 = vunpack.c.l.b16 %v1725
        %v1861 = vunpack.c.l.b16 %v1726
        %v1862 = vunpack.c.l.b16 %v1727
        %v1863 = vunpack.c.l.b16 %v1728
        %v1864 = vunpack.c.l.b16 %v1729
        %v1865 = vunpack.c.l.b16 %v1730
        %v1866 = vunpack.c.l.b16 %v1731
        %v1867 = vunpack.c.l.b16 %v1732
        %v1868 = vunpack.c.l.b16 %v1733
        %v1869 = vunpack.c.l.b16 %v1734
        %v1870 = vunpack.c.l.b16 %v1735
        %v1871 = vunpack.c.l.b16 %v1736
        %v1872 = vunpack.c.l.b16 %v1737
        %v1873 = vunpack.c.l.b16 %v1738
        %v1874 = vunpack.c.l.b16 %v1739
        %v1875 = vunpack.c.l.b16 %v1740
        %v1876 = vunpack.c.l.b16 %v1741
        %v1877 = vunpack.c.l.b16 %v1742
        %v1878 = vunpack.c.l.b16 %v1743
        %v1879 = vunpack.c.l.b16 %v1744
        %v1880 = vunpack.c.l.b16 %v1745
        %v1881 = vunpack.c.l.b16 %v1746
        %v1882 = vunpack.c.l.b16 %v1747
        %v1883 = vunpack.c.l.b16 %v1748
        %v1884 = vunpack.c.l.b16 %v1749
        %v1885 = vunpack.c.l.b16 %v1750
        %v1886 = vunpack.c.l.b16 %v1751
        %v1887 = vunpack.c.l.b16 %v1752
        %v1888 = vunpack.c.l.b16 %v1753
        %v1889 = vunpack.c.l.b16 %v1754
        %v1890 = vunpack.c.l.b16 %v1755
        %v1891 = vunpack.c.l.b16 %v1756
        %v1892 = vunpack.c.l.b16 %v1757
        %v1893 = vunpack.c.l.b16 %v1758
        %v1894 = vunpack.c.l.b16 %v1759
        %v1895 = vunpack.c.l.b16 %v1760
        %v1896 = vunpack.c.l.b16 %v1761
        %v1897 = vunpack.c.l.b16 %v1762
        %v1898 = vunpack.c.l.b16 %v1763
        %v1899 = vunpack.c.l.b16 %v1764
        %v1900 = vunpack.c.l.b16 %v1765
        %v1901 = vunpack.c.l.b16 %v1766
        %v1902 = vunpack.c.l.b16 %v1767
        %v1903 = vunpack.c.l.b16 %v1768
        %v1904 = vunpack.c.l.b16 %v1769
        %v1905 = vunpack.c.l.b16 %v1770
        %v1906 = vunpack.c.l.b16 %v1771
        %v1907 = vunpack.c.l.b16 %v1772
        %v1908 = vunpack.c.l.b16 %v1773
        %v1909 = vunpack.c.l.b16 %v1774
        %v1910 = vunpack.c.l.b16 %v1775
        %v1911 = vunpack.c.l.b16 %v1776
        %v1912 = vunpack.c.l.b16 %v1777
        %v1913 = vunpack.c.l.b16 %v1778
        %v1914 = vunpack.c.l.b16 %v1779
        %v1915 = vunpack.c.l.b16 %v1780
        %v1916 = vunpack.c.l.b16 %v1781
        %v1917 = vunpack.c.l.b16 %v1782
        %v1918 = vpack.c.b16 %v1855, %v1854
        %v1919 = vpack.c.b16 %v1857, %v1856
        %v1920 = vpack.c.b16 %v1859, %v1858
        %v1921 = vpack.c.b16 %v1861, %v1860
        %v1922 = vpack.c.b16 %v1863, %v1862
        %v1923 = vpack.c.b16 %v1865, %v1864
        %v1924 = vpack.c.b16 %v1867, %v1866
        %v1925 = vpack.c.b16 %v1869, %v1868
        %v1926 = vpack.c.b16 %v1871, %v1870
        %v1927 = vpack.c.b16 %v1873, %v1872
        %v1928 = vpack.c.b16 %v1875, %v1874
        %v1929 = vpack.c.b16 %v1877, %v1876
        %v1930 = vpack.c.b16 %v1879, %v1878
        %v1931 = vpack.c.b16 %v1881, %v1880
        %v1932 = vpack.c.b16 %v1883, %v1882
        %v1933 = vpack.c.b16 %v1885, %v1884
        %v1934 = vpack.c.b16 %v1887, %v1886
        %v1935 = vpack.c.b16 %v1889, %v1888
        %v1936 = vpack.c.b16 %v1891, %v1890
        %v1937 = vpack.c.b16 %v1893, %v1892
        %v1938 = vpack.c.b16 %v1895, %v1894
        %v1939 = vpack.c.b16 %v1897, %v1896
        %v1940 = vpack.c.b16 %v1899, %v1898
        %v1941 = vpack.c.b16 %v1901, %v1900
        %v1942 = vpack.c.b16 %v1903, %v1902
        %v1943 = vpack.c.b16 %v1905, %v1904
        %v1944 = vpack.c.b16 %v1907, %v1906
        %v1945 = vpack.c.b16 %v1909, %v1908
        %v1946 = vpack.c.b16 %v1911, %v1910
        %v1947 = vpack.c.b16 %v1913, %v1912
        %v1948 = vpack.c.b16 %v1915, %v1914
        %v1949 = vpack.c.b16 %v1917, %v1916
        %1982 = vmatprep.subr.bf16.mxu0 0
        %1983 = vmatpush1.bf16.msra.mxu0 %v1918
        %1984 = vmatprep.subr.bf16.mxu0 0
        %1985 = vmatpush1.bf16.msra.mxu0 %v1919
        %1986 = vmatprep.subr.bf16.mxu0 0
        %1987 = vmatpush1.bf16.msra.mxu0 %v1920
        %1988 = vmatprep.subr.bf16.mxu0 0
        %1989 = vmatpush1.bf16.msra.mxu0 %v1921
        %1990 = vmatprep.subr.bf16.mxu0 0
        %1991 = vmatpush1.bf16.msra.mxu0 %v1922
        %1992 = vmatprep.subr.bf16.mxu0 0
        %1993 = vmatpush1.bf16.msra.mxu0 %v1923
        %1994 = vmatprep.subr.bf16.mxu0 0
        %1995 = vmatpush1.bf16.msra.mxu0 %v1924
        %1996 = vmatprep.subr.bf16.mxu0 0
        %1997 = vmatpush1.bf16.msra.mxu0 %v1925
        %1998 = vmatprep.subr.bf16.mxu0 0
        %1999 = vmatpush1.bf16.msra.mxu0 %v1926
        %2000 = vmatprep.subr.bf16.mxu0 0
        %2001 = vmatpush1.bf16.msra.mxu0 %v1927
        %2002 = vmatprep.subr.bf16.mxu0 0
        %2003 = vmatpush1.bf16.msra.mxu0 %v1928
        %2004 = vmatprep.subr.bf16.mxu0 0
        %2005 = vmatpush1.bf16.msra.mxu0 %v1929
        %2006 = vmatprep.subr.bf16.mxu0 0
        %2007 = vmatpush1.bf16.msra.mxu0 %v1930
        %2008 = vmatprep.subr.bf16.mxu0 0
        %2009 = vmatpush1.bf16.msra.mxu0 %v1931
        %2010 = vmatprep.subr.bf16.mxu0 0
        %2011 = vmatpush1.bf16.msra.mxu0 %v1932
        %2012 = vmatprep.subr.bf16.mxu0 0
        %2013 = vmatpush1.bf16.msra.mxu0 %v1933
        %2014 = vmatprep.mubr.bf16.mxu0 %v1688
        %2015 = vmatmul.mubr.bf16.gmra.mrb[0].mxu0 %v1687
        %v2016 = vpop.f32.mrb[0].mxu0
        %v2017 = vadd.f32 %v1788, %v2016
        %v2018 = vpop.f32.mrb[0].mxu0
        %v2019 = vpop.f32.mrb[0].mxu0
        %v2020 = vadd.f32 %v1788, %v2019
        %v2021 = vpop.f32.mrb[0].mxu0
        %2022 = vmatprep.mubr.bf16.mxu0 %v1692
        %2023 = vmatmul.mubr.bf16.gmra.mrb[0].mxu0 %v1691
        %v2024 = vpop.f32.mrb[0].mxu0
        %v2025 = vadd.f32 %v1788, %v2024
        %v2026 = vpop.f32.mrb[0].mxu0
        %v2027 = vpop.f32.mrb[0].mxu0
        %v2028 = vadd.f32 %v1788, %v2027
        %v2029 = vpop.f32.mrb[0].mxu0
        %2030 = vmatprep.mubr.bf16.mxu0 %v1696
        %2031 = vmatmul.mubr.bf16.gmra.mrb[0].mxu0 %v1695
        %v2032 = vpop.f32.mrb[0].mxu0
        %v2033 = vadd.f32 %v1788, %v2032
        %v2034 = vpop.f32.mrb[0].mxu0
        %v2035 = vpop.f32.mrb[0].mxu0
        %v2036 = vadd.f32 %v1788, %v2035
        %v2037 = vpop.f32.mrb[0].mxu0
        %2038 = vmatprep.mubr.bf16.mxu0 %v1700
        %2039 = vmatmul.mubr.bf16.gmra.mrb[0].mxu0 %v1699
        %v2040 = vpop.f32.mrb[0].mxu0
        %v2041 = vadd.f32 %v1788, %v2040
        %v2042 = vpop.f32.mrb[0].mxu0
        %v2043 = vpop.f32.mrb[0].mxu0
        %v2044 = vadd.f32 %v1788, %v2043
        %v2045 = vpop.f32.mrb[0].mxu0
        %2046 = vmatprep.mubr.bf16.mxu0 %v1704
        %2047 = vmatmul.mubr.bf16.gmra.mrb[0].mxu0 %v1703
        %v2048 = vpop.f32.mrb[0].mxu0
        %v2049 = vadd.f32 %v1788, %v2048
        %v2050 = vpop.f32.mrb[0].mxu0
        %v2051 = vpop.f32.mrb[0].mxu0
        %v2052 = vadd.f32 %v1788, %v2051
        %v2053 = vpop.f32.mrb[0].mxu0
        %2054 = vmatprep.mubr.bf16.mxu0 %v1708
        %2055 = vmatmul.mubr.bf16.gmra.mrb[0].mxu0 %v1707
        %v2056 = vpop.f32.mrb[0].mxu0
        %v2057 = vadd.f32 %v1788, %v2056
        %v2058 = vpop.f32.mrb[0].mxu0
        %v2059 = vpop.f32.mrb[0].mxu0
        %v2060 = vadd.f32 %v1788, %v2059
        %v2061 = vpop.f32.mrb[0].mxu0
        %2062 = vmatprep.mubr.bf16.mxu0 %v1712
        %2063 = vmatmul.mubr.bf16.gmra.mrb[0].mxu0 %v1711
        %v2064 = vpop.f32.mrb[0].mxu0
        %v2065 = vadd.f32 %v1788, %v2064
        %v2066 = vpop.f32.mrb[0].mxu0
        %v2067 = vpop.f32.mrb[0].mxu0
        %v2068 = vadd.f32 %v1788, %v2067
        %v2069 = vpop.f32.mrb[0].mxu0
        %2070 = vmatprep.mubr.bf16.mxu0 %v1716
        %2071 = vmatmul.mubr.bf16.gmra.mrb[0].mxu0 %v1715
        %v2072 = vpop.f32.mrb[0].mxu0
        %v2073 = vadd.f32 %v1788, %v2072
        %v2074 = vpop.f32.mrb[0].mxu0
        %v2075 = vpop.f32.mrb[0].mxu0
        %v2076 = vadd.f32 %v1788, %v2075
        %v2077 = vpop.f32.mrb[0].mxu0
        %2078 = vdwg.mxu0
        %2079 = vmatprep.subr.bf16.mxu0 0
        %2080 = vmatpush1.bf16.msra.mxu0 %v1934
        %2081 = vmatprep.subr.bf16.mxu0 0
        %2082 = vmatpush1.bf16.msra.mxu0 %v1935
        %2083 = vmatprep.subr.bf16.mxu0 0
        %2084 = vmatpush1.bf16.msra.mxu0 %v1936
        %2085 = vmatprep.subr.bf16.mxu0 0
        %2086 = vmatpush1.bf16.msra.mxu0 %v1937
        %2087 = vmatprep.subr.bf16.mxu0 0
        %2088 = vmatpush1.bf16.msra.mxu0 %v1938
        %2089 = vmatprep.subr.bf16.mxu0 0
        %2090 = vmatpush1.bf16.msra.mxu0 %v1939
        %2091 = vmatprep.subr.bf16.mxu0 0
        %2092 = vmatpush1.bf16.msra.mxu0 %v1940
        %2093 = vmatprep.subr.bf16.mxu0 0
        %2094 = vmatpush1.bf16.msra.mxu0 %v1941
        %2095 = vmatprep.subr.bf16.mxu0 0
        %2096 = vmatpush1.bf16.msra.mxu0 %v1942
        %2097 = vmatprep.subr.bf16.mxu0 0
        %2098 = vmatpush1.bf16.msra.mxu0 %v1943
        %2099 = vmatprep.subr.bf16.mxu0 0
        %2100 = vmatpush1.bf16.msra.mxu0 %v1944
        %2101 = vmatprep.subr.bf16.mxu0 0
        %2102 = vmatpush1.bf16.msra.mxu0 %v1945
        %2103 = vmatprep.subr.bf16.mxu0 0
        %2104 = vmatpush1.bf16.msra.mxu0 %v1946
        %2105 = vmatprep.subr.bf16.mxu0 0
        %2106 = vmatpush1.bf16.msra.mxu0 %v1947
        %2107 = vmatprep.subr.bf16.mxu0 0
        %2108 = vmatpush1.bf16.msra.mxu0 %v1948
        %2109 = vmatprep.subr.bf16.mxu0 0
        %2110 = vmatpush1.bf16.msra.mxu0 %v1949
        %2111 = vmatprep.mubr.bf16.mxu0 %v1690
        %2112 = vmatmul.mubr.bf16.gmra.mrb[0].mxu0 %v1689
        %v2113 = vpop.f32.mrb[0].mxu0
        %v2114 = vadd.f32 %v2017, %v2113
        %v2115 = vpop.f32.mrb[0].mxu0
        %v2116 = vpop.f32.mrb[0].mxu0
        %v2117 = vadd.f32 %v2020, %v2116
        %v2118 = vpop.f32.mrb[0].mxu0
        %2119 = vmatprep.mubr.bf16.mxu0 %v1694
        %2120 = vmatmul.mubr.bf16.gmra.mrb[0].mxu0 %v1693
        %v2121 = vpop.f32.mrb[0].mxu0
        %v2122 = vadd.f32 %v2025, %v2121
        %v2123 = vpop.f32.mrb[0].mxu0
        %v2124 = vpop.f32.mrb[0].mxu0
        %v2125 = vadd.f32 %v2028, %v2124
        %v2126 = vpop.f32.mrb[0].mxu0
        %2127 = vmatprep.mubr.bf16.mxu0 %v1698
        %2128 = vmatmul.mubr.bf16.gmra.mrb[0].mxu0 %v1697
        %v2129 = vpop.f32.mrb[0].mxu0
        %v2130 = vadd.f32 %v2033, %v2129
        %v2131 = vpop.f32.mrb[0].mxu0
        %v2132 = vpop.f32.mrb[0].mxu0
        %v2133 = vadd.f32 %v2036, %v2132
        %v2134 = vpop.f32.mrb[0].mxu0
        %2135 = vmatprep.mubr.bf16.mxu0 %v1702
        %2136 = vmatmul.mubr.bf16.gmra.mrb[0].mxu0 %v1701
        %v2137 = vpop.f32.mrb[0].mxu0
        %v2138 = vadd.f32 %v2041, %v2137
        %v2139 = vpop.f32.mrb[0].mxu0
        %v2140 = vpop.f32.mrb[0].mxu0
        %v2141 = vadd.f32 %v2044, %v2140
        %v2142 = vpop.f32.mrb[0].mxu0
        %2143 = vmatprep.mubr.bf16.mxu0 %v1706
        %2144 = vmatmul.mubr.bf16.gmra.mrb[0].mxu0 %v1705
        %v2145 = vpop.f32.mrb[0].mxu0
        %v2146 = vadd.f32 %v2049, %v2145
        %v2147 = vpop.f32.mrb[0].mxu0
        %v2148 = vpop.f32.mrb[0].mxu0
        %v2149 = vadd.f32 %v2052, %v2148
        %v2150 = vpop.f32.mrb[0].mxu0
        %2151 = vmatprep.mubr.bf16.mxu0 %v1710
        %2152 = vmatmul.mubr.bf16.gmra.mrb[0].mxu0 %v1709
        %v2153 = vpop.f32.mrb[0].mxu0
        %v2154 = vadd.f32 %v2057, %v2153
        %v2155 = vpop.f32.mrb[0].mxu0
        %v2156 = vpop.f32.mrb[0].mxu0
        %v2157 = vadd.f32 %v2060, %v2156
        %v2158 = vpop.f32.mrb[0].mxu0
        %2159 = vmatprep.mubr.bf16.mxu0 %v1714
        %2160 = vmatmul.mubr.bf16.gmra.mrb[0].mxu0 %v1713
        %v2161 = vpop.f32.mrb[0].mxu0
        %v2162 = vadd.f32 %v2065, %v2161
        %v2163 = vpop.f32.mrb[0].mxu0
        %v2164 = vpop.f32.mrb[0].mxu0
        %v2165 = vadd.f32 %v2068, %v2164
        %v2166 = vpop.f32.mrb[0].mxu0
        %2167 = vmatprep.mubr.bf16.mxu0 %v1718
        %2168 = vmatmul.mubr.bf16.gmra.mrb[0].mxu0 %v1717
        %v2169 = vpop.f32.mrb[0].mxu0
        %v2170 = vadd.f32 %v2073, %v2169
        %v2171 = vpop.f32.mrb[0].mxu0
        %v2172 = vpop.f32.mrb[0].mxu0
        %v2173 = vadd.f32 %v2076, %v2172
        %v2174 = vpop.f32.mrb[0].mxu0
        %2175 = vdwg.mxu0
        %v2176 = vmax.f32 %v2114, 0.0
        %v2177 = vmax.f32 %v2117, 0.0
        %v2178 = vmax.f32 %v2122, 0.0
        %v2179 = vmax.f32 %v2125, 0.0
        %v2180 = vmax.f32 %v2130, 0.0
        %v2181 = vmax.f32 %v2133, 0.0
        %v2182 = vmax.f32 %v2138, 0.0
        %v2183 = vmax.f32 %v2141, 0.0
        %v2184 = vmax.f32 %v2146, 0.0
        %v2185 = vmax.f32 %v2149, 0.0
        %v2186 = vmax.f32 %v2154, 0.0
        %v2187 = vmax.f32 %v2157, 0.0
        %v2188 = vmax.f32 %v2162, 0.0
        %v2189 = vmax.f32 %v2165, 0.0
        %v2190 = vmax.f32 %v2170, 0.0
        %v2191 = vmax.f32 %v2173, 0.0
        %v2192 = vpack.c.bf16 %v2177, %v2176
        %v2193 = vpack.c.bf16 %v2179, %v2178
        %v2194 = vpack.c.bf16 %v2181, %v2180
        %v2195 = vpack.c.bf16 %v2183, %v2182
        %v2196 = vpack.c.bf16 %v2185, %v2184
        %v2197 = vpack.c.bf16 %v2187, %v2186
        %v2198 = vpack.c.bf16 %v2189, %v2188
        %v2199 = vpack.c.bf16 %v2191, %v2190
        %v2200 = vld [vmem:[#allocation4] sm:$0xff]
        %v2201 = vld [vmem:[#allocation4 + $0x8] sm:$0xff]
        %v2202 = vld [vmem:[#allocation4 + $0x10] sm:$0xff]
        %v2203 = vld [vmem:[#allocation4 + $0x18] sm:$0xff]
        %v2204 = vld [vmem:[#allocation4 + $0x20] sm:$0xff]
        %v2205 = vld [vmem:[#allocation4 + $0x28] sm:$0xff]
        %v2206 = vld [vmem:[#allocation4 + $0x30] sm:$0xff]
        %v2207 = vld [vmem:[#allocation4 + $0x38] sm:$0xff]
        %v2208 = vld [vmem:[#allocation4 + $0x40] sm:$0xff]
        %v2209 = vld [vmem:[#allocation4 + $0x48] sm:$0xff]
        %v2210 = vld [vmem:[#allocation4 + $0x50] sm:$0xff]
        %v2211 = vld [vmem:[#allocation4 + $0x58] sm:$0xff]
        %v2212 = vld [vmem:[#allocation4 + $0x60] sm:$0xff]
        %v2213 = vld [vmem:[#allocation4 + $0x68] sm:$0xff]
        %v2214 = vld [vmem:[#allocation4 + $0x70] sm:$0xff]
        %v2215 = vld [vmem:[#allocation4 + $0x78] sm:$0xff]
        %v2216 = vld [vmem:[#allocation4 + $0x80] sm:$0xff]
        %v2217 = vld [vmem:[#allocation4 + $0x88] sm:$0xff]
        %v2218 = vld [vmem:[#allocation4 + $0x90] sm:$0xff]
        %v2219 = vld [vmem:[#allocation4 + $0x98] sm:$0xff]
        %v2220 = vld [vmem:[#allocation4 + $0xa0] sm:$0xff]
        %v2221 = vld [vmem:[#allocation4 + $0xa8] sm:$0xff]
        %v2222 = vld [vmem:[#allocation4 + $0xb0] sm:$0xff]
        %v2223 = vld [vmem:[#allocation4 + $0xb8] sm:$0xff]
        %v2224 = vld [vmem:[#allocation4 + $0xc0] sm:$0xff]
        %v2225 = vld [vmem:[#allocation4 + $0xc8] sm:$0xff]
        %v2226 = vld [vmem:[#allocation4 + $0xd0] sm:$0xff]
        %v2227 = vld [vmem:[#allocation4 + $0xd8] sm:$0xff]
        %v2228 = vld [vmem:[#allocation4 + $0xe0] sm:$0xff]
        %v2229 = vld [vmem:[#allocation4 + $0xe8] sm:$0xff]
        %v2230 = vld [vmem:[#allocation4 + $0xf0] sm:$0xff]
        %v2231 = vld [vmem:[#allocation4 + $0xf8] sm:$0xff]
        %v2232 = vld [vmem:[%s6] sm:$0xf]
        %v2234 = vlaneseq
        %v2235 = vshrl.u32 %v2234, 7
        %v2236 = vsub.s32 0, %v2235
        %v2237 = vrot.slane %v2232, %v2236
        %v2238 = vlaneseq
        %v2239 = vshrl.u32 %v2238, 7
        %v2240 = vsub.s32 1, %v2239
        %v2241 = vrot.slane %v2232, %v2240
        %v2242 = vlaneseq
        %v2243 = vshrl.u32 %v2242, 7
        %v2244 = vsub.s32 2, %v2243
        %v2245 = vrot.slane %v2232, %v2244
        %v2246 = vlaneseq
        %v2247 = vshrl.u32 %v2246, 7
        %v2248 = vsub.s32 3, %v2247
        %v2249 = vrot.slane %v2232, %v2248
        %v2286 = vunpack.c.l.b16 %v2200
        %v2287 = vunpack.c.h.b16 %v2200
        %v2288 = vunpack.c.l.b16 %v2201
        %v2289 = vunpack.c.h.b16 %v2201
        %v2290 = vunpack.c.l.b16 %v2202
        %v2291 = vunpack.c.h.b16 %v2202
        %v2292 = vunpack.c.l.b16 %v2203
        %v2293 = vunpack.c.h.b16 %v2203
        %v2294 = vunpack.c.l.b16 %v2204
        %v2295 = vunpack.c.h.b16 %v2204
        %v2296 = vunpack.c.l.b16 %v2205
        %v2297 = vunpack.c.h.b16 %v2205
        %v2298 = vunpack.c.l.b16 %v2206
        %v2299 = vunpack.c.h.b16 %v2206
        %v2300 = vunpack.c.l.b16 %v2207
        %v2301 = vunpack.c.h.b16 %v2207
        %v2302 = vunpack.c.l.b16 %v2208
        %v2303 = vunpack.c.h.b16 %v2208
        %v2304 = vunpack.c.l.b16 %v2209
        %v2305 = vunpack.c.h.b16 %v2209
        %v2306 = vunpack.c.l.b16 %v2210
        %v2307 = vunpack.c.h.b16 %v2210
        %v2308 = vunpack.c.l.b16 %v2211
        %v2309 = vunpack.c.h.b16 %v2211
        %v2310 = vunpack.c.l.b16 %v2212
        %v2311 = vunpack.c.h.b16 %v2212
        %v2312 = vunpack.c.l.b16 %v2213
        %v2313 = vunpack.c.h.b16 %v2213
        %v2314 = vunpack.c.l.b16 %v2214
        %v2315 = vunpack.c.h.b16 %v2214
        %v2316 = vunpack.c.l.b16 %v2215
        %v2317 = vunpack.c.h.b16 %v2215
        %v2318 = vunpack.c.l.b16 %v2216
        %v2319 = vunpack.c.h.b16 %v2216
        %v2320 = vunpack.c.l.b16 %v2217
        %v2321 = vunpack.c.h.b16 %v2217
        %v2322 = vunpack.c.l.b16 %v2218
        %v2323 = vunpack.c.h.b16 %v2218
        %v2324 = vunpack.c.l.b16 %v2219
        %v2325 = vunpack.c.h.b16 %v2219
        %v2326 = vunpack.c.l.b16 %v2220
        %v2327 = vunpack.c.h.b16 %v2220
        %v2328 = vunpack.c.l.b16 %v2221
        %v2329 = vunpack.c.h.b16 %v2221
        %v2330 = vunpack.c.l.b16 %v2222
        %v2331 = vunpack.c.h.b16 %v2222
        %v2332 = vunpack.c.l.b16 %v2223
        %v2333 = vunpack.c.h.b16 %v2223
        %v2334 = vunpack.c.l.b16 %v2224
        %v2335 = vunpack.c.h.b16 %v2224
        %v2336 = vunpack.c.l.b16 %v2225
        %v2337 = vunpack.c.h.b16 %v2225
        %v2338 = vunpack.c.l.b16 %v2226
        %v2339 = vunpack.c.h.b16 %v2226
        %v2340 = vunpack.c.l.b16 %v2227
        %v2341 = vunpack.c.h.b16 %v2227
        %v2342 = vunpack.c.l.b16 %v2228
        %v2343 = vunpack.c.h.b16 %v2228
        %v2344 = vunpack.c.l.b16 %v2229
        %v2345 = vunpack.c.h.b16 %v2229
        %v2346 = vunpack.c.l.b16 %v2230
        %v2347 = vunpack.c.h.b16 %v2230
        %v2348 = vunpack.c.l.b16 %v2231
        %v2349 = vunpack.c.h.b16 %v2231
        %v2350 = vpack.c.b16 %v2290, %v2286
        %v2351 = vpack.c.b16 %v2291, %v2287
        %v2352 = vpack.c.b16 %v2292, %v2288
        %v2353 = vpack.c.b16 %v2293, %v2289
        %v2354 = vpack.c.b16 %v2298, %v2294
        %v2355 = vpack.c.b16 %v2299, %v2295
        %v2356 = vpack.c.b16 %v2300, %v2296
        %v2357 = vpack.c.b16 %v2301, %v2297
        %v2358 = vpack.c.b16 %v2306, %v2302
        %v2359 = vpack.c.b16 %v2307, %v2303
        %v2360 = vpack.c.b16 %v2308, %v2304
        %v2361 = vpack.c.b16 %v2309, %v2305
        %v2362 = vpack.c.b16 %v2314, %v2310
        %v2363 = vpack.c.b16 %v2315, %v2311
        %v2364 = vpack.c.b16 %v2316, %v2312
        %v2365 = vpack.c.b16 %v2317, %v2313
        %v2366 = vpack.c.b16 %v2322, %v2318
        %v2367 = vpack.c.b16 %v2323, %v2319
        %v2368 = vpack.c.b16 %v2324, %v2320
        %v2369 = vpack.c.b16 %v2325, %v2321
        %v2370 = vpack.c.b16 %v2330, %v2326
        %v2371 = vpack.c.b16 %v2331, %v2327
        %v2372 = vpack.c.b16 %v2332, %v2328
        %v2373 = vpack.c.b16 %v2333, %v2329
        %v2374 = vpack.c.b16 %v2338, %v2334
        %v2375 = vpack.c.b16 %v2339, %v2335
        %v2376 = vpack.c.b16 %v2340, %v2336
        %v2377 = vpack.c.b16 %v2341, %v2337
        %v2378 = vpack.c.b16 %v2346, %v2342
        %v2379 = vpack.c.b16 %v2347, %v2343
        %v2380 = vpack.c.b16 %v2348, %v2344
        %v2381 = vpack.c.b16 %v2349, %v2345
        %2414 = vmatprep.subr.bf16.mxu0 %v2351
        %2415 = vmatpush1.bf16.msra.mxu0 %v2350
        %2416 = vmatprep.subr.bf16.mxu0 %v2355
        %2417 = vmatpush1.bf16.msra.mxu0 %v2354
        %2418 = vmatprep.subr.bf16.mxu0 %v2359
        %2419 = vmatpush1.bf16.msra.mxu0 %v2358
        %2420 = vmatprep.subr.bf16.mxu0 %v2363
        %2421 = vmatpush1.bf16.msra.mxu0 %v2362
        %2422 = vmatprep.subr.bf16.mxu0 %v2367
        %2423 = vmatpush1.bf16.msra.mxu0 %v2366
        %2424 = vmatprep.subr.bf16.mxu0 %v2371
        %2425 = vmatpush1.bf16.msra.mxu0 %v2370
        %2426 = vmatprep.subr.bf16.mxu0 %v2375
        %2427 = vmatpush1.bf16.msra.mxu0 %v2374
        %2428 = vmatprep.subr.bf16.mxu0 %v2379
        %2429 = vmatpush1.bf16.msra.mxu0 %v2378
        %2430 = vmatprep.subr.bf16.mxu0 0
        %2431 = vmatpush1.bf16.msra.mxu0 0
        %2432 = vmatprep.subr.bf16.mxu0 0
        %2433 = vmatpush1.bf16.msra.mxu0 0
        %2434 = vmatprep.subr.bf16.mxu0 0
        %2435 = vmatpush1.bf16.msra.mxu0 0
        %2436 = vmatprep.subr.bf16.mxu0 0
        %2437 = vmatpush1.bf16.msra.mxu0 0
        %2438 = vmatprep.subr.bf16.mxu0 0
        %2439 = vmatpush1.bf16.msra.mxu0 0
        %2440 = vmatprep.subr.bf16.mxu0 0
        %2441 = vmatpush1.bf16.msra.mxu0 0
        %2442 = vmatprep.subr.bf16.mxu0 0
        %2443 = vmatpush1.bf16.msra.mxu0 0
        %2444 = vmatprep.subr.bf16.mxu0 0
        %2445 = vmatpush1.bf16.msra.mxu0 0
        %2446 = vmatprep.mubr.bf16.mxu0 0
        %2447 = vmatmul.mubr.bf16.gmra.mrb[0].mxu0 %v2192
        %v2448 = vpop.f32.mrb[0].mxu0
        %v2449 = vadd.f32 %v2237, %v2448
        %v2450 = vpop.f32.mrb[0].mxu0
        %v2451 = vadd.f32 %v2241, %v2450
        %v2452 = vpop.f32.mrb[0].mxu0
        %v2453 = vadd.f32 %v2237, %v2452
        %v2454 = vpop.f32.mrb[0].mxu0
        %v2455 = vadd.f32 %v2241, %v2454
        %2456 = vmatprep.mubr.bf16.mxu0 0
        %2457 = vmatmul.mubr.bf16.gmra.mrb[0].mxu0 %v2193
        %v2458 = vpop.f32.mrb[0].mxu0
        %v2459 = vadd.f32 %v2237, %v2458
        %v2460 = vpop.f32.mrb[0].mxu0
        %v2461 = vadd.f32 %v2241, %v2460
        %v2462 = vpop.f32.mrb[0].mxu0
        %v2463 = vadd.f32 %v2237, %v2462
        %v2464 = vpop.f32.mrb[0].mxu0
        %v2465 = vadd.f32 %v2241, %v2464
        %2466 = vmatprep.mubr.bf16.mxu0 0
        %2467 = vmatmul.mubr.bf16.gmra.mrb[0].mxu0 %v2194
        %v2468 = vpop.f32.mrb[0].mxu0
        %v2469 = vadd.f32 %v2237, %v2468
        %v2470 = vpop.f32.mrb[0].mxu0
        %v2471 = vadd.f32 %v2241, %v2470
        %v2472 = vpop.f32.mrb[0].mxu0
        %v2473 = vadd.f32 %v2237, %v2472
        %v2474 = vpop.f32.mrb[0].mxu0
        %v2475 = vadd.f32 %v2241, %v2474
        %2476 = vmatprep.mubr.bf16.mxu0 0
        %2477 = vmatmul.mubr.bf16.gmra.mrb[0].mxu0 %v2195
        %v2478 = vpop.f32.mrb[0].mxu0
        %v2479 = vadd.f32 %v2237, %v2478
        %v2480 = vpop.f32.mrb[0].mxu0
        %v2481 = vadd.f32 %v2241, %v2480
        %v2482 = vpop.f32.mrb[0].mxu0
        %v2483 = vadd.f32 %v2237, %v2482
        %v2484 = vpop.f32.mrb[0].mxu0
        %v2485 = vadd.f32 %v2241, %v2484
        %2486 = vmatprep.mubr.bf16.mxu0 0
        %2487 = vmatmul.mubr.bf16.gmra.mrb[0].mxu0 %v2196
        %v2488 = vpop.f32.mrb[0].mxu0
        %v2489 = vadd.f32 %v2237, %v2488
        %v2490 = vpop.f32.mrb[0].mxu0
        %v2491 = vadd.f32 %v2241, %v2490
        %v2492 = vpop.f32.mrb[0].mxu0
        %v2493 = vadd.f32 %v2237, %v2492
        %v2494 = vpop.f32.mrb[0].mxu0
        %v2495 = vadd.f32 %v2241, %v2494
        %2496 = vmatprep.mubr.bf16.mxu0 0
        %2497 = vmatmul.mubr.bf16.gmra.mrb[0].mxu0 %v2197
        %v2498 = vpop.f32.mrb[0].mxu0
        %v2499 = vadd.f32 %v2237, %v2498
        %v2500 = vpop.f32.mrb[0].mxu0
        %v2501 = vadd.f32 %v2241, %v2500
        %v2502 = vpop.f32.mrb[0].mxu0
        %v2503 = vadd.f32 %v2237, %v2502
        %v2504 = vpop.f32.mrb[0].mxu0
        %v2505 = vadd.f32 %v2241, %v2504
        %2506 = vmatprep.mubr.bf16.mxu0 0
        %2507 = vmatmul.mubr.bf16.gmra.mrb[0].mxu0 %v2198
        %v2508 = vpop.f32.mrb[0].mxu0
        %v2509 = vadd.f32 %v2237, %v2508
        %v2510 = vpop.f32.mrb[0].mxu0
        %v2511 = vadd.f32 %v2241, %v2510
        %v2512 = vpop.f32.mrb[0].mxu0
        %v2513 = vadd.f32 %v2237, %v2512
        %v2514 = vpop.f32.mrb[0].mxu0
        %v2515 = vadd.f32 %v2241, %v2514
        %2516 = vmatprep.mubr.bf16.mxu0 0
        %2517 = vmatmul.mubr.bf16.gmra.mrb[0].mxu0 %v2199
        %v2518 = vpop.f32.mrb[0].mxu0
        %v2519 = vadd.f32 %v2237, %v2518
        %v2520 = vpop.f32.mrb[0].mxu0
        %v2521 = vadd.f32 %v2241, %v2520
        %v2522 = vpop.f32.mrb[0].mxu0
        %v2523 = vadd.f32 %v2237, %v2522
        %v2524 = vpop.f32.mrb[0].mxu0
        %v2525 = vadd.f32 %v2241, %v2524
        %2526 = vdwg.mxu0
        %2527 = vmatprep.subr.bf16.mxu0 %v2353
        %2528 = vmatpush1.bf16.msra.mxu0 %v2352
        %2529 = vmatprep.subr.bf16.mxu0 %v2357
        %2530 = vmatpush1.bf16.msra.mxu0 %v2356
        %2531 = vmatprep.subr.bf16.mxu0 %v2361
        %2532 = vmatpush1.bf16.msra.mxu0 %v2360
        %2533 = vmatprep.subr.bf16.mxu0 %v2365
        %2534 = vmatpush1.bf16.msra.mxu0 %v2364
        %2535 = vmatprep.subr.bf16.mxu0 %v2369
        %2536 = vmatpush1.bf16.msra.mxu0 %v2368
        %2537 = vmatprep.subr.bf16.mxu0 %v2373
        %2538 = vmatpush1.bf16.msra.mxu0 %v2372
        %2539 = vmatprep.subr.bf16.mxu0 %v2377
        %2540 = vmatpush1.bf16.msra.mxu0 %v2376
        %2541 = vmatprep.subr.bf16.mxu0 %v2381
        %2542 = vmatpush1.bf16.msra.mxu0 %v2380
        %2543 = vmatprep.subr.bf16.mxu0 0
        %2544 = vmatpush1.bf16.msra.mxu0 0
        %2545 = vmatprep.subr.bf16.mxu0 0
        %2546 = vmatpush1.bf16.msra.mxu0 0
        %2547 = vmatprep.subr.bf16.mxu0 0
        %2548 = vmatpush1.bf16.msra.mxu0 0
        %2549 = vmatprep.subr.bf16.mxu0 0
        %2550 = vmatpush1.bf16.msra.mxu0 0
        %2551 = vmatprep.subr.bf16.mxu0 0
        %2552 = vmatpush1.bf16.msra.mxu0 0
        %2553 = vmatprep.subr.bf16.mxu0 0
        %2554 = vmatpush1.bf16.msra.mxu0 0
        %2555 = vmatprep.subr.bf16.mxu0 0
        %2556 = vmatpush1.bf16.msra.mxu0 0
        %2557 = vmatprep.subr.bf16.mxu0 0
        %2558 = vmatpush1.bf16.msra.mxu0 0
        %2559 = vmatprep.mubr.bf16.mxu0 0
        %2560 = vmatmul.mubr.bf16.gmra.mrb[0].mxu0 %v2192
        %v2561 = vpop.f32.mrb[0].mxu0
        %v2562 = vadd.f32 %v2245, %v2561
        %v2563 = vpop.f32.mrb[0].mxu0
        %v2564 = vadd.f32 %v2249, %v2563
        %v2565 = vpop.f32.mrb[0].mxu0
        %v2566 = vadd.f32 %v2245, %v2565
        %v2567 = vpop.f32.mrb[0].mxu0
        %v2568 = vadd.f32 %v2249, %v2567
        %2569 = vmatprep.mubr.bf16.mxu0 0
        %2570 = vmatmul.mubr.bf16.gmra.mrb[0].mxu0 %v2193
        %v2571 = vpop.f32.mrb[0].mxu0
        %v2572 = vadd.f32 %v2245, %v2571
        %v2573 = vpop.f32.mrb[0].mxu0
        %v2574 = vadd.f32 %v2249, %v2573
        %v2575 = vpop.f32.mrb[0].mxu0
        %v2576 = vadd.f32 %v2245, %v2575
        %v2577 = vpop.f32.mrb[0].mxu0
        %v2578 = vadd.f32 %v2249, %v2577
        %2579 = vmatprep.mubr.bf16.mxu0 0
        %2580 = vmatmul.mubr.bf16.gmra.mrb[0].mxu0 %v2194
        %v2581 = vpop.f32.mrb[0].mxu0
        %v2582 = vadd.f32 %v2245, %v2581
        %v2583 = vpop.f32.mrb[0].mxu0
        %v2584 = vadd.f32 %v2249, %v2583
        %v2585 = vpop.f32.mrb[0].mxu0
        %v2586 = vadd.f32 %v2245, %v2585
        %v2587 = vpop.f32.mrb[0].mxu0
        %v2588 = vadd.f32 %v2249, %v2587
        %2589 = vmatprep.mubr.bf16.mxu0 0
        %2590 = vmatmul.mubr.bf16.gmra.mrb[0].mxu0 %v2195
        %v2591 = vpop.f32.mrb[0].mxu0
        %v2592 = vadd.f32 %v2245, %v2591
        %v2593 = vpop.f32.mrb[0].mxu0
        %v2594 = vadd.f32 %v2249, %v2593
        %v2595 = vpop.f32.mrb[0].mxu0
        %v2596 = vadd.f32 %v2245, %v2595
        %v2597 = vpop.f32.mrb[0].mxu0
        %v2598 = vadd.f32 %v2249, %v2597
        %2599 = vmatprep.mubr.bf16.mxu0 0
        %2600 = vmatmul.mubr.bf16.gmra.mrb[0].mxu0 %v2196
        %v2601 = vpop.f32.mrb[0].mxu0
        %v2602 = vadd.f32 %v2245, %v2601
        %v2603 = vpop.f32.mrb[0].mxu0
        %v2604 = vadd.f32 %v2249, %v2603
        %v2605 = vpop.f32.mrb[0].mxu0
        %v2606 = vadd.f32 %v2245, %v2605
        %v2607 = vpop.f32.mrb[0].mxu0
        %v2608 = vadd.f32 %v2249, %v2607
        %2609 = vmatprep.mubr.bf16.mxu0 0
        %2610 = vmatmul.mubr.bf16.gmra.mrb[0].mxu0 %v2197
        %v2611 = vpop.f32.mrb[0].mxu0
        %v2612 = vadd.f32 %v2245, %v2611
        %v2613 = vpop.f32.mrb[0].mxu0
        %v2614 = vadd.f32 %v2249, %v2613
        %v2615 = vpop.f32.mrb[0].mxu0
        %v2616 = vadd.f32 %v2245, %v2615
        %v2617 = vpop.f32.mrb[0].mxu0
        %v2618 = vadd.f32 %v2249, %v2617
        %2619 = vmatprep.mubr.bf16.mxu0 0
        %2620 = vmatmul.mubr.bf16.gmra.mrb[0].mxu0 %v2198
        %v2621 = vpop.f32.mrb[0].mxu0
        %v2622 = vadd.f32 %v2245, %v2621
        %v2623 = vpop.f32.mrb[0].mxu0
        %v2624 = vadd.f32 %v2249, %v2623
        %v2625 = vpop.f32.mrb[0].mxu0
        %v2626 = vadd.f32 %v2245, %v2625
        %v2627 = vpop.f32.mrb[0].mxu0
        %v2628 = vadd.f32 %v2249, %v2627
        %2629 = vmatprep.mubr.bf16.mxu0 0
        %2630 = vmatmul.mubr.bf16.gmra.mrb[0].mxu0 %v2199
        %v2631 = vpop.f32.mrb[0].mxu0
        %v2632 = vadd.f32 %v2245, %v2631
        %v2633 = vpop.f32.mrb[0].mxu0
        %v2634 = vadd.f32 %v2249, %v2633
        %v2635 = vpop.f32.mrb[0].mxu0
        %v2636 = vadd.f32 %v2245, %v2635
        %v2637 = vpop.f32.mrb[0].mxu0
        %v2638 = vadd.f32 %v2249, %v2637
        %2639 = vdwg.mxu0
        %v2640 = vmax.f32 %v2449, 0.0
        %v2641 = vmax.f32 %v2451, 0.0
        %v2642 = vmax.f32 %v2562, 0.0
        %v2643 = vmax.f32 %v2564, 0.0
        %v2644 = vmax.f32 %v2453, 0.0
        %v2645 = vmax.f32 %v2455, 0.0
        %v2646 = vmax.f32 %v2566, 0.0
        %v2647 = vmax.f32 %v2568, 0.0
        %v2648 = vmax.f32 %v2459, 0.0
        %v2649 = vmax.f32 %v2461, 0.0
        %v2650 = vmax.f32 %v2572, 0.0
        %v2651 = vmax.f32 %v2574, 0.0
        %v2652 = vmax.f32 %v2463, 0.0
        %v2653 = vmax.f32 %v2465, 0.0
        %v2654 = vmax.f32 %v2576, 0.0
        %v2655 = vmax.f32 %v2578, 0.0
        %v2656 = vmax.f32 %v2469, 0.0
        %v2657 = vmax.f32 %v2471, 0.0
        %v2658 = vmax.f32 %v2582, 0.0
        %v2659 = vmax.f32 %v2584, 0.0
        %v2660 = vmax.f32 %v2473, 0.0
        %v2661 = vmax.f32 %v2475, 0.0
        %v2662 = vmax.f32 %v2586, 0.0
        %v2663 = vmax.f32 %v2588, 0.0
        %v2664 = vmax.f32 %v2479, 0.0
        %v2665 = vmax.f32 %v2481, 0.0
        %v2666 = vmax.f32 %v2592, 0.0
        %v2667 = vmax.f32 %v2594, 0.0
        %v2668 = vmax.f32 %v2483, 0.0
        %v2669 = vmax.f32 %v2485, 0.0
        %v2670 = vmax.f32 %v2596, 0.0
        %v2671 = vmax.f32 %v2598, 0.0
        %v2672 = vmax.f32 %v2489, 0.0
        %v2673 = vmax.f32 %v2491, 0.0
        %v2674 = vmax.f32 %v2602, 0.0
        %v2675 = vmax.f32 %v2604, 0.0
        %v2676 = vmax.f32 %v2493, 0.0
        %v2677 = vmax.f32 %v2495, 0.0
        %v2678 = vmax.f32 %v2606, 0.0
        %v2679 = vmax.f32 %v2608, 0.0
        %v2680 = vmax.f32 %v2499, 0.0
        %v2681 = vmax.f32 %v2501, 0.0
        %v2682 = vmax.f32 %v2612, 0.0
        %v2683 = vmax.f32 %v2614, 0.0
        %v2684 = vmax.f32 %v2503, 0.0
        %v2685 = vmax.f32 %v2505, 0.0
        %v2686 = vmax.f32 %v2616, 0.0
        %v2687 = vmax.f32 %v2618, 0.0
        %v2688 = vmax.f32 %v2509, 0.0
        %v2689 = vmax.f32 %v2511, 0.0
        %v2690 = vmax.f32 %v2622, 0.0
        %v2691 = vmax.f32 %v2624, 0.0
        %v2692 = vmax.f32 %v2513, 0.0
        %v2693 = vmax.f32 %v2515, 0.0
        %v2694 = vmax.f32 %v2626, 0.0
        %v2695 = vmax.f32 %v2628, 0.0
        %v2696 = vmax.f32 %v2519, 0.0
        %v2697 = vmax.f32 %v2521, 0.0
        %v2698 = vmax.f32 %v2632, 0.0
        %v2699 = vmax.f32 %v2634, 0.0
        %v2700 = vmax.f32 %v2523, 0.0
        %v2701 = vmax.f32 %v2525, 0.0
        %v2702 = vmax.f32 %v2636, 0.0
        %v2703 = vmax.f32 %v2638, 0.0
        %v2704 = vpack.c.bf16 %v2644, %v2640
        %v2705 = vpack.c.bf16 %v2645, %v2641
        %v2706 = vpack.c.bf16 %v2646, %v2642
        %v2707 = vpack.c.bf16 %v2647, %v2643
        %v2708 = vpack.c.bf16 %v2652, %v2648
        %v2709 = vpack.c.bf16 %v2653, %v2649
        %v2710 = vpack.c.bf16 %v2654, %v2650
        %v2711 = vpack.c.bf16 %v2655, %v2651
        %v2712 = vpack.c.bf16 %v2660, %v2656
        %v2713 = vpack.c.bf16 %v2661, %v2657
        %v2714 = vpack.c.bf16 %v2662, %v2658
        %v2715 = vpack.c.bf16 %v2663, %v2659
        %v2716 = vpack.c.bf16 %v2668, %v2664
        %v2717 = vpack.c.bf16 %v2669, %v2665
        %v2718 = vpack.c.bf16 %v2670, %v2666
        %v2719 = vpack.c.bf16 %v2671, %v2667
        %v2720 = vpack.c.bf16 %v2676, %v2672
        %v2721 = vpack.c.bf16 %v2677, %v2673
        %v2722 = vpack.c.bf16 %v2678, %v2674
        %v2723 = vpack.c.bf16 %v2679, %v2675
        %v2724 = vpack.c.bf16 %v2684, %v2680
        %v2725 = vpack.c.bf16 %v2685, %v2681
        %v2726 = vpack.c.bf16 %v2686, %v2682
        %v2727 = vpack.c.bf16 %v2687, %v2683
        %v2728 = vpack.c.bf16 %v2692, %v2688
        %v2729 = vpack.c.bf16 %v2693, %v2689
        %v2730 = vpack.c.bf16 %v2694, %v2690
        %v2731 = vpack.c.bf16 %v2695, %v2691
        %v2732 = vpack.c.bf16 %v2700, %v2696
        %v2733 = vpack.c.bf16 %v2701, %v2697
        %v2734 = vpack.c.bf16 %v2702, %v2698
        %v2735 = vpack.c.bf16 %v2703, %v2699
        %v2736 = vld [vmem:[%s7] sm:$0xff]
        %v2737 = vld [vmem:[%s7 + $0x8] sm:$0xf]
        %v2738 = vld [vmem:[%s7 + $0xc] sm:$0xff]
        %v2739 = vld [vmem:[%s7 + $0x14] sm:$0xf]
        %v2740 = vld [vmem:[%s7 + $0x18] sm:$0xff]
        %v2741 = vld [vmem:[%s7 + $0x20] sm:$0xf]
        %v2742 = vld [vmem:[%s7 + $0x24] sm:$0xff]
        %v2743 = vld [vmem:[%s7 + $0x2c] sm:$0xf]
        %v2744 = vld [vmem:[%s7 + $0x30] sm:$0xff]
        %v2745 = vld [vmem:[%s7 + $0x38] sm:$0xf]
        %v2746 = vld [vmem:[%s7 + $0x3c] sm:$0xff]
        %v2747 = vld [vmem:[%s7 + $0x44] sm:$0xf]
        %v2748 = vld [vmem:[%s7 + $0x48] sm:$0xff]
        %v2749 = vld [vmem:[%s7 + $0x50] sm:$0xf]
        %v2750 = vld [vmem:[%s7 + $0x54] sm:$0xff]
        %v2751 = vld [vmem:[%s7 + $0x5c] sm:$0xf]
        %v2752 = vld [vmem:[%s7 + $0x60] sm:$0xff]
        %v2753 = vld [vmem:[%s7 + $0x68] sm:$0xf]
        %v2754 = vld [vmem:[%s7 + $0x6c] sm:$0xff]
        %v2755 = vld [vmem:[%s7 + $0x74] sm:$0xf]
        %v2756 = vld [vmem:[%s7 + $0x78] sm:$0xff]
        %v2757 = vld [vmem:[%s7 + $0x80] sm:$0xf]
        %v2758 = vld [vmem:[%s7 + $0x84] sm:$0xff]
        %v2759 = vld [vmem:[%s7 + $0x8c] sm:$0xf]
        %v2760 = vld [vmem:[%s7 + $0x90] sm:$0xff]
        %v2761 = vld [vmem:[%s7 + $0x98] sm:$0xf]
        %v2762 = vld [vmem:[%s7 + $0x9c] sm:$0xff]
        %v2763 = vld [vmem:[%s7 + $0xa4] sm:$0xf]
        %v2764 = vld [vmem:[%s7 + $0xa8] sm:$0xff]
        %v2765 = vld [vmem:[%s7 + $0xb0] sm:$0xf]
        %v2766 = vld [vmem:[%s7 + $0xb4] sm:$0xff]
        %v2767 = vld [vmem:[%s7 + $0xbc] sm:$0xf]
        %v2768 = vld [vmem:[%s7 + $0xc0] sm:$0xff]
        %v2769 = vld [vmem:[%s7 + $0xc8] sm:$0xf]
        %v2770 = vld [vmem:[%s7 + $0xcc] sm:$0xff]
        %v2771 = vld [vmem:[%s7 + $0xd4] sm:$0xf]
        %v2772 = vld [vmem:[%s7 + $0xd8] sm:$0xff]
        %v2773 = vld [vmem:[%s7 + $0xe0] sm:$0xf]
        %v2774 = vld [vmem:[%s7 + $0xe4] sm:$0xff]
        %v2775 = vld [vmem:[%s7 + $0xec] sm:$0xf]
        %v2776 = vld [vmem:[%s7 + $0xf0] sm:$0xff]
        %v2777 = vld [vmem:[%s7 + $0xf8] sm:$0xf]
        %v2778 = vld [vmem:[%s7 + $0xfc] sm:$0xff]
        %v2779 = vld [vmem:[%s7 + $0x104] sm:$0xf]
        %v2780 = vld [vmem:[%s7 + $0x108] sm:$0xff]
        %v2781 = vld [vmem:[%s7 + $0x110] sm:$0xf]
        %v2782 = vld [vmem:[%s7 + $0x114] sm:$0xff]
        %v2783 = vld [vmem:[%s7 + $0x11c] sm:$0xf]
        %v2784 = vld [vmem:[%s7 + $0x120] sm:$0xff]
        %v2785 = vld [vmem:[%s7 + $0x128] sm:$0xf]
        %v2786 = vld [vmem:[%s7 + $0x12c] sm:$0xff]
        %v2787 = vld [vmem:[%s7 + $0x134] sm:$0xf]
        %v2788 = vld [vmem:[%s7 + $0x138] sm:$0xff]
        %v2789 = vld [vmem:[%s7 + $0x140] sm:$0xf]
        %v2790 = vld [vmem:[%s7 + $0x144] sm:$0xff]
        %v2791 = vld [vmem:[%s7 + $0x14c] sm:$0xf]
        %v2792 = vld [vmem:[%s7 + $0x150] sm:$0xff]
        %v2793 = vld [vmem:[%s7 + $0x158] sm:$0xf]
        %v2794 = vld [vmem:[%s7 + $0x15c] sm:$0xff]
        %v2795 = vld [vmem:[%s7 + $0x164] sm:$0xf]
        %v2796 = vld [vmem:[%s7 + $0x168] sm:$0xff]
        %v2797 = vld [vmem:[%s7 + $0x170] sm:$0xf]
        %v2798 = vld [vmem:[%s7 + $0x174] sm:$0xff]
        %v2799 = vld [vmem:[%s7 + $0x17c] sm:$0xf]
        %v2800 = vld [vmem:[%s7 + $0x180] sm:$0xff]
        %v2801 = vld [vmem:[%s7 + $0x188] sm:$0xf]
        %v2802 = vld [vmem:[%s7 + $0x18c] sm:$0xff]
        %v2803 = vld [vmem:[%s7 + $0x194] sm:$0xf]
        %v2804 = vld [vmem:[%s7 + $0x198] sm:$0xff]
        %v2805 = vld [vmem:[%s7 + $0x1a0] sm:$0xf]
        %v2806 = vld [vmem:[%s7 + $0x1a4] sm:$0xff]
        %v2807 = vld [vmem:[%s7 + $0x1ac] sm:$0xf]
        %v2808 = vld [vmem:[%s7 + $0x1b0] sm:$0xff]
        %v2809 = vld [vmem:[%s7 + $0x1b8] sm:$0xf]
        %v2810 = vld [vmem:[%s7 + $0x1bc] sm:$0xff]
        %v2811 = vld [vmem:[%s7 + $0x1c4] sm:$0xf]
        %v2812 = vld [vmem:[%s7 + $0x1c8] sm:$0xff]
        %v2813 = vld [vmem:[%s7 + $0x1d0] sm:$0xf]
        %v2814 = vld [vmem:[%s7 + $0x1d4] sm:$0xff]
        %v2815 = vld [vmem:[%s7 + $0x1dc] sm:$0xf]
        %v2816 = vld [vmem:[%s7 + $0x1e0] sm:$0xff]
        %v2817 = vld [vmem:[%s7 + $0x1e8] sm:$0xf]
        %v2818 = vld [vmem:[%s7 + $0x1ec] sm:$0xff]
        %v2819 = vld [vmem:[%s7 + $0x1f4] sm:$0xf]
        %v2820 = vld [vmem:[%s7 + $0x1f8] sm:$0xff]
        %v2821 = vld [vmem:[%s7 + $0x200] sm:$0xf]
        %v2822 = vld [vmem:[%s7 + $0x204] sm:$0xff]
        %v2823 = vld [vmem:[%s7 + $0x20c] sm:$0xf]
        %v2824 = vld [vmem:[%s7 + $0x210] sm:$0xff]
        %v2825 = vld [vmem:[%s7 + $0x218] sm:$0xf]
        %v2826 = vld [vmem:[%s7 + $0x21c] sm:$0xff]
        %v2827 = vld [vmem:[%s7 + $0x224] sm:$0xf]
        %v2828 = vld [vmem:[%s7 + $0x228] sm:$0xff]
        %v2829 = vld [vmem:[%s7 + $0x230] sm:$0xf]
        %v2830 = vld [vmem:[%s7 + $0x234] sm:$0xff]
        %v2831 = vld [vmem:[%s7 + $0x23c] sm:$0xf]
        %v2832 = vld [vmem:[%s7 + $0x240] sm:$0xff]
        %v2833 = vld [vmem:[%s7 + $0x248] sm:$0xf]
        %v2834 = vld [vmem:[%s7 + $0x24c] sm:$0xff]
        %v2835 = vld [vmem:[%s7 + $0x254] sm:$0xf]
        %v2836 = vld [vmem:[%s7 + $0x258] sm:$0xff]
        %v2837 = vld [vmem:[%s7 + $0x260] sm:$0xf]
        %v2838 = vld [vmem:[%s7 + $0x264] sm:$0xff]
        %v2839 = vld [vmem:[%s7 + $0x26c] sm:$0xf]
        %v2840 = vld [vmem:[%s7 + $0x270] sm:$0xff]
        %v2841 = vld [vmem:[%s7 + $0x278] sm:$0xf]
        %v2842 = vld [vmem:[%s7 + $0x27c] sm:$0xff]
        %v2843 = vld [vmem:[%s7 + $0x284] sm:$0xf]
        %v2844 = vld [vmem:[%s7 + $0x288] sm:$0xff]
        %v2845 = vld [vmem:[%s7 + $0x290] sm:$0xf]
        %v2846 = vld [vmem:[%s7 + $0x294] sm:$0xff]
        %v2847 = vld [vmem:[%s7 + $0x29c] sm:$0xf]
        %v2848 = vld [vmem:[%s7 + $0x2a0] sm:$0xff]
        %v2849 = vld [vmem:[%s7 + $0x2a8] sm:$0xf]
        %v2850 = vld [vmem:[%s7 + $0x2ac] sm:$0xff]
        %v2851 = vld [vmem:[%s7 + $0x2b4] sm:$0xf]
        %v2852 = vld [vmem:[%s7 + $0x2b8] sm:$0xff]
        %v2853 = vld [vmem:[%s7 + $0x2c0] sm:$0xf]
        %v2854 = vld [vmem:[%s7 + $0x2c4] sm:$0xff]
        %v2855 = vld [vmem:[%s7 + $0x2cc] sm:$0xf]
        %v2856 = vld [vmem:[%s7 + $0x2d0] sm:$0xff]
        %v2857 = vld [vmem:[%s7 + $0x2d8] sm:$0xf]
        %v2858 = vld [vmem:[%s7 + $0x2dc] sm:$0xff]
        %v2859 = vld [vmem:[%s7 + $0x2e4] sm:$0xf]
        %v2860 = vld [vmem:[%s7 + $0x2e8] sm:$0xff]
        %v2861 = vld [vmem:[%s7 + $0x2f0] sm:$0xf]
        %v2862 = vld [vmem:[%s7 + $0x2f4] sm:$0xff]
        %v2863 = vld [vmem:[%s7 + $0x2fc] sm:$0xf]
        %v2864 = vld [vmem:[%s8] sm:$0x7]
        %v2866 = vlaneseq
        %v2867 = vshrl.u32 %v2866, 7
        %v2868 = vsub.s32 0, %v2867
        %v2869 = vrot.slane %v2864, %v2868
        %v2870 = vlaneseq
        %v2871 = vshrl.u32 %v2870, 7
        %v2872 = vsub.s32 1, %v2871
        %v2873 = vrot.slane %v2864, %v2872
        %v2874 = vlaneseq
        %v2875 = vshrl.u32 %v2874, 7
        %v2876 = vsub.s32 2, %v2875
        %v2877 = vrot.slane %v2864, %v2876
        %v3009 = vunpack.c.l.b16 %v2736
        %v3010 = vunpack.c.h.b16 %v2736
        %v3011 = vunpack.c.l.b16 %v2737
        %v3012 = vunpack.c.l.b16 %v2738
        %v3013 = vunpack.c.h.b16 %v2738
        %v3014 = vunpack.c.l.b16 %v2739
        %v3015 = vunpack.c.l.b16 %v2740
        %v3016 = vunpack.c.h.b16 %v2740
        %v3017 = vunpack.c.l.b16 %v2741
        %v3018 = vunpack.c.l.b16 %v2742
        %v3019 = vunpack.c.h.b16 %v2742
        %v3020 = vunpack.c.l.b16 %v2743
        %v3021 = vunpack.c.l.b16 %v2744
        %v3022 = vunpack.c.h.b16 %v2744
        %v3023 = vunpack.c.l.b16 %v2745
        %v3024 = vunpack.c.l.b16 %v2746
        %v3025 = vunpack.c.h.b16 %v2746
        %v3026 = vunpack.c.l.b16 %v2747
        %v3027 = vunpack.c.l.b16 %v2748
        %v3028 = vunpack.c.h.b16 %v2748
        %v3029 = vunpack.c.l.b16 %v2749
        %v3030 = vunpack.c.l.b16 %v2750
        %v3031 = vunpack.c.h.b16 %v2750
        %v3032 = vunpack.c.l.b16 %v2751
        %v3033 = vunpack.c.l.b16 %v2752
        %v3034 = vunpack.c.h.b16 %v2752
        %v3035 = vunpack.c.l.b16 %v2753
        %v3036 = vunpack.c.l.b16 %v2754
        %v3037 = vunpack.c.h.b16 %v2754
        %v3038 = vunpack.c.l.b16 %v2755
        %v3039 = vunpack.c.l.b16 %v2756
        %v3040 = vunpack.c.h.b16 %v2756
        %v3041 = vunpack.c.l.b16 %v2757
        %v3042 = vunpack.c.l.b16 %v2758
        %v3043 = vunpack.c.h.b16 %v2758
        %v3044 = vunpack.c.l.b16 %v2759
        %v3045 = vunpack.c.l.b16 %v2760
        %v3046 = vunpack.c.h.b16 %v2760
        %v3047 = vunpack.c.l.b16 %v2761
        %v3048 = vunpack.c.l.b16 %v2762
        %v3049 = vunpack.c.h.b16 %v2762
        %v3050 = vunpack.c.l.b16 %v2763
        %v3051 = vunpack.c.l.b16 %v2764
        %v3052 = vunpack.c.h.b16 %v2764
        %v3053 = vunpack.c.l.b16 %v2765
        %v3054 = vunpack.c.l.b16 %v2766
        %v3055 = vunpack.c.h.b16 %v2766
        %v3056 = vunpack.c.l.b16 %v2767
        %v3057 = vunpack.c.l.b16 %v2768
        %v3058 = vunpack.c.h.b16 %v2768
        %v3059 = vunpack.c.l.b16 %v2769
        %v3060 = vunpack.c.l.b16 %v2770
        %v3061 = vunpack.c.h.b16 %v2770
        %v3062 = vunpack.c.l.b16 %v2771
        %v3063 = vunpack.c.l.b16 %v2772
        %v3064 = vunpack.c.h.b16 %v2772
        %v3065 = vunpack.c.l.b16 %v2773
        %v3066 = vunpack.c.l.b16 %v2774
        %v3067 = vunpack.c.h.b16 %v2774
        %v3068 = vunpack.c.l.b16 %v2775
        %v3069 = vunpack.c.l.b16 %v2776
        %v3070 = vunpack.c.h.b16 %v2776
        %v3071 = vunpack.c.l.b16 %v2777
        %v3072 = vunpack.c.l.b16 %v2778
        %v3073 = vunpack.c.h.b16 %v2778
        %v3074 = vunpack.c.l.b16 %v2779
        %v3075 = vunpack.c.l.b16 %v2780
        %v3076 = vunpack.c.h.b16 %v2780
        %v3077 = vunpack.c.l.b16 %v2781
        %v3078 = vunpack.c.l.b16 %v2782
        %v3079 = vunpack.c.h.b16 %v2782
        %v3080 = vunpack.c.l.b16 %v2783
        %v3081 = vunpack.c.l.b16 %v2784
        %v3082 = vunpack.c.h.b16 %v2784
        %v3083 = vunpack.c.l.b16 %v2785
        %v3084 = vunpack.c.l.b16 %v2786
        %v3085 = vunpack.c.h.b16 %v2786
        %v3086 = vunpack.c.l.b16 %v2787
        %v3087 = vunpack.c.l.b16 %v2788
        %v3088 = vunpack.c.h.b16 %v2788
        %v3089 = vunpack.c.l.b16 %v2789
        %v3090 = vunpack.c.l.b16 %v2790
        %v3091 = vunpack.c.h.b16 %v2790
        %v3092 = vunpack.c.l.b16 %v2791
        %v3093 = vunpack.c.l.b16 %v2792
        %v3094 = vunpack.c.h.b16 %v2792
        %v3095 = vunpack.c.l.b16 %v2793
        %v3096 = vunpack.c.l.b16 %v2794
        %v3097 = vunpack.c.h.b16 %v2794
        %v3098 = vunpack.c.l.b16 %v2795
        %v3099 = vunpack.c.l.b16 %v2796
        %v3100 = vunpack.c.h.b16 %v2796
        %v3101 = vunpack.c.l.b16 %v2797
        %v3102 = vunpack.c.l.b16 %v2798
        %v3103 = vunpack.c.h.b16 %v2798
        %v3104 = vunpack.c.l.b16 %v2799
        %v3105 = vunpack.c.l.b16 %v2800
        %v3106 = vunpack.c.h.b16 %v2800
        %v3107 = vunpack.c.l.b16 %v2801
        %v3108 = vunpack.c.l.b16 %v2802
        %v3109 = vunpack.c.h.b16 %v2802
        %v3110 = vunpack.c.l.b16 %v2803
        %v3111 = vunpack.c.l.b16 %v2804
        %v3112 = vunpack.c.h.b16 %v2804
        %v3113 = vunpack.c.l.b16 %v2805
        %v3114 = vunpack.c.l.b16 %v2806
        %v3115 = vunpack.c.h.b16 %v2806
        %v3116 = vunpack.c.l.b16 %v2807
        %v3117 = vunpack.c.l.b16 %v2808
        %v3118 = vunpack.c.h.b16 %v2808
        %v3119 = vunpack.c.l.b16 %v2809
        %v3120 = vunpack.c.l.b16 %v2810
        %v3121 = vunpack.c.h.b16 %v2810
        %v3122 = vunpack.c.l.b16 %v2811
        %v3123 = vunpack.c.l.b16 %v2812
        %v3124 = vunpack.c.h.b16 %v2812
        %v3125 = vunpack.c.l.b16 %v2813
        %v3126 = vunpack.c.l.b16 %v2814
        %v3127 = vunpack.c.h.b16 %v2814
        %v3128 = vunpack.c.l.b16 %v2815
        %v3129 = vunpack.c.l.b16 %v2816
        %v3130 = vunpack.c.h.b16 %v2816
        %v3131 = vunpack.c.l.b16 %v2817
        %v3132 = vunpack.c.l.b16 %v2818
        %v3133 = vunpack.c.h.b16 %v2818
        %v3134 = vunpack.c.l.b16 %v2819
        %v3135 = vunpack.c.l.b16 %v2820
        %v3136 = vunpack.c.h.b16 %v2820
        %v3137 = vunpack.c.l.b16 %v2821
        %v3138 = vunpack.c.l.b16 %v2822
        %v3139 = vunpack.c.h.b16 %v2822
        %v3140 = vunpack.c.l.b16 %v2823
        %v3141 = vunpack.c.l.b16 %v2824
        %v3142 = vunpack.c.h.b16 %v2824
        %v3143 = vunpack.c.l.b16 %v2825
        %v3144 = vunpack.c.l.b16 %v2826
        %v3145 = vunpack.c.h.b16 %v2826
        %v3146 = vunpack.c.l.b16 %v2827
        %v3147 = vunpack.c.l.b16 %v2828
        %v3148 = vunpack.c.h.b16 %v2828
        %v3149 = vunpack.c.l.b16 %v2829
        %v3150 = vunpack.c.l.b16 %v2830
        %v3151 = vunpack.c.h.b16 %v2830
        %v3152 = vunpack.c.l.b16 %v2831
        %v3153 = vunpack.c.l.b16 %v2832
        %v3154 = vunpack.c.h.b16 %v2832
        %v3155 = vunpack.c.l.b16 %v2833
        %v3156 = vunpack.c.l.b16 %v2834
        %v3157 = vunpack.c.h.b16 %v2834
        %v3158 = vunpack.c.l.b16 %v2835
        %v3159 = vunpack.c.l.b16 %v2836
        %v3160 = vunpack.c.h.b16 %v2836
        %v3161 = vunpack.c.l.b16 %v2837
        %v3162 = vunpack.c.l.b16 %v2838
        %v3163 = vunpack.c.h.b16 %v2838
        %v3164 = vunpack.c.l.b16 %v2839
        %v3165 = vunpack.c.l.b16 %v2840
        %v3166 = vunpack.c.h.b16 %v2840
        %v3167 = vunpack.c.l.b16 %v2841
        %v3168 = vunpack.c.l.b16 %v2842
        %v3169 = vunpack.c.h.b16 %v2842
        %v3170 = vunpack.c.l.b16 %v2843
        %v3171 = vunpack.c.l.b16 %v2844
        %v3172 = vunpack.c.h.b16 %v2844
        %v3173 = vunpack.c.l.b16 %v2845
        %v3174 = vunpack.c.l.b16 %v2846
        %v3175 = vunpack.c.h.b16 %v2846
        %v3176 = vunpack.c.l.b16 %v2847
        %v3177 = vunpack.c.l.b16 %v2848
        %v3178 = vunpack.c.h.b16 %v2848
        %v3179 = vunpack.c.l.b16 %v2849
        %v3180 = vunpack.c.l.b16 %v2850
        %v3181 = vunpack.c.h.b16 %v2850
        %v3182 = vunpack.c.l.b16 %v2851
        %v3183 = vunpack.c.l.b16 %v2852
        %v3184 = vunpack.c.h.b16 %v2852
        %v3185 = vunpack.c.l.b16 %v2853
        %v3186 = vunpack.c.l.b16 %v2854
        %v3187 = vunpack.c.h.b16 %v2854
        %v3188 = vunpack.c.l.b16 %v2855
        %v3189 = vunpack.c.l.b16 %v2856
        %v3190 = vunpack.c.h.b16 %v2856
        %v3191 = vunpack.c.l.b16 %v2857
        %v3192 = vunpack.c.l.b16 %v2858
        %v3193 = vunpack.c.h.b16 %v2858
        %v3194 = vunpack.c.l.b16 %v2859
        %v3195 = vunpack.c.l.b16 %v2860
        %v3196 = vunpack.c.h.b16 %v2860
        %v3197 = vunpack.c.l.b16 %v2861
        %v3198 = vunpack.c.l.b16 %v2862
        %v3199 = vunpack.c.h.b16 %v2862
        %v3200 = vunpack.c.l.b16 %v2863
        %v3201 = vpack.c.b16 %v3012, %v3009
        %v3202 = vpack.c.b16 %v3013, %v3010
        %v3203 = vpack.c.b16 %v3014, %v3011
        %v3204 = vpack.c.b16 %v3018, %v3015
        %v3205 = vpack.c.b16 %v3019, %v3016
        %v3206 = vpack.c.b16 %v3020, %v3017
        %v3207 = vpack.c.b16 %v3024, %v3021
        %v3208 = vpack.c.b16 %v3025, %v3022
        %v3209 = vpack.c.b16 %v3026, %v3023
        %v3210 = vpack.c.b16 %v3030, %v3027
        %v3211 = vpack.c.b16 %v3031, %v3028
        %v3212 = vpack.c.b16 %v3032, %v3029
        %v3213 = vpack.c.b16 %v3036, %v3033
        %v3214 = vpack.c.b16 %v3037, %v3034
        %v3215 = vpack.c.b16 %v3038, %v3035
        %v3216 = vpack.c.b16 %v3042, %v3039
        %v3217 = vpack.c.b16 %v3043, %v3040
        %v3218 = vpack.c.b16 %v3044, %v3041
        %v3219 = vpack.c.b16 %v3048, %v3045
        %v3220 = vpack.c.b16 %v3049, %v3046
        %v3221 = vpack.c.b16 %v3050, %v3047
        %v3222 = vpack.c.b16 %v3054, %v3051
        %v3223 = vpack.c.b16 %v3055, %v3052
        %v3224 = vpack.c.b16 %v3056, %v3053
        %v3225 = vpack.c.b16 %v3060, %v3057
        %v3226 = vpack.c.b16 %v3061, %v3058
        %v3227 = vpack.c.b16 %v3062, %v3059
        %v3228 = vpack.c.b16 %v3066, %v3063
        %v3229 = vpack.c.b16 %v3067, %v3064
        %v3230 = vpack.c.b16 %v3068, %v3065
        %v3231 = vpack.c.b16 %v3072, %v3069
        %v3232 = vpack.c.b16 %v3073, %v3070
        %v3233 = vpack.c.b16 %v3074, %v3071
        %v3234 = vpack.c.b16 %v3078, %v3075
        %v3235 = vpack.c.b16 %v3079, %v3076
        %v3236 = vpack.c.b16 %v3080, %v3077
        %v3237 = vpack.c.b16 %v3084, %v3081
        %v3238 = vpack.c.b16 %v3085, %v3082
        %v3239 = vpack.c.b16 %v3086, %v3083
        %v3240 = vpack.c.b16 %v3090, %v3087
        %v3241 = vpack.c.b16 %v3091, %v3088
        %v3242 = vpack.c.b16 %v3092, %v3089
        %v3243 = vpack.c.b16 %v3096, %v3093
        %v3244 = vpack.c.b16 %v3097, %v3094
        %v3245 = vpack.c.b16 %v3098, %v3095
        %v3246 = vpack.c.b16 %v3102, %v3099
        %v3247 = vpack.c.b16 %v3103, %v3100
        %v3248 = vpack.c.b16 %v3104, %v3101
        %v3249 = vpack.c.b16 %v3108, %v3105
        %v3250 = vpack.c.b16 %v3109, %v3106
        %v3251 = vpack.c.b16 %v3110, %v3107
        %v3252 = vpack.c.b16 %v3114, %v3111
        %v3253 = vpack.c.b16 %v3115, %v3112
        %v3254 = vpack.c.b16 %v3116, %v3113
        %v3255 = vpack.c.b16 %v3120, %v3117
        %v3256 = vpack.c.b16 %v3121, %v3118
        %v3257 = vpack.c.b16 %v3122, %v3119
        %v3258 = vpack.c.b16 %v3126, %v3123
        %v3259 = vpack.c.b16 %v3127, %v3124
        %v3260 = vpack.c.b16 %v3128, %v3125
        %v3261 = vpack.c.b16 %v3132, %v3129
        %v3262 = vpack.c.b16 %v3133, %v3130
        %v3263 = vpack.c.b16 %v3134, %v3131
        %v3264 = vpack.c.b16 %v3138, %v3135
        %v3265 = vpack.c.b16 %v3139, %v3136
        %v3266 = vpack.c.b16 %v3140, %v3137
        %v3267 = vpack.c.b16 %v3144, %v3141
        %v3268 = vpack.c.b16 %v3145, %v3142
        %v3269 = vpack.c.b16 %v3146, %v3143
        %v3270 = vpack.c.b16 %v3150, %v3147
        %v3271 = vpack.c.b16 %v3151, %v3148
        %v3272 = vpack.c.b16 %v3152, %v3149
        %v3273 = vpack.c.b16 %v3156, %v3153
        %v3274 = vpack.c.b16 %v3157, %v3154
        %v3275 = vpack.c.b16 %v3158, %v3155
        %v3276 = vpack.c.b16 %v3162, %v3159
        %v3277 = vpack.c.b16 %v3163, %v3160
        %v3278 = vpack.c.b16 %v3164, %v3161
        %v3279 = vpack.c.b16 %v3168, %v3165
        %v3280 = vpack.c.b16 %v3169, %v3166
        %v3281 = vpack.c.b16 %v3170, %v3167
        %v3282 = vpack.c.b16 %v3174, %v3171
        %v3283 = vpack.c.b16 %v3175, %v3172
        %v3284 = vpack.c.b16 %v3176, %v3173
        %v3285 = vpack.c.b16 %v3180, %v3177
        %v3286 = vpack.c.b16 %v3181, %v3178
        %v3287 = vpack.c.b16 %v3182, %v3179
        %v3288 = vpack.c.b16 %v3186, %v3183
        %v3289 = vpack.c.b16 %v3187, %v3184
        %v3290 = vpack.c.b16 %v3188, %v3185
        %v3291 = vpack.c.b16 %v3192, %v3189
        %v3292 = vpack.c.b16 %v3193, %v3190
        %v3293 = vpack.c.b16 %v3194, %v3191
        %v3294 = vpack.c.b16 %v3198, %v3195
        %v3295 = vpack.c.b16 %v3199, %v3196
        %v3296 = vpack.c.b16 %v3200, %v3197
        %3393 = vmatprep.subr.bf16.mxu0 %v3202
        %3394 = vmatpush1.bf16.msra.mxu0 %v3201
        %3395 = vmatprep.subr.bf16.mxu0 %v3205
        %3396 = vmatpush1.bf16.msra.mxu0 %v3204
        %3397 = vmatprep.subr.bf16.mxu0 %v3208
        %3398 = vmatpush1.bf16.msra.mxu0 %v3207
        %3399 = vmatprep.subr.bf16.mxu0 %v3211
        %3400 = vmatpush1.bf16.msra.mxu0 %v3210
        %3401 = vmatprep.subr.bf16.mxu0 %v3214
        %3402 = vmatpush1.bf16.msra.mxu0 %v3213
        %3403 = vmatprep.subr.bf16.mxu0 %v3217
        %3404 = vmatpush1.bf16.msra.mxu0 %v3216
        %3405 = vmatprep.subr.bf16.mxu0 %v3220
        %3406 = vmatpush1.bf16.msra.mxu0 %v3219
        %3407 = vmatprep.subr.bf16.mxu0 %v3223
        %3408 = vmatpush1.bf16.msra.mxu0 %v3222
        %3409 = vmatprep.subr.bf16.mxu0 %v3226
        %3410 = vmatpush1.bf16.msra.mxu0 %v3225
        %3411 = vmatprep.subr.bf16.mxu0 %v3229
        %3412 = vmatpush1.bf16.msra.mxu0 %v3228
        %3413 = vmatprep.subr.bf16.mxu0 %v3232
        %3414 = vmatpush1.bf16.msra.mxu0 %v3231
        %3415 = vmatprep.subr.bf16.mxu0 %v3235
        %3416 = vmatpush1.bf16.msra.mxu0 %v3234
        %3417 = vmatprep.subr.bf16.mxu0 %v3238
        %3418 = vmatpush1.bf16.msra.mxu0 %v3237
        %3419 = vmatprep.subr.bf16.mxu0 %v3241
        %3420 = vmatpush1.bf16.msra.mxu0 %v3240
        %3421 = vmatprep.subr.bf16.mxu0 %v3244
        %3422 = vmatpush1.bf16.msra.mxu0 %v3243
        %3423 = vmatprep.subr.bf16.mxu0 %v3247
        %3424 = vmatpush1.bf16.msra.mxu0 %v3246
        %3425 = vmatprep.mubr.bf16.mxu0 %v2705
        %3426 = vmatmul.mubr.bf16.gmra.mrb[0].mxu0 %v2704
        %v3427 = vpop.f32.mrb[0].mxu0
        %v3428 = vadd.f32 %v2869, %v3427
        %v3429 = vpop.f32.mrb[0].mxu0
        %v3430 = vadd.f32 %v2873, %v3429
        %v3431 = vpop.f32.mrb[0].mxu0
        %v3432 = vadd.f32 %v2869, %v3431
        %v3433 = vpop.f32.mrb[0].mxu0
        %v3434 = vadd.f32 %v2873, %v3433
        %3435 = vmatprep.mubr.bf16.mxu0 %v2709
        %3436 = vmatmul.mubr.bf16.gmra.mrb[0].mxu0 %v2708
        %v3437 = vpop.f32.mrb[0].mxu0
        %v3438 = vadd.f32 %v2869, %v3437
        %v3439 = vpop.f32.mrb[0].mxu0
        %v3440 = vadd.f32 %v2873, %v3439
        %v3441 = vpop.f32.mrb[0].mxu0
        %v3442 = vadd.f32 %v2869, %v3441
        %v3443 = vpop.f32.mrb[0].mxu0
        %v3444 = vadd.f32 %v2873, %v3443
        %3445 = vmatprep.mubr.bf16.mxu0 %v2713
        %3446 = vmatmul.mubr.bf16.gmra.mrb[0].mxu0 %v2712
        %v3447 = vpop.f32.mrb[0].mxu0
        %v3448 = vadd.f32 %v2869, %v3447
        %v3449 = vpop.f32.mrb[0].mxu0
        %v3450 = vadd.f32 %v2873, %v3449
        %v3451 = vpop.f32.mrb[0].mxu0
        %v3452 = vadd.f32 %v2869, %v3451
        %v3453 = vpop.f32.mrb[0].mxu0
        %v3454 = vadd.f32 %v2873, %v3453
        %3455 = vmatprep.mubr.bf16.mxu0 %v2717
        %3456 = vmatmul.mubr.bf16.gmra.mrb[0].mxu0 %v2716
        %v3457 = vpop.f32.mrb[0].mxu0
        %v3458 = vadd.f32 %v2869, %v3457
        %v3459 = vpop.f32.mrb[0].mxu0
        %v3460 = vadd.f32 %v2873, %v3459
        %v3461 = vpop.f32.mrb[0].mxu0
        %v3462 = vadd.f32 %v2869, %v3461
        %v3463 = vpop.f32.mrb[0].mxu0
        %v3464 = vadd.f32 %v2873, %v3463
        %3465 = vmatprep.mubr.bf16.mxu0 %v2721
        %3466 = vmatmul.mubr.bf16.gmra.mrb[0].mxu0 %v2720
        %v3467 = vpop.f32.mrb[0].mxu0
        %v3468 = vadd.f32 %v2869, %v3467
        %v3469 = vpop.f32.mrb[0].mxu0
        %v3470 = vadd.f32 %v2873, %v3469
        %v3471 = vpop.f32.mrb[0].mxu0
        %v3472 = vadd.f32 %v2869, %v3471
        %v3473 = vpop.f32.mrb[0].mxu0
        %v3474 = vadd.f32 %v2873, %v3473
        %3475 = vmatprep.mubr.bf16.mxu0 %v2725
        %3476 = vmatmul.mubr.bf16.gmra.mrb[0].mxu0 %v2724
        %v3477 = vpop.f32.mrb[0].mxu0
        %v3478 = vadd.f32 %v2869, %v3477
        %v3479 = vpop.f32.mrb[0].mxu0
        %v3480 = vadd.f32 %v2873, %v3479
        %v3481 = vpop.f32.mrb[0].mxu0
        %v3482 = vadd.f32 %v2869, %v3481
        %v3483 = vpop.f32.mrb[0].mxu0
        %v3484 = vadd.f32 %v2873, %v3483
        %3485 = vmatprep.mubr.bf16.mxu0 %v2729
        %3486 = vmatmul.mubr.bf16.gmra.mrb[0].mxu0 %v2728
        %v3487 = vpop.f32.mrb[0].mxu0
        %v3488 = vadd.f32 %v2869, %v3487
        %v3489 = vpop.f32.mrb[0].mxu0
        %v3490 = vadd.f32 %v2873, %v3489
        %v3491 = vpop.f32.mrb[0].mxu0
        %v3492 = vadd.f32 %v2869, %v3491
        %v3493 = vpop.f32.mrb[0].mxu0
        %v3494 = vadd.f32 %v2873, %v3493
        %3495 = vmatprep.mubr.bf16.mxu0 %v2733
        %3496 = vmatmul.mubr.bf16.gmra.mrb[0].mxu0 %v2732
        %v3497 = vpop.f32.mrb[0].mxu0
        %v3498 = vadd.f32 %v2869, %v3497
        %v3499 = vpop.f32.mrb[0].mxu0
        %v3500 = vadd.f32 %v2873, %v3499
        %v3501 = vpop.f32.mrb[0].mxu0
        %v3502 = vadd.f32 %v2869, %v3501
        %v3503 = vpop.f32.mrb[0].mxu0
        %v3504 = vadd.f32 %v2873, %v3503
        %3505 = vdwg.mxu0
        %3506 = vmatprep.subr.bf16.mxu0 %v3250
        %3507 = vmatpush1.bf16.msra.mxu0 %v3249
        %3508 = vmatprep.subr.bf16.mxu0 %v3253
        %3509 = vmatpush1.bf16.msra.mxu0 %v3252
        %3510 = vmatprep.subr.bf16.mxu0 %v3256
        %3511 = vmatpush1.bf16.msra.mxu0 %v3255
        %3512 = vmatprep.subr.bf16.mxu0 %v3259
        %3513 = vmatpush1.bf16.msra.mxu0 %v3258
        %3514 = vmatprep.subr.bf16.mxu0 %v3262
        %3515 = vmatpush1.bf16.msra.mxu0 %v3261
        %3516 = vmatprep.subr.bf16.mxu0 %v3265
        %3517 = vmatpush1.bf16.msra.mxu0 %v3264
        %3518 = vmatprep.subr.bf16.mxu0 %v3268
        %3519 = vmatpush1.bf16.msra.mxu0 %v3267
        %3520 = vmatprep.subr.bf16.mxu0 %v3271
        %3521 = vmatpush1.bf16.msra.mxu0 %v3270
        %3522 = vmatprep.subr.bf16.mxu0 %v3274
        %3523 = vmatpush1.bf16.msra.mxu0 %v3273
        %3524 = vmatprep.subr.bf16.mxu0 %v3277
        %3525 = vmatpush1.bf16.msra.mxu0 %v3276
        %3526 = vmatprep.subr.bf16.mxu0 %v3280
        %3527 = vmatpush1.bf16.msra.mxu0 %v3279
        %3528 = vmatprep.subr.bf16.mxu0 %v3283
        %3529 = vmatpush1.bf16.msra.mxu0 %v3282
        %3530 = vmatprep.subr.bf16.mxu0 %v3286
        %3531 = vmatpush1.bf16.msra.mxu0 %v3285
        %3532 = vmatprep.subr.bf16.mxu0 %v3289
        %3533 = vmatpush1.bf16.msra.mxu0 %v3288
        %3534 = vmatprep.subr.bf16.mxu0 %v3292
        %3535 = vmatpush1.bf16.msra.mxu0 %v3291
        %3536 = vmatprep.subr.bf16.mxu0 %v3295
        %3537 = vmatpush1.bf16.msra.mxu0 %v3294
        %3538 = vmatprep.mubr.bf16.mxu0 %v2707
        %3539 = vmatmul.mubr.bf16.gmra.mrb[0].mxu0 %v2706
        %v3540 = vpop.f32.mrb[0].mxu0
        %v3541 = vadd.f32 %v3428, %v3540
        %v3542 = vpop.f32.mrb[0].mxu0
        %v3543 = vadd.f32 %v3430, %v3542
        %v3544 = vpop.f32.mrb[0].mxu0
        %v3545 = vadd.f32 %v3432, %v3544
        %v3546 = vpop.f32.mrb[0].mxu0
        %v3547 = vadd.f32 %v3434, %v3546
        %3548 = vmatprep.mubr.bf16.mxu0 %v2711
        %3549 = vmatmul.mubr.bf16.gmra.mrb[0].mxu0 %v2710
        %v3550 = vpop.f32.mrb[0].mxu0
        %v3551 = vadd.f32 %v3438, %v3550
        %v3552 = vpop.f32.mrb[0].mxu0
        %v3553 = vadd.f32 %v3440, %v3552
        %v3554 = vpop.f32.mrb[0].mxu0
        %v3555 = vadd.f32 %v3442, %v3554
        %v3556 = vpop.f32.mrb[0].mxu0
        %v3557 = vadd.f32 %v3444, %v3556
        %3558 = vmatprep.mubr.bf16.mxu0 %v2715
        %3559 = vmatmul.mubr.bf16.gmra.mrb[0].mxu0 %v2714
        %v3560 = vpop.f32.mrb[0].mxu0
        %v3561 = vadd.f32 %v3448, %v3560
        %v3562 = vpop.f32.mrb[0].mxu0
        %v3563 = vadd.f32 %v3450, %v3562
        %v3564 = vpop.f32.mrb[0].mxu0
        %v3565 = vadd.f32 %v3452, %v3564
        %v3566 = vpop.f32.mrb[0].mxu0
        %v3567 = vadd.f32 %v3454, %v3566
        %3568 = vmatprep.mubr.bf16.mxu0 %v2719
        %3569 = vmatmul.mubr.bf16.gmra.mrb[0].mxu0 %v2718
        %v3570 = vpop.f32.mrb[0].mxu0
        %v3571 = vadd.f32 %v3458, %v3570
        %v3572 = vpop.f32.mrb[0].mxu0
        %v3573 = vadd.f32 %v3460, %v3572
        %v3574 = vpop.f32.mrb[0].mxu0
        %v3575 = vadd.f32 %v3462, %v3574
        %v3576 = vpop.f32.mrb[0].mxu0
        %v3577 = vadd.f32 %v3464, %v3576
        %3578 = vmatprep.mubr.bf16.mxu0 %v2723
        %3579 = vmatmul.mubr.bf16.gmra.mrb[0].mxu0 %v2722
        %v3580 = vpop.f32.mrb[0].mxu0
        %v3581 = vadd.f32 %v3468, %v3580
        %v3582 = vpop.f32.mrb[0].mxu0
        %v3583 = vadd.f32 %v3470, %v3582
        %v3584 = vpop.f32.mrb[0].mxu0
        %v3585 = vadd.f32 %v3472, %v3584
        %v3586 = vpop.f32.mrb[0].mxu0
        %v3587 = vadd.f32 %v3474, %v3586
        %3588 = vmatprep.mubr.bf16.mxu0 %v2727
        %3589 = vmatmul.mubr.bf16.gmra.mrb[0].mxu0 %v2726
        %v3590 = vpop.f32.mrb[0].mxu0
        %v3591 = vadd.f32 %v3478, %v3590
        %v3592 = vpop.f32.mrb[0].mxu0
        %v3593 = vadd.f32 %v3480, %v3592
        %v3594 = vpop.f32.mrb[0].mxu0
        %v3595 = vadd.f32 %v3482, %v3594
        %v3596 = vpop.f32.mrb[0].mxu0
        %v3597 = vadd.f32 %v3484, %v3596
        %3598 = vmatprep.mubr.bf16.mxu0 %v2731
        %3599 = vmatmul.mubr.bf16.gmra.mrb[0].mxu0 %v2730
        %v3600 = vpop.f32.mrb[0].mxu0
        %v3601 = vadd.f32 %v3488, %v3600
        %v3602 = vpop.f32.mrb[0].mxu0
        %v3603 = vadd.f32 %v3490, %v3602
        %v3604 = vpop.f32.mrb[0].mxu0
        %v3605 = vadd.f32 %v3492, %v3604
        %v3606 = vpop.f32.mrb[0].mxu0
        %v3607 = vadd.f32 %v3494, %v3606
        %3608 = vmatprep.mubr.bf16.mxu0 %v2735
        %3609 = vmatmul.mubr.bf16.gmra.mrb[0].mxu0 %v2734
        %v3610 = vpop.f32.mrb[0].mxu0
        %v3611 = vadd.f32 %v3498, %v3610
        %v3612 = vpop.f32.mrb[0].mxu0
        %v3613 = vadd.f32 %v3500, %v3612
        %v3614 = vpop.f32.mrb[0].mxu0
        %v3615 = vadd.f32 %v3502, %v3614
        %v3616 = vpop.f32.mrb[0].mxu0
        %v3617 = vadd.f32 %v3504, %v3616
        %3618 = vdwg.mxu0
        %3619 = vmatprep.subr.bf16.mxu0 0
        %3620 = vmatpush1.bf16.msra.mxu0 %v3203
        %3621 = vmatprep.subr.bf16.mxu0 0
        %3622 = vmatpush1.bf16.msra.mxu0 %v3206
        %3623 = vmatprep.subr.bf16.mxu0 0
        %3624 = vmatpush1.bf16.msra.mxu0 %v3209
        %3625 = vmatprep.subr.bf16.mxu0 0
        %3626 = vmatpush1.bf16.msra.mxu0 %v3212
        %3627 = vmatprep.subr.bf16.mxu0 0
        %3628 = vmatpush1.bf16.msra.mxu0 %v3215
        %3629 = vmatprep.subr.bf16.mxu0 0
        %3630 = vmatpush1.bf16.msra.mxu0 %v3218
        %3631 = vmatprep.subr.bf16.mxu0 0
        %3632 = vmatpush1.bf16.msra.mxu0 %v3221
        %3633 = vmatprep.subr.bf16.mxu0 0
        %3634 = vmatpush1.bf16.msra.mxu0 %v3224
        %3635 = vmatprep.subr.bf16.mxu0 0
        %3636 = vmatpush1.bf16.msra.mxu0 %v3227
        %3637 = vmatprep.subr.bf16.mxu0 0
        %3638 = vmatpush1.bf16.msra.mxu0 %v3230
        %3639 = vmatprep.subr.bf16.mxu0 0
        %3640 = vmatpush1.bf16.msra.mxu0 %v3233
        %3641 = vmatprep.subr.bf16.mxu0 0
        %3642 = vmatpush1.bf16.msra.mxu0 %v3236
        %3643 = vmatprep.subr.bf16.mxu0 0
        %3644 = vmatpush1.bf16.msra.mxu0 %v3239
        %3645 = vmatprep.subr.bf16.mxu0 0
        %3646 = vmatpush1.bf16.msra.mxu0 %v3242
        %3647 = vmatprep.subr.bf16.mxu0 0
        %3648 = vmatpush1.bf16.msra.mxu0 %v3245
        %3649 = vmatprep.subr.bf16.mxu0 0
        %3650 = vmatpush1.bf16.msra.mxu0 %v3248
        %3651 = vmatprep.mubr.bf16.mxu0 %v2705
        %3652 = vmatmul.mubr.bf16.gmra.mrb[0].mxu0 %v2704
        %v3653 = vpop.f32.mrb[0].mxu0
        %v3654 = vadd.f32 %v2877, %v3653
        %v3655 = vpop.f32.mrb[0].mxu0
        %v3656 = vpop.f32.mrb[0].mxu0
        %v3657 = vadd.f32 %v2877, %v3656
        %v3658 = vpop.f32.mrb[0].mxu0
        %3659 = vmatprep.mubr.bf16.mxu0 %v2709
        %3660 = vmatmul.mubr.bf16.gmra.mrb[0].mxu0 %v2708
        %v3661 = vpop.f32.mrb[0].mxu0
        %v3662 = vadd.f32 %v2877, %v3661
        %v3663 = vpop.f32.mrb[0].mxu0
        %v3664 = vpop.f32.mrb[0].mxu0
        %v3665 = vadd.f32 %v2877, %v3664
        %v3666 = vpop.f32.mrb[0].mxu0
        %3667 = vmatprep.mubr.bf16.mxu0 %v2713
        %3668 = vmatmul.mubr.bf16.gmra.mrb[0].mxu0 %v2712
        %v3669 = vpop.f32.mrb[0].mxu0
        %v3670 = vadd.f32 %v2877, %v3669
        %v3671 = vpop.f32.mrb[0].mxu0
        %v3672 = vpop.f32.mrb[0].mxu0
        %v3673 = vadd.f32 %v2877, %v3672
        %v3674 = vpop.f32.mrb[0].mxu0
        %3675 = vmatprep.mubr.bf16.mxu0 %v2717
        %3676 = vmatmul.mubr.bf16.gmra.mrb[0].mxu0 %v2716
        %v3677 = vpop.f32.mrb[0].mxu0
        %v3678 = vadd.f32 %v2877, %v3677
        %v3679 = vpop.f32.mrb[0].mxu0
        %v3680 = vpop.f32.mrb[0].mxu0
        %v3681 = vadd.f32 %v2877, %v3680
        %v3682 = vpop.f32.mrb[0].mxu0
        %3683 = vmatprep.mubr.bf16.mxu0 %v2721
        %3684 = vmatmul.mubr.bf16.gmra.mrb[0].mxu0 %v2720
        %v3685 = vpop.f32.mrb[0].mxu0
        %v3686 = vadd.f32 %v2877, %v3685
        %v3687 = vpop.f32.mrb[0].mxu0
        %v3688 = vpop.f32.mrb[0].mxu0
        %v3689 = vadd.f32 %v2877, %v3688
        %v3690 = vpop.f32.mrb[0].mxu0
        %3691 = vmatprep.mubr.bf16.mxu0 %v2725
        %3692 = vmatmul.mubr.bf16.gmra.mrb[0].mxu0 %v2724
        %v3693 = vpop.f32.mrb[0].mxu0
        %v3694 = vadd.f32 %v2877, %v3693
        %v3695 = vpop.f32.mrb[0].mxu0
        %v3696 = vpop.f32.mrb[0].mxu0
        %v3697 = vadd.f32 %v2877, %v3696
        %v3698 = vpop.f32.mrb[0].mxu0
        %3699 = vmatprep.mubr.bf16.mxu0 %v2729
        %3700 = vmatmul.mubr.bf16.gmra.mrb[0].mxu0 %v2728
        %v3701 = vpop.f32.mrb[0].mxu0
        %v3702 = vadd.f32 %v2877, %v3701
        %v3703 = vpop.f32.mrb[0].mxu0
        %v3704 = vpop.f32.mrb[0].mxu0
        %v3705 = vadd.f32 %v2877, %v3704
        %v3706 = vpop.f32.mrb[0].mxu0
        %3707 = vmatprep.mubr.bf16.mxu0 %v2733
        %3708 = vmatmul.mubr.bf16.gmra.mrb[0].mxu0 %v2732
        %v3709 = vpop.f32.mrb[0].mxu0
        %v3710 = vadd.f32 %v2877, %v3709
        %v3711 = vpop.f32.mrb[0].mxu0
        %v3712 = vpop.f32.mrb[0].mxu0
        %v3713 = vadd.f32 %v2877, %v3712
        %v3714 = vpop.f32.mrb[0].mxu0
        %3715 = vdwg.mxu0
        %3716 = vmatprep.subr.bf16.mxu0 0
        %3717 = vmatpush1.bf16.msra.mxu0 %v3251
        %3718 = vmatprep.subr.bf16.mxu0 0
        %3719 = vmatpush1.bf16.msra.mxu0 %v3254
        %3720 = vmatprep.subr.bf16.mxu0 0
        %3721 = vmatpush1.bf16.msra.mxu0 %v3257
        %3722 = vmatprep.subr.bf16.mxu0 0
        %3723 = vmatpush1.bf16.msra.mxu0 %v3260
        %3724 = vmatprep.subr.bf16.mxu0 0
        %3725 = vmatpush1.bf16.msra.mxu0 %v3263
        %3726 = vmatprep.subr.bf16.mxu0 0
        %3727 = vmatpush1.bf16.msra.mxu0 %v3266
        %3728 = vmatprep.subr.bf16.mxu0 0
        %3729 = vmatpush1.bf16.msra.mxu0 %v3269
        %3730 = vmatprep.subr.bf16.mxu0 0
        %3731 = vmatpush1.bf16.msra.mxu0 %v3272
        %3732 = vmatprep.subr.bf16.mxu0 0
        %3733 = vmatpush1.bf16.msra.mxu0 %v3275
        %3734 = vmatprep.subr.bf16.mxu0 0
        %3735 = vmatpush1.bf16.msra.mxu0 %v3278
        %3736 = vmatprep.subr.bf16.mxu0 0
        %3737 = vmatpush1.bf16.msra.mxu0 %v3281
        %3738 = vmatprep.subr.bf16.mxu0 0
        %3739 = vmatpush1.bf16.msra.mxu0 %v3284
        %3740 = vmatprep.subr.bf16.mxu0 0
        %3741 = vmatpush1.bf16.msra.mxu0 %v3287
        %3742 = vmatprep.subr.bf16.mxu0 0
        %3743 = vmatpush1.bf16.msra.mxu0 %v3290
        %3744 = vmatprep.subr.bf16.mxu0 0
        %3745 = vmatpush1.bf16.msra.mxu0 %v3293
        %3746 = vmatprep.subr.bf16.mxu0 0
        %3747 = vmatpush1.bf16.msra.mxu0 %v3296
        %3748 = vmatprep.mubr.bf16.mxu0 %v2707
        %3749 = vmatmul.mubr.bf16.gmra.mrb[0].mxu0 %v2706
        %v3750 = vpop.f32.mrb[0].mxu0
        %v3751 = vadd.f32 %v3654, %v3750
        %v3752 = vpop.f32.mrb[0].mxu0
        %v3753 = vpop.f32.mrb[0].mxu0
        %v3754 = vadd.f32 %v3657, %v3753
        %v3755 = vpop.f32.mrb[0].mxu0
        %3756 = vmatprep.mubr.bf16.mxu0 %v2711
        %3757 = vmatmul.mubr.bf16.gmra.mrb[0].mxu0 %v2710
        %v3758 = vpop.f32.mrb[0].mxu0
        %v3759 = vadd.f32 %v3662, %v3758
        %v3760 = vpop.f32.mrb[0].mxu0
        %v3761 = vpop.f32.mrb[0].mxu0
        %v3762 = vadd.f32 %v3665, %v3761
        %v3763 = vpop.f32.mrb[0].mxu0
        %3764 = vmatprep.mubr.bf16.mxu0 %v2715
        %3765 = vmatmul.mubr.bf16.gmra.mrb[0].mxu0 %v2714
        %v3766 = vpop.f32.mrb[0].mxu0
        %v3767 = vadd.f32 %v3670, %v3766
        %v3768 = vpop.f32.mrb[0].mxu0
        %v3769 = vpop.f32.mrb[0].mxu0
        %v3770 = vadd.f32 %v3673, %v3769
        %v3771 = vpop.f32.mrb[0].mxu0
        %3772 = vmatprep.mubr.bf16.mxu0 %v2719
        %3773 = vmatmul.mubr.bf16.gmra.mrb[0].mxu0 %v2718
        %v3774 = vpop.f32.mrb[0].mxu0
        %v3775 = vadd.f32 %v3678, %v3774
        %v3776 = vpop.f32.mrb[0].mxu0
        %v3777 = vpop.f32.mrb[0].mxu0
        %v3778 = vadd.f32 %v3681, %v3777
        %v3779 = vpop.f32.mrb[0].mxu0
        %3780 = vmatprep.mubr.bf16.mxu0 %v2723
        %3781 = vmatmul.mubr.bf16.gmra.mrb[0].mxu0 %v2722
        %v3782 = vpop.f32.mrb[0].mxu0
        %v3783 = vadd.f32 %v3686, %v3782
        %v3784 = vpop.f32.mrb[0].mxu0
        %v3785 = vpop.f32.mrb[0].mxu0
        %v3786 = vadd.f32 %v3689, %v3785
        %v3787 = vpop.f32.mrb[0].mxu0
        %3788 = vmatprep.mubr.bf16.mxu0 %v2727
        %3789 = vmatmul.mubr.bf16.gmra.mrb[0].mxu0 %v2726
        %v3790 = vpop.f32.mrb[0].mxu0
        %v3791 = vadd.f32 %v3694, %v3790
        %v3792 = vpop.f32.mrb[0].mxu0
        %v3793 = vpop.f32.mrb[0].mxu0
        %v3794 = vadd.f32 %v3697, %v3793
        %v3795 = vpop.f32.mrb[0].mxu0
        %3796 = vmatprep.mubr.bf16.mxu0 %v2731
        %3797 = vmatmul.mubr.bf16.gmra.mrb[0].mxu0 %v2730
        %v3798 = vpop.f32.mrb[0].mxu0
        %v3799 = vadd.f32 %v3702, %v3798
        %v3800 = vpop.f32.mrb[0].mxu0
        %v3801 = vpop.f32.mrb[0].mxu0
        %v3802 = vadd.f32 %v3705, %v3801
        %v3803 = vpop.f32.mrb[0].mxu0
        %3804 = vmatprep.mubr.bf16.mxu0 %v2735
        %3805 = vmatmul.mubr.bf16.gmra.mrb[0].mxu0 %v2734
        %v3806 = vpop.f32.mrb[0].mxu0
        %v3807 = vadd.f32 %v3710, %v3806
        %v3808 = vpop.f32.mrb[0].mxu0
        %v3809 = vpop.f32.mrb[0].mxu0
        %v3810 = vadd.f32 %v3713, %v3809
        %v3811 = vpop.f32.mrb[0].mxu0
        %3812 = vdwg.mxu0
        %v3813 = vmax.f32 %v3541, 0.0
        %v3814 = vmax.f32 %v3543, 0.0
        %v3815 = vmax.f32 %v3751, 0.0
        %v3816 = vmax.f32 %v3545, 0.0
        %v3817 = vmax.f32 %v3547, 0.0
        %v3818 = vmax.f32 %v3754, 0.0
        %v3819 = vmax.f32 %v3551, 0.0
        %v3820 = vmax.f32 %v3553, 0.0
        %v3821 = vmax.f32 %v3759, 0.0
        %v3822 = vmax.f32 %v3555, 0.0
        %v3823 = vmax.f32 %v3557, 0.0
        %v3824 = vmax.f32 %v3762, 0.0
        %v3825 = vmax.f32 %v3561, 0.0
        %v3826 = vmax.f32 %v3563, 0.0
        %v3827 = vmax.f32 %v3767, 0.0
        %v3828 = vmax.f32 %v3565, 0.0
        %v3829 = vmax.f32 %v3567, 0.0
        %v3830 = vmax.f32 %v3770, 0.0
        %v3831 = vmax.f32 %v3571, 0.0
        %v3832 = vmax.f32 %v3573, 0.0
        %v3833 = vmax.f32 %v3775, 0.0
        %v3834 = vmax.f32 %v3575, 0.0
        %v3835 = vmax.f32 %v3577, 0.0
        %v3836 = vmax.f32 %v3778, 0.0
        %v3837 = vmax.f32 %v3581, 0.0
        %v3838 = vmax.f32 %v3583, 0.0
        %v3839 = vmax.f32 %v3783, 0.0
        %v3840 = vmax.f32 %v3585, 0.0
        %v3841 = vmax.f32 %v3587, 0.0
        %v3842 = vmax.f32 %v3786, 0.0
        %v3843 = vmax.f32 %v3591, 0.0
        %v3844 = vmax.f32 %v3593, 0.0
        %v3845 = vmax.f32 %v3791, 0.0
        %v3846 = vmax.f32 %v3595, 0.0
        %v3847 = vmax.f32 %v3597, 0.0
        %v3848 = vmax.f32 %v3794, 0.0
        %v3849 = vmax.f32 %v3601, 0.0
        %v3850 = vmax.f32 %v3603, 0.0
        %v3851 = vmax.f32 %v3799, 0.0
        %v3852 = vmax.f32 %v3605, 0.0
        %v3853 = vmax.f32 %v3607, 0.0
        %v3854 = vmax.f32 %v3802, 0.0
        %v3855 = vmax.f32 %v3611, 0.0
        %v3856 = vmax.f32 %v3613, 0.0
        %v3857 = vmax.f32 %v3807, 0.0
        %v3858 = vmax.f32 %v3615, 0.0
        %v3859 = vmax.f32 %v3617, 0.0
        %v3860 = vmax.f32 %v3810, 0.0
        %3861 = vst [vmem:[%s403] sm:$0xff] %v2176
        %3862 = vst [vmem:[%s403 + $0x8] sm:$0xff] %v2177
        %3863 = vst [vmem:[%s403 + $0x10] sm:$0xff] %v2178
        %3864 = vst [vmem:[%s403 + $0x18] sm:$0xff] %v2179
        %3865 = vst [vmem:[%s403 + $0x20] sm:$0xff] %v2180
        %3866 = vst [vmem:[%s403 + $0x28] sm:$0xff] %v2181
        %3867 = vst [vmem:[%s403 + $0x30] sm:$0xff] %v2182
        %3868 = vst [vmem:[%s403 + $0x38] sm:$0xff] %v2183
        %3869 = vst [vmem:[%s403 + $0x40] sm:$0xff] %v2184
        %3870 = vst [vmem:[%s403 + $0x48] sm:$0xff] %v2185
        %3871 = vst [vmem:[%s403 + $0x50] sm:$0xff] %v2186
        %3872 = vst [vmem:[%s403 + $0x58] sm:$0xff] %v2187
        %3873 = vst [vmem:[%s403 + $0x60] sm:$0xff] %v2188
        %3874 = vst [vmem:[%s403 + $0x68] sm:$0xff] %v2189
        %3875 = vst [vmem:[%s403 + $0x70] sm:$0xff] %v2190
        %3876 = vst [vmem:[%s403 + $0x78] sm:$0xff] %v2191
        %3877 = vst [vmem:[%s410] sm:$0xff] %v3813
        %3878 = vst [vmem:[%s410 + $0x8] sm:$0xff] %v3814
        %3879 = vst [vmem:[%s410 + $0x10] sm:$0xff] %v3815
        %3880 = vst [vmem:[%s410 + $0x18] sm:$0xff] %v3816
        %3881 = vst [vmem:[%s410 + $0x20] sm:$0xff] %v3817
        %3882 = vst [vmem:[%s410 + $0x28] sm:$0xff] %v3818
        %3883 = vst [vmem:[%s410 + $0x30] sm:$0xff] %v3819
        %3884 = vst [vmem:[%s410 + $0x38] sm:$0xff] %v3820
        %3885 = vst [vmem:[%s410 + $0x40] sm:$0xff] %v3821
        %3886 = vst [vmem:[%s410 + $0x48] sm:$0xff] %v3822
        %3887 = vst [vmem:[%s410 + $0x50] sm:$0xff] %v3823
        %3888 = vst [vmem:[%s410 + $0x58] sm:$0xff] %v3824
        %3889 = vst [vmem:[%s410 + $0x60] sm:$0xff] %v3825
        %3890 = vst [vmem:[%s410 + $0x68] sm:$0xff] %v3826
        %3891 = vst [vmem:[%s410 + $0x70] sm:$0xff] %v3827
        %3892 = vst [vmem:[%s410 + $0x78] sm:$0xff] %v3828
        %3893 = vst [vmem:[%s410 + $0x80] sm:$0xff] %v3829
        %3894 = vst [vmem:[%s410 + $0x88] sm:$0xff] %v3830
        %3895 = vst [vmem:[%s410 + $0x90] sm:$0xff] %v3831
        %3896 = vst [vmem:[%s410 + $0x98] sm:$0xff] %v3832
        %3897 = vst [vmem:[%s410 + $0xa0] sm:$0xff] %v3833
        %3898 = vst [vmem:[%s410 + $0xa8] sm:$0xff] %v3834
        %3899 = vst [vmem:[%s410 + $0xb0] sm:$0xff] %v3835
        %3900 = vst [vmem:[%s410 + $0xb8] sm:$0xff] %v3836
        %3901 = vst [vmem:[%s410 + $0xc0] sm:$0xff] %v3837
        %3902 = vst [vmem:[%s410 + $0xc8] sm:$0xff] %v3838
        %3903 = vst [vmem:[%s410 + $0xd0] sm:$0xff] %v3839
        %3904 = vst [vmem:[%s410 + $0xd8] sm:$0xff] %v3840
        %3905 = vst [vmem:[%s410 + $0xe0] sm:$0xff] %v3841
        %3906 = vst [vmem:[%s410 + $0xe8] sm:$0xff] %v3842
        %3907 = vst [vmem:[%s410 + $0xf0] sm:$0xff] %v3843
        %3908 = vst [vmem:[%s410 + $0xf8] sm:$0xff] %v3844
        %3909 = vst [vmem:[%s410 + $0x100] sm:$0xff] %v3845
        %3910 = vst [vmem:[%s410 + $0x108] sm:$0xff] %v3846
        %3911 = vst [vmem:[%s410 + $0x110] sm:$0xff] %v3847
        %3912 = vst [vmem:[%s410 + $0x118] sm:$0xff] %v3848
        %3913 = vst [vmem:[%s410 + $0x120] sm:$0xff] %v3849
        %3914 = vst [vmem:[%s410 + $0x128] sm:$0xff] %v3850
        %3915 = vst [vmem:[%s410 + $0x130] sm:$0xff] %v3851
        %3916 = vst [vmem:[%s410 + $0x138] sm:$0xff] %v3852
        %3917 = vst [vmem:[%s410 + $0x140] sm:$0xff] %v3853
        %3918 = vst [vmem:[%s410 + $0x148] sm:$0xff] %v3854
        %3919 = vst [vmem:[%s410 + $0x150] sm:$0xff] %v3855
        %3920 = vst [vmem:[%s410 + $0x158] sm:$0xff] %v3856
        %3921 = vst [vmem:[%s410 + $0x160] sm:$0xff] %v3857
        %3922 = vst [vmem:[%s410 + $0x168] sm:$0xff] %v3858
        %3923 = vst [vmem:[%s410 + $0x170] sm:$0xff] %v3859
        %3924 = vst [vmem:[%s410 + $0x178] sm:$0xff] %v3860
        %s3925 = smul.u32 16, %s24
        %p3926 = scmp.lt.s32.totalorder %s3925, 31
        %s3927 = scalar_select %p3926, %s3925, 31
        %s3928 = smul.addr %s3927, 8
        %s3929 = scalar_lea.vmem %s9, %s3928
        %s3930 = smul.u32 16, %s24
        %p3931 = scmp.lt.s32.totalorder %s3930, 31
        %s3932 = scalar_select %p3931, %s3930, 31
        %s3933 = smul.addr %s3932, 3
        %s3934 = smul.addr %s3933, 8
        %s3935 = scalar_lea.vmem %s10, %s3934
        // Predicated region
        $region65: #{feature_ae_pallas.1} parent=55 // pred_check
          %p3936 = pneg %p236
        $region66: #{feature_ae_pallas.1} parent=55 // pred_check_branch
          %3938 = sbr.rel (%p3936) target = $region68
        $region67: #{feature_ae_pallas.1} parent=55 // pred_region
          %s3939 = smul.u32 16, %s24
        $region68: #{feature_ae_pallas.1} parent=55 // pred_fallthru
          _
        // Predicated region
        $region69: #{feature_ae_pallas.1} parent=55 // pred_check
          %p3940 = pneg %p262
        $region70: #{feature_ae_pallas.1} parent=55 // pred_check_branch
          %3942 = sbr.rel (%p3940) target = $region72
        $region71: #{feature_ae_pallas.1} parent=55 // pred_region
          %s3943 = smul.u32 16, %s24
        $region72: #{feature_ae_pallas.1} parent=55 // pred_fallthru
          _
      $region56: #{feature_ae_pallas.1} parent=5 // pred_fallthru
        _
      %p3944 = scmp.le.s32.totalorder 2, %s19
      // Predicated region
      $region73: #{feature_ae_pallas.1} parent=5 // pred_check
        %p3945 = pneg %p3944
      $region74: #{feature_ae_pallas.1} parent=5 // pred_check_branch
        %3947 = sbr.rel (%p3945) target = $region76
      $region75: #{feature_ae_pallas.1} parent=5 // pred_region
        %s3948 = ssub.s32 %s19, 2
        // Predicated region
        $region77: #{feature_ae_pallas.1} parent=75 // pred_check
          %p3949 = pneg %p242
        $region78: #{feature_ae_pallas.1} parent=75 // pred_check_branch
          %3951 = sbr.rel (%p3949) target = $region80
        $region79: #{feature_ae_pallas.1} parent=75 // pred_region
          %s3952 = smul.u32 16, %s25
          %p3953 = scmp.lt.s32.totalorder %s3952, 31
          %s3954 = scalar_select %p3953, %s3952, 31
          %s3955 = smul.addr %s3954, 8
          %s3956 = scalar_lea.vmem %s9, %s3955
        $region80: #{feature_ae_pallas.1} parent=75 // pred_fallthru
          _
        // Predicated region
        $region81: #{feature_ae_pallas.1} parent=75 // pred_check
          %p3957 = pneg %p268
        $region82: #{feature_ae_pallas.1} parent=75 // pred_check_branch
          %3959 = sbr.rel (%p3957) target = $region84
        $region83: #{feature_ae_pallas.1} parent=75 // pred_region
          %s3960 = smul.u32 16, %s25
          %p3961 = scmp.lt.s32.totalorder %s3960, 31
          %s3962 = scalar_select %p3961, %s3960, 31
          %s3963 = smul.addr %s3962, 3
          %s3964 = smul.addr %s3963, 8
          %s3965 = scalar_lea.vmem %s10, %s3964
        $region84: #{feature_ae_pallas.1} parent=75 // pred_fallthru
          _
      $region76: #{feature_ae_pallas.1} parent=5 // pred_fallthru
        _
    $region6: #{feature_ae_pallas.1} parent=1 // loop_footer
      %s23 = sadd.s32 1, %s19
    $region7: #{feature_ae_pallas.1} parent=1 // loop_footer_branch
      %18 = sbr.rel target = $region3
    $region8: #{feature_ae_pallas.1} parent=1 // loop_exit
      _
    %3966 = vsyncpa [#allocation3], 1
    %s3967 = scalar_lea.sflag [#allocation3], 1
    %3968 = vsyncpa %s3967, 1
    %3969 = vsyncpa [#allocation5], 1

</llo_original>
